<compile_context>
chip_gen: v7x
topology: tpu7x:2x2x1
jax: 0.10.0
libtpu: 0.0.40
codegen_flags: <defaults>
</compile_context>

<pallas_src>
import math
import functools

import jax
import jax.numpy as jnp
from jax.experimental import pallas as pl
from jax.experimental.pallas import tpu as pltpu


def _layer_norm(x, g, b, eps=1e-5):
    mu = jnp.mean(x, axis=-1, keepdims=True)
    var = jnp.mean(jnp.square(x - mu), axis=-1, keepdims=True)
    return (x - mu) * jax.lax.rsqrt(var + eps) * g + b


# -----------------------------------------------------------------------------
# Fused per-batch-element kernel (grid=(B,), batch dim squeezed away):
#   - MLP_Layers on [interaction ; neg] rows stacked in VMEM
#   - user_encoder layer loop fully VMEM-resident
# Outputs (each (L, H) per grid step):
#   embs_out : fc(interaction)  (= input_embs_all)
#   prec_out : user_encoder(input_embs_all)
#   neg_out  : fc(neg_list)
# -----------------------------------------------------------------------------
def make_fused_kernel(n_heads):
    def kernel(x_ref, negx_ref, mask_ref, pos_ref,
               w0_ref, b0_ref, w1_ref, b1_ref,
               ln1g_ref, ln1b_ref, wqkv_ref, bqkv_ref, wo_ref, bo_ref,
               ln2g_ref, ln2b_ref, wf1_ref, bf1_ref, wf2_ref, bf2_ref,
               embs_out_ref, prec_out_ref, neg_out_ref):
        L, Din = x_ref.shape
        H = w0_ref.shape[1]
        n_layers = wqkv_ref.shape[0]
        hd = H // n_heads
        b_idx = pl.program_id(0)

        # ------------- MLP_Layers on [interaction ; neg] (stacked in VMEM only)
        x2 = jnp.concatenate([x_ref[...], negx_ref[...]], axis=0)      # (2L, Din)
        h2 = jnp.dot(x2, w0_ref[...], preferred_element_type=jnp.float32) + b0_ref[...]
        # TODO(synk): nn.Dropout is identity at inference time.
        h2 = jnp.dot(h2, w1_ref[...], preferred_element_type=jnp.float32) + b1_ref[...]
        # TODO(synk): tanh-approx GELU kept (Mosaic erf lowering not guaranteed);
        # PyTorch nn.GELU default is exact erf (~1e-3 diff).
        embs2 = jax.nn.gelu(h2, approximate=True)                       # (2L, H)

        fc_embs = embs2[:L]                                             # input_embs_all
        embs_out_ref[...] = fc_embs
        neg_out_ref[...] = embs2[L:]                                    # fc(neg_list)

        # ------------- additive attention mask, built ONCE per batch element
        mask_row = mask_ref[pl.ds(b_idx, 1), :]                         # (1, L)
        row = jax.lax.broadcasted_iota(jnp.int32, (L, L), 0)
        col = jax.lax.broadcasted_iota(jnp.int32, (L, L), 1)
        key_valid = jnp.broadcast_to(mask_row != 0.0, (L, L))
        allowed = (col <= row) & key_valid                              # causal AND key valid
        add_mask = jnp.where(allowed, 0.0, -1e9).astype(jnp.float32)    # (L, L)

        scale = 1.0 / math.sqrt(hd)

        # ------------- user_encoder: pos-emb + pre-norm transformer blocks
        h = fc_embs + pos_ref[...]                                      # (L, H), stays 2-D
        for l in range(n_layers):                                       # tiny static unroll
            # ---- pre-norm multi-head self-attention (fused QKV projection)
            xn = _layer_norm(h, ln1g_ref[l], ln1b_ref[l])
            qkv = jnp.dot(xn, wqkv_ref[l],
                          preferred_element_type=jnp.float32) + bqkv_ref[l]  # (L, 3H)
            q = qkv[:, 0 * H:1 * H].reshape(L, n_heads, hd)
            k = qkv[:, 1 * H:2 * H].reshape(L, n_heads, hd)
            v = qkv[:, 2 * H:3 * H].reshape(L, n_heads, hd)
            q_h = jnp.transpose(q, (1, 0, 2))                           # (n_heads, L, hd)
            k_h = jnp.transpose(k, (1, 0, 2))
            v_h = jnp.transpose(v, (1, 0, 2))
            scores = jnp.einsum('hld,hmd->hlm', q_h, k_h,
                                preferred_element_type=jnp.float32) * scale
            scores = scores + add_mask[None, :, :]                      # broadcast over heads
            # softmax with EUP reciprocal (no VALU divide)
            m = jnp.max(scores, axis=-1, keepdims=True)
            e = jnp.exp(scores - m)
            p_attn = e * pl.reciprocal(jnp.sum(e, axis=-1, keepdims=True), approx=True)
            ctx_h = jnp.einsum('hlm,hmd->hld', p_attn, v_h,
                               preferred_element_type=jnp.float32)      # (n_heads, L, hd)
            ctx = jnp.transpose(ctx_h, (1, 0, 2)).reshape(L, H)
            attn_out = jnp.dot(ctx, wo_ref[l],
                               preferred_element_type=jnp.float32) + bo_ref[l]
            h = h + attn_out                                            # residual

            # ---- pre-norm position-wise feed-forward
            yn = _layer_norm(h, ln2g_ref[l], ln2b_ref[l])
            f = jnp.dot(yn, wf1_ref[l], preferred_element_type=jnp.float32) + bf1_ref[l]
            f = jax.nn.gelu(f, approximate=True)
            f = jnp.dot(f, wf2_ref[l], preferred_element_type=jnp.float32) + bf2_ref[l]
            h = h + f                                                   # residual

        prec_out_ref[...] = h

    return kernel


# -----------------------------------------------------------------------------
# LLMCL4rec.forward glue (single pallas_call, grid over the batch)
# -----------------------------------------------------------------------------
def llmcl4rec_forward(interaction_list, interaction_mask, neg_list, params, n_heads):
    B, L, Din = interaction_list.shape
    fc, enc = params["fc"], params["enc"]
    H = fc["w0"].shape[1]
    n_layers, _, Dff = enc["wf1"].shape

    mask = interaction_mask.astype(jnp.float32)                         # (B, L)

    def const_spec(shape):
        nd = len(shape)
        return pl.BlockSpec(shape, lambda b, _nd=nd: (0,) * _nd)        # resident across steps

    per_batch_3d = lambda d1, d2: pl.BlockSpec((None, d1, d2), lambda b: (b, 0, 0))

    embs, prec_vec, neg_embs = pl.pallas_call(
        make_fused_kernel(n_heads),
        out_shape=(jax.ShapeDtypeStruct((B, L, H), jnp.float32),
                   jax.ShapeDtypeStruct((B, L, H), jnp.float32),
                   jax.ShapeDtypeStruct((B, L, H), jnp.float32)),
        grid_spec=pltpu.PrefetchScalarGridSpec(
            num_scalar_prefetch=0,
            grid=(B,),
            in_specs=[
                per_batch_3d(L, Din),                     # interaction (this batch element)
                per_batch_3d(L, Din),                     # neg         (this batch element)
                const_spec((B, L)),                       # log_mask (row-indexed in kernel)
                const_spec((L, H)),                       # positional embedding
                const_spec((Din, H)), const_spec((1, H)),                 # fc W0, b0
                const_spec((H, H)), const_spec((1, H)),                   # fc W1, b1
                const_spec((n_layers, 1, H)), const_spec((n_layers, 1, H)),        # ln1 g, b
                const_spec((n_layers, H, 3 * H)), const_spec((n_layers, 1, 3 * H)),  # Wqkv, bqkv
                const_spec((n_layers, H, H)), const_spec((n_layers, 1, H)),         # Wo, bo
                const_spec((n_layers, 1, H)), const_spec((n_layers, 1, H)),         # ln2 g, b
                const_spec((n_layers, H, Dff)), const_spec((n_layers, 1, Dff)),     # W_ff1, b_ff1
                const_spec((n_layers, Dff, H)), const_spec((n_layers, 1, H)),       # W_ff2, b_ff2
            ],
            out_specs=[
                per_batch_3d(L, H),                       # input_embs_all
                per_batch_3d(L, H),                       # prec_vec
                per_batch_3d(L, H),                       # fc(neg_list)
            ],
        ),
        compiler_params=pltpu.CompilerParams(
            dimension_semantics=("parallel",),            # batch over TCs on v7x
            vmem_limit_bytes=32 * 1024 * 1024,
        ),
    )(interaction_list, neg_list, mask, enc["pos"],
      fc["w0"], fc["b0"], fc["w1"], fc["b1"],
      enc["ln1g"], enc["ln1b"], enc["wqkv"], enc["bqkv"], enc["wo"], enc["bo"],
      enc["ln2g"], enc["ln2b"], enc["wf1"], enc["bf1"], enc["wf2"], enc["bf2"])

    # cheap wrapper-side concat for return value #4 (no in-kernel lane concat)
    cat = jnp.concatenate([embs, prec_vec], axis=2)
    return (prec_vec[:, :-1, :],          # prec_vec[:, :-1]
            embs[:, 1:, :],               # target_pos_embs
            neg_embs[:, :-1, :],          # target_neg_embs
            cat)                          # concat(input_embs_all, prec_vec)


# -----------------------------------------------------------------------------
# deterministic parameter init (xavier_normal_-style scaled normals)
# -----------------------------------------------------------------------------
def init_params(key, llm_size, hidden, n_layers, d_ff, max_len):
    ks = iter(jax.random.split(key, 64))
    xav = lambda k, shape: (jax.random.normal(k, shape, jnp.float32)
                            * math.sqrt(2.0 / (shape[-2] + shape[-1])))
    fc = {
        "w0": xav(next(ks), (llm_size, hidden)),
        "b0": jnp.zeros((1, hidden), jnp.float32),
        "w1": xav(next(ks), (hidden, hidden)),
        "b1": jnp.zeros((1, hidden), jnp.float32),
    }
    wq = xav(next(ks), (n_layers, hidden, hidden))
    wk = xav(next(ks), (n_layers, hidden, hidden))
    wv = xav(next(ks), (n_layers, hidden, hidden))
    enc = {
        "pos": 0.02 * jax.random.normal(next(ks), (max_len, hidden), jnp.float32),
        "ln1g": jnp.ones((n_layers, 1, hidden), jnp.float32),
        "ln1b": jnp.zeros((n_layers, 1, hidden), jnp.float32),
        "ln2g": jnp.ones((n_layers, 1, hidden), jnp.float32),
        "ln2b": jnp.zeros((n_layers, 1, hidden), jnp.float32),
        "wqkv": jnp.concatenate([wq, wk, wv], axis=-1),          # fused (n_layers, H, 3H)
        "bqkv": jnp.zeros((n_layers, 1, 3 * hidden), jnp.float32),
        "wo": xav(next(ks), (n_layers, hidden, hidden)),
        "bo": jnp.zeros((n_layers, 1, hidden), jnp.float32),
        "wf1": xav(next(ks), (n_layers, hidden, d_ff)),
        "bf1": jnp.zeros((n_layers, 1, d_ff), jnp.float32),
        "wf2": xav(next(ks), (n_layers, d_ff, hidden)),
        "bf2": jnp.zeros((n_layers, 1, hidden), jnp.float32),
    }
    return {"fc": fc, "enc": enc}


if __name__ == "__main__":
    # config: maxlen=7 -> L=8, LLM_size=64, hidden_units=32, num_heads=2,
    # num_blocks=2, dnn_layer=1
    B, L, LLM_SIZE, HIDDEN = 2, 8, 64, 32
    N_HEADS, N_LAYERS, D_FF = 2, 2, 4 * 32

    key = jax.random.PRNGKey(0)
    k_par, k_x, k_neg = jax.random.split(key, 3)
    params = init_params(k_par, LLM_SIZE, HIDDEN, N_LAYERS, D_FF, L)

    interaction_list = jax.random.normal(k_x, (B, L, LLM_SIZE), jnp.float32)
    neg_list = jax.random.normal(k_neg, (B, L, LLM_SIZE), jnp.float32)
    # left-padded masks (first few positions empty)
    interaction_mask = jnp.array(
        [[0, 0, 0, 1, 1, 1, 1, 1],
         [0, 1, 1, 1, 1, 1, 1, 1]], dtype=jnp.float32)

    fwd = jax.jit(functools.partial(llmcl4rec_forward, n_heads=N_HEADS))
    out = fwd(interaction_list, interaction_mask, neg_list, params)
    out = jax.block_until_ready(out)

    assert out[0].shape == (B, L - 1, HIDDEN)
    assert out[1].shape == (B, L - 1, HIDDEN)
    assert out[2].shape == (B, L - 1, HIDDEN)
    assert out[3].shape == (B, L, 2 * HIDDEN)
    assert all(bool(jnp.all(jnp.isfinite(o))) for o in out)
    print("KERNEL_OK")
</pallas_src>

<mosaic_0001>
module attributes {stable_mosaic.version = 11 : i64} {
  func.func @kernel(%arg0: i32, %arg1: memref<1x8x64xf32, #tpu.memory_space<vmem>>, %arg2: memref<1x8x64xf32, #tpu.memory_space<vmem>>, %arg3: memref<2x8xf32, #tpu.memory_space<vmem>>, %arg4: memref<8x32xf32, #tpu.memory_space<vmem>>, %arg5: memref<64x32xf32, #tpu.memory_space<vmem>>, %arg6: memref<1x32xf32, #tpu.memory_space<vmem>>, %arg7: memref<32x32xf32, #tpu.memory_space<vmem>>, %arg8: memref<1x32xf32, #tpu.memory_space<vmem>>, %arg9: memref<2x1x32xf32, #tpu.memory_space<vmem>>, %arg10: memref<2x1x32xf32, #tpu.memory_space<vmem>>, %arg11: memref<2x32x96xf32, #tpu.memory_space<vmem>>, %arg12: memref<2x1x96xf32, #tpu.memory_space<vmem>>, %arg13: memref<2x32x32xf32, #tpu.memory_space<vmem>>, %arg14: memref<2x1x32xf32, #tpu.memory_space<vmem>>, %arg15: memref<2x1x32xf32, #tpu.memory_space<vmem>>, %arg16: memref<2x1x32xf32, #tpu.memory_space<vmem>>, %arg17: memref<2x32x128xf32, #tpu.memory_space<vmem>>, %arg18: memref<2x1x128xf32, #tpu.memory_space<vmem>>, %arg19: memref<2x128x32xf32, #tpu.memory_space<vmem>>, %arg20: memref<2x1x32xf32, #tpu.memory_space<vmem>>, %arg21: memref<1x8x32xf32, #tpu.memory_space<vmem>>, %arg22: memref<1x8x32xf32, #tpu.memory_space<vmem>>, %arg23: memref<1x8x32xf32, #tpu.memory_space<vmem>>) attributes {dimension_semantics = [#tpu.dimension_semantics<parallel>], iteration_bounds = array<i64: 2>, scalar_prefetch = 0 : i64, scratch_operands = 0 : i64, tpu.core_type = #tpu.core_type<tc>, window_params = [{transform_indices = @transform_0, window_bounds = array<i64: 1, 8, 64>}, {transform_indices = @transform_1, window_bounds = array<i64: 1, 8, 64>}, {pipeline_mode = #tpu.pipeline_mode<synchronous>, transform_indices = @transform_2, window_bounds = array<i64: 2, 8>}, {pipeline_mode = #tpu.pipeline_mode<synchronous>, transform_indices = @transform_3, window_bounds = array<i64: 8, 32>}, {pipeline_mode = #tpu.pipeline_mode<synchronous>, transform_indices = @transform_4, window_bounds = array<i64: 64, 32>}, {pipeline_mode = #tpu.pipeline_mode<synchronous>, transform_indices = @transform_5, window_bounds = array<i64: 1, 32>}, {pipeline_mode = #tpu.pipeline_mode<synchronous>, transform_indices = @transform_6, window_bounds = array<i64: 32, 32>}, {pipeline_mode = #tpu.pipeline_mode<synchronous>, transform_indices = @transform_7, window_bounds = array<i64: 1, 32>}, {pipeline_mode = #tpu.pipeline_mode<synchronous>, transform_indices = @transform_8, window_bounds = array<i64: 2, 1, 32>}, {pipeline_mode = #tpu.pipeline_mode<synchronous>, transform_indices = @transform_9, window_bounds = array<i64: 2, 1, 32>}, {pipeline_mode = #tpu.pipeline_mode<synchronous>, transform_indices = @transform_10, window_bounds = array<i64: 2, 32, 96>}, {pipeline_mode = #tpu.pipeline_mode<synchronous>, transform_indices = @transform_11, window_bounds = array<i64: 2, 1, 96>}, {pipeline_mode = #tpu.pipeline_mode<synchronous>, transform_indices = @transform_12, window_bounds = array<i64: 2, 32, 32>}, {pipeline_mode = #tpu.pipeline_mode<synchronous>, transform_indices = @transform_13, window_bounds = array<i64: 2, 1, 32>}, {pipeline_mode = #tpu.pipeline_mode<synchronous>, transform_indices = @transform_14, window_bounds = array<i64: 2, 1, 32>}, {pipeline_mode = #tpu.pipeline_mode<synchronous>, transform_indices = @transform_15, window_bounds = array<i64: 2, 1, 32>}, {pipeline_mode = #tpu.pipeline_mode<synchronous>, transform_indices = @transform_16, window_bounds = array<i64: 2, 32, 128>}, {pipeline_mode = #tpu.pipeline_mode<synchronous>, transform_indices = @transform_17, window_bounds = array<i64: 2, 1, 128>}, {pipeline_mode = #tpu.pipeline_mode<synchronous>, transform_indices = @transform_18, window_bounds = array<i64: 2, 128, 32>}, {pipeline_mode = #tpu.pipeline_mode<synchronous>, transform_indices = @transform_19, window_bounds = array<i64: 2, 1, 32>}, {transform_indices = @transform_20, window_bounds = array<i64: 1, 8, 32>}, {transform_indices = @transform_21, window_bounds = array<i64: 1, 8, 32>}, {transform_indices = @transform_22, window_bounds = array<i64: 1, 8, 32>}]} {
    %c0 = arith.constant 0 : index
    %c0_0 = arith.constant 0 : index
    %c0_1 = arith.constant 0 : index
    %0 = vector.load %arg1[%c0, %c0_0, %c0_1] : memref<1x8x64xf32, #tpu.memory_space<vmem>>, vector<1x8x64xf32>
    %1 = vector.shape_cast %0 : vector<1x8x64xf32> to vector<8x64xf32>
    %c0_2 = arith.constant 0 : index
    %c0_3 = arith.constant 0 : index
    %c0_4 = arith.constant 0 : index
    %2 = vector.load %arg2[%c0_2, %c0_3, %c0_4] : memref<1x8x64xf32, #tpu.memory_space<vmem>>, vector<1x8x64xf32>
    %3 = vector.shape_cast %2 : vector<1x8x64xf32> to vector<8x64xf32>
    %4 = tpu.concatenate %1, %3 in 0 : vector<8x64xf32>, vector<8x64xf32> -> vector<16x64xf32>
    %c0_5 = arith.constant 0 : index
    %c0_6 = arith.constant 0 : index
    %5 = vector.load %arg5[%c0_5, %c0_6] : memref<64x32xf32, #tpu.memory_space<vmem>>, vector<64x32xf32>
    %cst = arith.constant dense<0.000000e+00> : vector<16x32xf32>
    %6 = tpu.matmul %4, %5, %cst {dimension_numbers = #tpu.dot_dimension_numbers<[1], [0], [0], [1], [0, 0, 1, 1], [], []>} : vector<16x64xf32>, vector<64x32xf32>, vector<16x32xf32> -> vector<16x32xf32>
    %c0_7 = arith.constant 0 : index
    %c0_8 = arith.constant 0 : index
    %7 = vector.load %arg6[%c0_7, %c0_8] : memref<1x32xf32, #tpu.memory_space<vmem>>, vector<1x32xf32>
    %8 = vector.broadcast %7 : vector<1x32xf32> to vector<16x32xf32>
    %9 = arith.addf %6, %8 : vector<16x32xf32>
    %c0_9 = arith.constant 0 : index
    %c0_10 = arith.constant 0 : index
    %10 = vector.load %arg7[%c0_9, %c0_10] : memref<32x32xf32, #tpu.memory_space<vmem>>, vector<32x32xf32>
    %cst_11 = arith.constant dense<0.000000e+00> : vector<16x32xf32>
    %11 = tpu.matmul %9, %10, %cst_11 {dimension_numbers = #tpu.dot_dimension_numbers<[1], [0], [0], [1], [0, 0, 1, 1], [], []>} : vector<16x32xf32>, vector<32x32xf32>, vector<16x32xf32> -> vector<16x32xf32>
    %c0_12 = arith.constant 0 : index
    %c0_13 = arith.constant 0 : index
    %12 = vector.load %arg8[%c0_12, %c0_13] : memref<1x32xf32, #tpu.memory_space<vmem>>, vector<1x32xf32>
    %13 = vector.broadcast %12 : vector<1x32xf32> to vector<16x32xf32>
    %14 = arith.addf %11, %13 : vector<16x32xf32>
    %15 = arith.mulf %14, %14 : vector<16x32xf32>
    %16 = arith.mulf %14, %15 : vector<16x32xf32>
    %cst_14 = arith.constant 4.471500e-02 : f32
    %17 = vector.broadcast %cst_14 : f32 to vector<16x32xf32>
    %18 = arith.mulf %17, %16 : vector<16x32xf32>
    %19 = arith.addf %14, %18 : vector<16x32xf32>
    %cst_15 = arith.constant 0.797884583 : f32
    %20 = vector.broadcast %cst_15 : f32 to vector<16x32xf32>
    %21 = arith.mulf %20, %19 : vector<16x32xf32>
    %22 = math.tanh %21 : vector<16x32xf32>
    %cst_16 = arith.constant 1.000000e+00 : f32
    %23 = vector.broadcast %cst_16 : f32 to vector<16x32xf32>
    %24 = arith.addf %23, %22 : vector<16x32xf32>
    %cst_17 = arith.constant 5.000000e-01 : f32
    %25 = vector.broadcast %cst_17 : f32 to vector<16x32xf32>
    %26 = arith.mulf %25, %24 : vector<16x32xf32>
    %27 = arith.mulf %14, %26 : vector<16x32xf32>
    %28 = vector.extract_strided_slice %27 {offsets = [0, 0], sizes = [8, 32], strides = [1, 1]} : vector<16x32xf32> to vector<8x32xf32>
    %c0_18 = arith.constant 0 : index
    %c0_19 = arith.constant 0 : index
    %c0_20 = arith.constant 0 : index
    %29 = vector.load %arg21[%c0_18, %c0_19, %c0_20] : memref<1x8x32xf32, #tpu.memory_space<vmem>>, vector<1x8x32xf32>
    %30 = vector.shape_cast %29 : vector<1x8x32xf32> to vector<8x32xf32>
    %31 = vector.shape_cast %28 : vector<8x32xf32> to vector<1x8x32xf32>
    tpu.vector_store %arg21[%c0_18, %c0_19, %c0_20], %31 {strides = array<i32>} : memref<1x8x32xf32, #tpu.memory_space<vmem>>, vector<1x8x32xf32>,
    %32 = vector.extract_strided_slice %27 {offsets = [8, 0], sizes = [8, 32], strides = [1, 1]} : vector<16x32xf32> to vector<8x32xf32>
    %c0_21 = arith.constant 0 : index
    %c0_22 = arith.constant 0 : index
    %c0_23 = arith.constant 0 : index
    %33 = vector.load %arg23[%c0_21, %c0_22, %c0_23] : memref<1x8x32xf32, #tpu.memory_space<vmem>>, vector<1x8x32xf32>
    %34 = vector.shape_cast %33 : vector<1x8x32xf32> to vector<8x32xf32>
    %35 = vector.shape_cast %32 : vector<8x32xf32> to vector<1x8x32xf32>
    tpu.vector_store %arg23[%c0_21, %c0_22, %c0_23], %35 {strides = array<i32>} : memref<1x8x32xf32, #tpu.memory_space<vmem>>, vector<1x8x32xf32>,
    %36 = arith.index_cast %arg0 : i32 to index
    %c0_24 = arith.constant 0 : index
    %37 = vector.load %arg3[%36, %c0_24] : memref<2x8xf32, #tpu.memory_space<vmem>>, vector<1x8xf32>
    %38 = tpu.iota {dimensions = array<i32: 0>} : vector<8x8xi32>
    %39 = tpu.iota {dimensions = array<i32: 1>} : vector<8x8xi32>
    %cst_25 = arith.constant 0.000000e+00 : f32
    %40 = vector.broadcast %cst_25 : f32 to vector<1x8xf32>
    %41 = arith.cmpf one, %37, %40 : vector<1x8xf32>
    %42 = vector.shape_cast %41 : vector<1x8xi1> to vector<1x8xi1>
    %43 = vector.broadcast %42 : vector<1x8xi1> to vector<8x8xi1>
    %44 = arith.cmpi sle, %39, %38 : vector<8x8xi32>
    %45 = arith.andi %44, %43 : vector<8x8xi1>
    %cst_26 = arith.constant 0.000000e+00 : f32
    %cst_27 = arith.constant -1.000000e+09 : f32
    %46 = vector.broadcast %cst_26 : f32 to vector<8x8xf32>
    %47 = vector.broadcast %cst_27 : f32 to vector<8x8xf32>
    %48 = arith.select %45, %46, %47 : vector<8x8xi1>, vector<8x8xf32>
    %c0_28 = arith.constant 0 : index
    %c0_29 = arith.constant 0 : index
    %49 = vector.load %arg4[%c0_28, %c0_29] : memref<8x32xf32, #tpu.memory_space<vmem>>, vector<8x32xf32>
    %50 = arith.addf %28, %49 : vector<8x32xf32>
    %c0_30 = arith.constant 0 : index
    %c0_31 = arith.constant 0 : index
    %c0_32 = arith.constant 0 : index
    %51 = vector.load %arg9[%c0_30, %c0_31, %c0_32] : memref<2x1x32xf32, #tpu.memory_space<vmem>>, vector<1x1x32xf32>
    %52 = vector.shape_cast %51 : vector<1x1x32xf32> to vector<1x32xf32>
    %c0_33 = arith.constant 0 : index
    %c0_34 = arith.constant 0 : index
    %c0_35 = arith.constant 0 : index
    %53 = vector.load %arg10[%c0_33, %c0_34, %c0_35] : memref<2x1x32xf32, #tpu.memory_space<vmem>>, vector<1x1x32xf32>
    %54 = vector.shape_cast %53 : vector<1x1x32xf32> to vector<1x32xf32>
    %cst_36 = arith.constant dense<0.000000e+00> : vector<8xf32>
    %55 = vector.multi_reduction <add>, %50, %cst_36 [1] : vector<8x32xf32> to vector<8xf32>
    %56 = vector.shape_cast %55 : vector<8xf32> to vector<8x1xf32>
    %cst_37 = arith.constant 3.200000e+01 : f32
    %57 = vector.broadcast %cst_37 : f32 to vector<8x1xf32>
    %58 = arith.divf %56, %57 : vector<8x1xf32>
    %59 = vector.broadcast %58 : vector<8x1xf32> to vector<8x32xf32>
    %60 = arith.subf %50, %59 : vector<8x32xf32>
    %61 = arith.mulf %60, %60 : vector<8x32xf32>
    %cst_38 = arith.constant dense<0.000000e+00> : vector<8xf32>
    %62 = vector.multi_reduction <add>, %61, %cst_38 [1] : vector<8x32xf32> to vector<8xf32>
    %63 = vector.shape_cast %62 : vector<8xf32> to vector<8x1xf32>
    %cst_39 = arith.constant 3.200000e+01 : f32
    %64 = vector.broadcast %cst_39 : f32 to vector<8x1xf32>
    %65 = arith.divf %63, %64 : vector<8x1xf32>
    %66 = vector.broadcast %58 : vector<8x1xf32> to vector<8x32xf32>
    %67 = arith.subf %50, %66 : vector<8x32xf32>
    %cst_40 = arith.constant 9.99999974E-6 : f32
    %68 = vector.broadcast %cst_40 : f32 to vector<8x1xf32>
    %69 = arith.addf %65, %68 : vector<8x1xf32>
    %70 = math.rsqrt %69 : vector<8x1xf32>
    %71 = vector.broadcast %70 : vector<8x1xf32> to vector<8x32xf32>
    %72 = arith.mulf %67, %71 : vector<8x32xf32>
    %73 = vector.broadcast %52 : vector<1x32xf32> to vector<8x32xf32>
    %74 = arith.mulf %72, %73 : vector<8x32xf32>
    %75 = vector.broadcast %54 : vector<1x32xf32> to vector<8x32xf32>
    %76 = arith.addf %74, %75 : vector<8x32xf32>
    %c0_41 = arith.constant 0 : index
    %c0_42 = arith.constant 0 : index
    %c0_43 = arith.constant 0 : index
    %77 = vector.load %arg11[%c0_41, %c0_42, %c0_43] : memref<2x32x96xf32, #tpu.memory_space<vmem>>, vector<1x32x96xf32>
    %78 = vector.shape_cast %77 : vector<1x32x96xf32> to vector<32x96xf32>
    %cst_44 = arith.constant dense<0.000000e+00> : vector<8x96xf32>
    %79 = tpu.matmul %76, %78, %cst_44 {dimension_numbers = #tpu.dot_dimension_numbers<[1], [0], [0], [1], [0, 0, 1, 1], [], []>} : vector<8x32xf32>, vector<32x96xf32>, vector<8x96xf32> -> vector<8x96xf32>
    %c0_45 = arith.constant 0 : index
    %c0_46 = arith.constant 0 : index
    %c0_47 = arith.constant 0 : index
    %80 = vector.load %arg12[%c0_45, %c0_46, %c0_47] : memref<2x1x96xf32, #tpu.memory_space<vmem>>, vector<1x1x96xf32>
    %81 = vector.shape_cast %80 : vector<1x1x96xf32> to vector<1x96xf32>
    %82 = vector.broadcast %81 : vector<1x96xf32> to vector<8x96xf32>
    %83 = arith.addf %79, %82 : vector<8x96xf32>
    %84 = vector.extract_strided_slice %83 {offsets = [0, 0], sizes = [8, 32], strides = [1, 1]} : vector<8x96xf32> to vector<8x32xf32>
    %85 = vector.shape_cast %84 : vector<8x32xf32> to vector<8x2x16xf32>
    %86 = vector.extract_strided_slice %83 {offsets = [0, 32], sizes = [8, 32], strides = [1, 1]} : vector<8x96xf32> to vector<8x32xf32>
    %87 = vector.shape_cast %86 : vector<8x32xf32> to vector<8x2x16xf32>
    %88 = vector.extract_strided_slice %83 {offsets = [0, 64], sizes = [8, 32], strides = [1, 1]} : vector<8x96xf32> to vector<8x32xf32>
    %89 = vector.shape_cast %88 : vector<8x32xf32> to vector<8x2x16xf32>
    %90 = tpu.transpose %85, [1, 0, 2] : vector<8x2x16xf32> -> vector<2x8x16xf32>
    %91 = tpu.transpose %87, [1, 0, 2] : vector<8x2x16xf32> -> vector<2x8x16xf32>
    %92 = tpu.transpose %89, [1, 0, 2] : vector<8x2x16xf32> -> vector<2x8x16xf32>
    "tpu.trace_start"() <{level = 10 : i32, message = "hld,hmd->hlm"}> : () -> ()
    %cst_48 = arith.constant dense<0.000000e+00> : vector<2x8x8xf32>
    %93 = tpu.matmul %90, %91, %cst_48 {dimension_numbers = #tpu.dot_dimension_numbers<[2], [2], [1], [1], [0, 0, 0, 1, 1, 1], [0], [0]>} : vector<2x8x16xf32>, vector<2x8x16xf32>, vector<2x8x8xf32> -> vector<2x8x8xf32>
    "tpu.trace_stop"() : () -> ()
    %cst_49 = arith.constant 2.500000e-01 : f32
    %94 = vector.broadcast %cst_49 : f32 to vector<2x8x8xf32>
    %95 = arith.mulf %93, %94 : vector<2x8x8xf32>
    %96 = vector.shape_cast %48 : vector<8x8xf32> to vector<1x8x8xf32>
    %97 = vector.broadcast %96 : vector<1x8x8xf32> to vector<2x8x8xf32>
    %98 = arith.addf %95, %97 : vector<2x8x8xf32>
    %cst_50 = arith.constant dense<0xFF800000> : vector<2x8xf32>
    %99 = vector.multi_reduction <maximumf>, %98, %cst_50 [2] : vector<2x8x8xf32> to vector<2x8xf32>
    %100 = vector.shape_cast %99 : vector<2x8xf32> to vector<2x8x1xf32>
    %101 = vector.broadcast %100 : vector<2x8x1xf32> to vector<2x8x8xf32>
    %102 = arith.subf %98, %101 : vector<2x8x8xf32>
    %103 = math.exp %102 : vector<2x8x8xf32>
    %cst_51 = arith.constant dense<0.000000e+00> : vector<2x8xf32>
    %104 = vector.multi_reduction <add>, %103, %cst_51 [2] : vector<2x8x8xf32> to vector<2x8xf32>
    %105 = vector.shape_cast %104 : vector<2x8xf32> to vector<2x8x1xf32>
    %106 = tpu.reciprocal %105 {approx = true} : vector<2x8x1xf32> -> vector<2x8x1xf32>
    %107 = vector.broadcast %106 : vector<2x8x1xf32> to vector<2x8x8xf32>
    %108 = arith.mulf %103, %107 : vector<2x8x8xf32>
    "tpu.trace_start"() <{level = 10 : i32, message = "hlm,hmd->hld"}> : () -> ()
    %cst_52 = arith.constant dense<0.000000e+00> : vector<2x8x16xf32>
    %109 = tpu.matmul %108, %92, %cst_52 {dimension_numbers = #tpu.dot_dimension_numbers<[2], [1], [1], [2], [0, 0, 0, 1, 1, 2], [0], [0]>} : vector<2x8x8xf32>, vector<2x8x16xf32>, vector<2x8x16xf32> -> vector<2x8x16xf32>
    "tpu.trace_stop"() : () -> ()
    %110 = tpu.transpose %109, [1, 0, 2] : vector<2x8x16xf32> -> vector<8x2x16xf32>
    %111 = vector.shape_cast %110 : vector<8x2x16xf32> to vector<8x32xf32>
    %c0_53 = arith.constant 0 : index
    %c0_54 = arith.constant 0 : index
    %c0_55 = arith.constant 0 : index
    %112 = vector.load %arg13[%c0_53, %c0_54, %c0_55] : memref<2x32x32xf32, #tpu.memory_space<vmem>>, vector<1x32x32xf32>
    %113 = vector.shape_cast %112 : vector<1x32x32xf32> to vector<32x32xf32>
    %cst_56 = arith.constant dense<0.000000e+00> : vector<8x32xf32>
    %114 = tpu.matmul %111, %113, %cst_56 {dimension_numbers = #tpu.dot_dimension_numbers<[1], [0], [0], [1], [0, 0, 1, 1], [], []>} : vector<8x32xf32>, vector<32x32xf32>, vector<8x32xf32> -> vector<8x32xf32>
    %c0_57 = arith.constant 0 : index
    %c0_58 = arith.constant 0 : index
    %c0_59 = arith.constant 0 : index
    %115 = vector.load %arg14[%c0_57, %c0_58, %c0_59] : memref<2x1x32xf32, #tpu.memory_space<vmem>>, vector<1x1x32xf32>
    %116 = vector.shape_cast %115 : vector<1x1x32xf32> to vector<1x32xf32>
    %117 = vector.broadcast %116 : vector<1x32xf32> to vector<8x32xf32>
    %118 = arith.addf %114, %117 : vector<8x32xf32>
    %119 = arith.addf %50, %118 : vector<8x32xf32>
    %c0_60 = arith.constant 0 : index
    %c0_61 = arith.constant 0 : index
    %c0_62 = arith.constant 0 : index
    %120 = vector.load %arg15[%c0_60, %c0_61, %c0_62] : memref<2x1x32xf32, #tpu.memory_space<vmem>>, vector<1x1x32xf32>
    %121 = vector.shape_cast %120 : vector<1x1x32xf32> to vector<1x32xf32>
    %c0_63 = arith.constant 0 : index
    %c0_64 = arith.constant 0 : index
    %c0_65 = arith.constant 0 : index
    %122 = vector.load %arg16[%c0_63, %c0_64, %c0_65] : memref<2x1x32xf32, #tpu.memory_space<vmem>>, vector<1x1x32xf32>
    %123 = vector.shape_cast %122 : vector<1x1x32xf32> to vector<1x32xf32>
    %cst_66 = arith.constant dense<0.000000e+00> : vector<8xf32>
    %124 = vector.multi_reduction <add>, %119, %cst_66 [1] : vector<8x32xf32> to vector<8xf32>
    %125 = vector.shape_cast %124 : vector<8xf32> to vector<8x1xf32>
    %cst_67 = arith.constant 3.200000e+01 : f32
    %126 = vector.broadcast %cst_67 : f32 to vector<8x1xf32>
    %127 = arith.divf %125, %126 : vector<8x1xf32>
    %128 = vector.broadcast %127 : vector<8x1xf32> to vector<8x32xf32>
    %129 = arith.subf %119, %128 : vector<8x32xf32>
    %130 = arith.mulf %129, %129 : vector<8x32xf32>
    %cst_68 = arith.constant dense<0.000000e+00> : vector<8xf32>
    %131 = vector.multi_reduction <add>, %130, %cst_68 [1] : vector<8x32xf32> to vector<8xf32>
    %132 = vector.shape_cast %131 : vector<8xf32> to vector<8x1xf32>
    %cst_69 = arith.constant 3.200000e+01 : f32
    %133 = vector.broadcast %cst_69 : f32 to vector<8x1xf32>
    %134 = arith.divf %132, %133 : vector<8x1xf32>
    %135 = vector.broadcast %127 : vector<8x1xf32> to vector<8x32xf32>
    %136 = arith.subf %119, %135 : vector<8x32xf32>
    %cst_70 = arith.constant 9.99999974E-6 : f32
    %137 = vector.broadcast %cst_70 : f32 to vector<8x1xf32>
    %138 = arith.addf %134, %137 : vector<8x1xf32>
    %139 = math.rsqrt %138 : vector<8x1xf32>
    %140 = vector.broadcast %139 : vector<8x1xf32> to vector<8x32xf32>
    %141 = arith.mulf %136, %140 : vector<8x32xf32>
    %142 = vector.broadcast %121 : vector<1x32xf32> to vector<8x32xf32>
    %143 = arith.mulf %141, %142 : vector<8x32xf32>
    %144 = vector.broadcast %123 : vector<1x32xf32> to vector<8x32xf32>
    %145 = arith.addf %143, %144 : vector<8x32xf32>
    %c0_71 = arith.constant 0 : index
    %c0_72 = arith.constant 0 : index
    %c0_73 = arith.constant 0 : index
    %146 = vector.load %arg17[%c0_71, %c0_72, %c0_73] : memref<2x32x128xf32, #tpu.memory_space<vmem>>, vector<1x32x128xf32>
    %147 = vector.shape_cast %146 : vector<1x32x128xf32> to vector<32x128xf32>
    %cst_74 = arith.constant dense<0.000000e+00> : vector<8x128xf32>
    %148 = tpu.matmul %145, %147, %cst_74 {dimension_numbers = #tpu.dot_dimension_numbers<[1], [0], [0], [1], [0, 0, 1, 1], [], []>} : vector<8x32xf32>, vector<32x128xf32>, vector<8x128xf32> -> vector<8x128xf32>
    %c0_75 = arith.constant 0 : index
    %c0_76 = arith.constant 0 : index
    %c0_77 = arith.constant 0 : index
    %149 = vector.load %arg18[%c0_75, %c0_76, %c0_77] : memref<2x1x128xf32, #tpu.memory_space<vmem>>, vector<1x1x128xf32>
    %150 = vector.shape_cast %149 : vector<1x1x128xf32> to vector<1x128xf32>
    %151 = vector.broadcast %150 : vector<1x128xf32> to vector<8x128xf32>
    %152 = arith.addf %148, %151 : vector<8x128xf32>
    %153 = arith.mulf %152, %152 : vector<8x128xf32>
    %154 = arith.mulf %152, %153 : vector<8x128xf32>
    %cst_78 = arith.constant 4.471500e-02 : f32
    %155 = vector.broadcast %cst_78 : f32 to vector<8x128xf32>
    %156 = arith.mulf %155, %154 : vector<8x128xf32>
    %157 = arith.addf %152, %156 : vector<8x128xf32>
    %cst_79 = arith.constant 0.797884583 : f32
    %158 = vector.broadcast %cst_79 : f32 to vector<8x128xf32>
    %159 = arith.mulf %158, %157 : vector<8x128xf32>
    %160 = math.tanh %159 : vector<8x128xf32>
    %cst_80 = arith.constant 1.000000e+00 : f32
    %161 = vector.broadcast %cst_80 : f32 to vector<8x128xf32>
    %162 = arith.addf %161, %160 : vector<8x128xf32>
    %cst_81 = arith.constant 5.000000e-01 : f32
    %163 = vector.broadcast %cst_81 : f32 to vector<8x128xf32>
    %164 = arith.mulf %163, %162 : vector<8x128xf32>
    %165 = arith.mulf %152, %164 : vector<8x128xf32>
    %c0_82 = arith.constant 0 : index
    %c0_83 = arith.constant 0 : index
    %c0_84 = arith.constant 0 : index
    %166 = vector.load %arg19[%c0_82, %c0_83, %c0_84] : memref<2x128x32xf32, #tpu.memory_space<vmem>>, vector<1x128x32xf32>
    %167 = vector.shape_cast %166 : vector<1x128x32xf32> to vector<128x32xf32>
    %cst_85 = arith.constant dense<0.000000e+00> : vector<8x32xf32>
    %168 = tpu.matmul %165, %167, %cst_85 {dimension_numbers = #tpu.dot_dimension_numbers<[1], [0], [0], [1], [0, 0, 1, 1], [], []>} : vector<8x128xf32>, vector<128x32xf32>, vector<8x32xf32> -> vector<8x32xf32>
    %c0_86 = arith.constant 0 : index
    %c0_87 = arith.constant 0 : index
    %c0_88 = arith.constant 0 : index
    %169 = vector.load %arg20[%c0_86, %c0_87, %c0_88] : memref<2x1x32xf32, #tpu.memory_space<vmem>>, vector<1x1x32xf32>
    %170 = vector.shape_cast %169 : vector<1x1x32xf32> to vector<1x32xf32>
    %171 = vector.broadcast %170 : vector<1x32xf32> to vector<8x32xf32>
    %172 = arith.addf %168, %171 : vector<8x32xf32>
    %173 = arith.addf %119, %172 : vector<8x32xf32>
    %c1 = arith.constant 1 : index
    %c0_89 = arith.constant 0 : index
    %c0_90 = arith.constant 0 : index
    %174 = vector.load %arg9[%c1, %c0_89, %c0_90] : memref<2x1x32xf32, #tpu.memory_space<vmem>>, vector<1x1x32xf32>
    %175 = vector.shape_cast %174 : vector<1x1x32xf32> to vector<1x32xf32>
    %c1_91 = arith.constant 1 : index
    %c0_92 = arith.constant 0 : index
    %c0_93 = arith.constant 0 : index
    %176 = vector.load %arg10[%c1_91, %c0_92, %c0_93] : memref<2x1x32xf32, #tpu.memory_space<vmem>>, vector<1x1x32xf32>
    %177 = vector.shape_cast %176 : vector<1x1x32xf32> to vector<1x32xf32>
    %cst_94 = arith.constant dense<0.000000e+00> : vector<8xf32>
    %178 = vector.multi_reduction <add>, %173, %cst_94 [1] : vector<8x32xf32> to vector<8xf32>
    %179 = vector.shape_cast %178 : vector<8xf32> to vector<8x1xf32>
    %cst_95 = arith.constant 3.200000e+01 : f32
    %180 = vector.broadcast %cst_95 : f32 to vector<8x1xf32>
    %181 = arith.divf %179, %180 : vector<8x1xf32>
    %182 = vector.broadcast %181 : vector<8x1xf32> to vector<8x32xf32>
    %183 = arith.subf %173, %182 : vector<8x32xf32>
    %184 = arith.mulf %183, %183 : vector<8x32xf32>
    %cst_96 = arith.constant dense<0.000000e+00> : vector<8xf32>
    %185 = vector.multi_reduction <add>, %184, %cst_96 [1] : vector<8x32xf32> to vector<8xf32>
    %186 = vector.shape_cast %185 : vector<8xf32> to vector<8x1xf32>
    %cst_97 = arith.constant 3.200000e+01 : f32
    %187 = vector.broadcast %cst_97 : f32 to vector<8x1xf32>
    %188 = arith.divf %186, %187 : vector<8x1xf32>
    %189 = vector.broadcast %181 : vector<8x1xf32> to vector<8x32xf32>
    %190 = arith.subf %173, %189 : vector<8x32xf32>
    %cst_98 = arith.constant 9.99999974E-6 : f32
    %191 = vector.broadcast %cst_98 : f32 to vector<8x1xf32>
    %192 = arith.addf %188, %191 : vector<8x1xf32>
    %193 = math.rsqrt %192 : vector<8x1xf32>
    %194 = vector.broadcast %193 : vector<8x1xf32> to vector<8x32xf32>
    %195 = arith.mulf %190, %194 : vector<8x32xf32>
    %196 = vector.broadcast %175 : vector<1x32xf32> to vector<8x32xf32>
    %197 = arith.mulf %195, %196 : vector<8x32xf32>
    %198 = vector.broadcast %177 : vector<1x32xf32> to vector<8x32xf32>
    %199 = arith.addf %197, %198 : vector<8x32xf32>
    %c1_99 = arith.constant 1 : index
    %c0_100 = arith.constant 0 : index
    %c0_101 = arith.constant 0 : index
    %200 = vector.load %arg11[%c1_99, %c0_100, %c0_101] : memref<2x32x96xf32, #tpu.memory_space<vmem>>, vector<1x32x96xf32>
    %201 = vector.shape_cast %200 : vector<1x32x96xf32> to vector<32x96xf32>
    %cst_102 = arith.constant dense<0.000000e+00> : vector<8x96xf32>
    %202 = tpu.matmul %199, %201, %cst_102 {dimension_numbers = #tpu.dot_dimension_numbers<[1], [0], [0], [1], [0, 0, 1, 1], [], []>} : vector<8x32xf32>, vector<32x96xf32>, vector<8x96xf32> -> vector<8x96xf32>
    %c1_103 = arith.constant 1 : index
    %c0_104 = arith.constant 0 : index
    %c0_105 = arith.constant 0 : index
    %203 = vector.load %arg12[%c1_103, %c0_104, %c0_105] : memref<2x1x96xf32, #tpu.memory_space<vmem>>, vector<1x1x96xf32>
    %204 = vector.shape_cast %203 : vector<1x1x96xf32> to vector<1x96xf32>
    %205 = vector.broadcast %204 : vector<1x96xf32> to vector<8x96xf32>
    %206 = arith.addf %202, %205 : vector<8x96xf32>
    %207 = vector.extract_strided_slice %206 {offsets = [0, 0], sizes = [8, 32], strides = [1, 1]} : vector<8x96xf32> to vector<8x32xf32>
    %208 = vector.shape_cast %207 : vector<8x32xf32> to vector<8x2x16xf32>
    %209 = vector.extract_strided_slice %206 {offsets = [0, 32], sizes = [8, 32], strides = [1, 1]} : vector<8x96xf32> to vector<8x32xf32>
    %210 = vector.shape_cast %209 : vector<8x32xf32> to vector<8x2x16xf32>
    %211 = vector.extract_strided_slice %206 {offsets = [0, 64], sizes = [8, 32], strides = [1, 1]} : vector<8x96xf32> to vector<8x32xf32>
    %212 = vector.shape_cast %211 : vector<8x32xf32> to vector<8x2x16xf32>
    %213 = tpu.transpose %208, [1, 0, 2] : vector<8x2x16xf32> -> vector<2x8x16xf32>
    %214 = tpu.transpose %210, [1, 0, 2] : vector<8x2x16xf32> -> vector<2x8x16xf32>
    %215 = tpu.transpose %212, [1, 0, 2] : vector<8x2x16xf32> -> vector<2x8x16xf32>
    "tpu.trace_start"() <{level = 10 : i32, message = "hld,hmd->hlm"}> : () -> ()
    %cst_106 = arith.constant dense<0.000000e+00> : vector<2x8x8xf32>
    %216 = tpu.matmul %213, %214, %cst_106 {dimension_numbers = #tpu.dot_dimension_numbers<[2], [2], [1], [1], [0, 0, 0, 1, 1, 1], [0], [0]>} : vector<2x8x16xf32>, vector<2x8x16xf32>, vector<2x8x8xf32> -> vector<2x8x8xf32>
    "tpu.trace_stop"() : () -> ()
    %cst_107 = arith.constant 2.500000e-01 : f32
    %217 = vector.broadcast %cst_107 : f32 to vector<2x8x8xf32>
    %218 = arith.mulf %216, %217 : vector<2x8x8xf32>
    %219 = vector.shape_cast %48 : vector<8x8xf32> to vector<1x8x8xf32>
    %220 = vector.broadcast %219 : vector<1x8x8xf32> to vector<2x8x8xf32>
    %221 = arith.addf %218, %220 : vector<2x8x8xf32>
    %cst_108 = arith.constant dense<0xFF800000> : vector<2x8xf32>
    %222 = vector.multi_reduction <maximumf>, %221, %cst_108 [2] : vector<2x8x8xf32> to vector<2x8xf32>
    %223 = vector.shape_cast %222 : vector<2x8xf32> to vector<2x8x1xf32>
    %224 = vector.broadcast %223 : vector<2x8x1xf32> to vector<2x8x8xf32>
    %225 = arith.subf %221, %224 : vector<2x8x8xf32>
    %226 = math.exp %225 : vector<2x8x8xf32>
    %cst_109 = arith.constant dense<0.000000e+00> : vector<2x8xf32>
    %227 = vector.multi_reduction <add>, %226, %cst_109 [2] : vector<2x8x8xf32> to vector<2x8xf32>
    %228 = vector.shape_cast %227 : vector<2x8xf32> to vector<2x8x1xf32>
    %229 = tpu.reciprocal %228 {approx = true} : vector<2x8x1xf32> -> vector<2x8x1xf32>
    %230 = vector.broadcast %229 : vector<2x8x1xf32> to vector<2x8x8xf32>
    %231 = arith.mulf %226, %230 : vector<2x8x8xf32>
    "tpu.trace_start"() <{level = 10 : i32, message = "hlm,hmd->hld"}> : () -> ()
    %cst_110 = arith.constant dense<0.000000e+00> : vector<2x8x16xf32>
    %232 = tpu.matmul %231, %215, %cst_110 {dimension_numbers = #tpu.dot_dimension_numbers<[2], [1], [1], [2], [0, 0, 0, 1, 1, 2], [0], [0]>} : vector<2x8x8xf32>, vector<2x8x16xf32>, vector<2x8x16xf32> -> vector<2x8x16xf32>
    "tpu.trace_stop"() : () -> ()
    %233 = tpu.transpose %232, [1, 0, 2] : vector<2x8x16xf32> -> vector<8x2x16xf32>
    %234 = vector.shape_cast %233 : vector<8x2x16xf32> to vector<8x32xf32>
    %c1_111 = arith.constant 1 : index
    %c0_112 = arith.constant 0 : index
    %c0_113 = arith.constant 0 : index
    %235 = vector.load %arg13[%c1_111, %c0_112, %c0_113] : memref<2x32x32xf32, #tpu.memory_space<vmem>>, vector<1x32x32xf32>
    %236 = vector.shape_cast %235 : vector<1x32x32xf32> to vector<32x32xf32>
    %cst_114 = arith.constant dense<0.000000e+00> : vector<8x32xf32>
    %237 = tpu.matmul %234, %236, %cst_114 {dimension_numbers = #tpu.dot_dimension_numbers<[1], [0], [0], [1], [0, 0, 1, 1], [], []>} : vector<8x32xf32>, vector<32x32xf32>, vector<8x32xf32> -> vector<8x32xf32>
    %c1_115 = arith.constant 1 : index
    %c0_116 = arith.constant 0 : index
    %c0_117 = arith.constant 0 : index
    %238 = vector.load %arg14[%c1_115, %c0_116, %c0_117] : memref<2x1x32xf32, #tpu.memory_space<vmem>>, vector<1x1x32xf32>
    %239 = vector.shape_cast %238 : vector<1x1x32xf32> to vector<1x32xf32>
    %240 = vector.broadcast %239 : vector<1x32xf32> to vector<8x32xf32>
    %241 = arith.addf %237, %240 : vector<8x32xf32>
    %242 = arith.addf %173, %241 : vector<8x32xf32>
    %c1_118 = arith.constant 1 : index
    %c0_119 = arith.constant 0 : index
    %c0_120 = arith.constant 0 : index
    %243 = vector.load %arg15[%c1_118, %c0_119, %c0_120] : memref<2x1x32xf32, #tpu.memory_space<vmem>>, vector<1x1x32xf32>
    %244 = vector.shape_cast %243 : vector<1x1x32xf32> to vector<1x32xf32>
    %c1_121 = arith.constant 1 : index
    %c0_122 = arith.constant 0 : index
    %c0_123 = arith.constant 0 : index
    %245 = vector.load %arg16[%c1_121, %c0_122, %c0_123] : memref<2x1x32xf32, #tpu.memory_space<vmem>>, vector<1x1x32xf32>
    %246 = vector.shape_cast %245 : vector<1x1x32xf32> to vector<1x32xf32>
    %cst_124 = arith.constant dense<0.000000e+00> : vector<8xf32>
    %247 = vector.multi_reduction <add>, %242, %cst_124 [1] : vector<8x32xf32> to vector<8xf32>
    %248 = vector.shape_cast %247 : vector<8xf32> to vector<8x1xf32>
    %cst_125 = arith.constant 3.200000e+01 : f32
    %249 = vector.broadcast %cst_125 : f32 to vector<8x1xf32>
    %250 = arith.divf %248, %249 : vector<8x1xf32>
    %251 = vector.broadcast %250 : vector<8x1xf32> to vector<8x32xf32>
    %252 = arith.subf %242, %251 : vector<8x32xf32>
    %253 = arith.mulf %252, %252 : vector<8x32xf32>
    %cst_126 = arith.constant dense<0.000000e+00> : vector<8xf32>
    %254 = vector.multi_reduction <add>, %253, %cst_126 [1] : vector<8x32xf32> to vector<8xf32>
    %255 = vector.shape_cast %254 : vector<8xf32> to vector<8x1xf32>
    %cst_127 = arith.constant 3.200000e+01 : f32
    %256 = vector.broadcast %cst_127 : f32 to vector<8x1xf32>
    %257 = arith.divf %255, %256 : vector<8x1xf32>
    %258 = vector.broadcast %250 : vector<8x1xf32> to vector<8x32xf32>
    %259 = arith.subf %242, %258 : vector<8x32xf32>
    %cst_128 = arith.constant 9.99999974E-6 : f32
    %260 = vector.broadcast %cst_128 : f32 to vector<8x1xf32>
    %261 = arith.addf %257, %260 : vector<8x1xf32>
    %262 = math.rsqrt %261 : vector<8x1xf32>
    %263 = vector.broadcast %262 : vector<8x1xf32> to vector<8x32xf32>
    %264 = arith.mulf %259, %263 : vector<8x32xf32>
    %265 = vector.broadcast %244 : vector<1x32xf32> to vector<8x32xf32>
    %266 = arith.mulf %264, %265 : vector<8x32xf32>
    %267 = vector.broadcast %246 : vector<1x32xf32> to vector<8x32xf32>
    %268 = arith.addf %266, %267 : vector<8x32xf32>
    %c1_129 = arith.constant 1 : index
    %c0_130 = arith.constant 0 : index
    %c0_131 = arith.constant 0 : index
    %269 = vector.load %arg17[%c1_129, %c0_130, %c0_131] : memref<2x32x128xf32, #tpu.memory_space<vmem>>, vector<1x32x128xf32>
    %270 = vector.shape_cast %269 : vector<1x32x128xf32> to vector<32x128xf32>
    %cst_132 = arith.constant dense<0.000000e+00> : vector<8x128xf32>
    %271 = tpu.matmul %268, %270, %cst_132 {dimension_numbers = #tpu.dot_dimension_numbers<[1], [0], [0], [1], [0, 0, 1, 1], [], []>} : vector<8x32xf32>, vector<32x128xf32>, vector<8x128xf32> -> vector<8x128xf32>
    %c1_133 = arith.constant 1 : index
    %c0_134 = arith.constant 0 : index
    %c0_135 = arith.constant 0 : index
    %272 = vector.load %arg18[%c1_133, %c0_134, %c0_135] : memref<2x1x128xf32, #tpu.memory_space<vmem>>, vector<1x1x128xf32>
    %273 = vector.shape_cast %272 : vector<1x1x128xf32> to vector<1x128xf32>
    %274 = vector.broadcast %273 : vector<1x128xf32> to vector<8x128xf32>
    %275 = arith.addf %271, %274 : vector<8x128xf32>
    %276 = arith.mulf %275, %275 : vector<8x128xf32>
    %277 = arith.mulf %275, %276 : vector<8x128xf32>
    %cst_136 = arith.constant 4.471500e-02 : f32
    %278 = vector.broadcast %cst_136 : f32 to vector<8x128xf32>
    %279 = arith.mulf %278, %277 : vector<8x128xf32>
    %280 = arith.addf %275, %279 : vector<8x128xf32>
    %cst_137 = arith.constant 0.797884583 : f32
    %281 = vector.broadcast %cst_137 : f32 to vector<8x128xf32>
    %282 = arith.mulf %281, %280 : vector<8x128xf32>
    %283 = math.tanh %282 : vector<8x128xf32>
    %cst_138 = arith.constant 1.000000e+00 : f32
    %284 = vector.broadcast %cst_138 : f32 to vector<8x128xf32>
    %285 = arith.addf %284, %283 : vector<8x128xf32>
    %cst_139 = arith.constant 5.000000e-01 : f32
    %286 = vector.broadcast %cst_139 : f32 to vector<8x128xf32>
    %287 = arith.mulf %286, %285 : vector<8x128xf32>
    %288 = arith.mulf %275, %287 : vector<8x128xf32>
    %c1_140 = arith.constant 1 : index
    %c0_141 = arith.constant 0 : index
    %c0_142 = arith.constant 0 : index
    %289 = vector.load %arg19[%c1_140, %c0_141, %c0_142] : memref<2x128x32xf32, #tpu.memory_space<vmem>>, vector<1x128x32xf32>
    %290 = vector.shape_cast %289 : vector<1x128x32xf32> to vector<128x32xf32>
    %cst_143 = arith.constant dense<0.000000e+00> : vector<8x32xf32>
    %291 = tpu.matmul %288, %290, %cst_143 {dimension_numbers = #tpu.dot_dimension_numbers<[1], [0], [0], [1], [0, 0, 1, 1], [], []>} : vector<8x128xf32>, vector<128x32xf32>, vector<8x32xf32> -> vector<8x32xf32>
    %c1_144 = arith.constant 1 : index
    %c0_145 = arith.constant 0 : index
    %c0_146 = arith.constant 0 : index
    %292 = vector.load %arg20[%c1_144, %c0_145, %c0_146] : memref<2x1x32xf32, #tpu.memory_space<vmem>>, vector<1x1x32xf32>
    %293 = vector.shape_cast %292 : vector<1x1x32xf32> to vector<1x32xf32>
    %294 = vector.broadcast %293 : vector<1x32xf32> to vector<8x32xf32>
    %295 = arith.addf %291, %294 : vector<8x32xf32>
    %296 = arith.addf %242, %295 : vector<8x32xf32>
    %c0_147 = arith.constant 0 : index
    %c0_148 = arith.constant 0 : index
    %c0_149 = arith.constant 0 : index
    %297 = vector.load %arg22[%c0_147, %c0_148, %c0_149] : memref<1x8x32xf32, #tpu.memory_space<vmem>>, vector<1x8x32xf32>
    %298 = vector.shape_cast %297 : vector<1x8x32xf32> to vector<8x32xf32>
    %299 = vector.shape_cast %296 : vector<8x32xf32> to vector<1x8x32xf32>
    tpu.vector_store %arg22[%c0_147, %c0_148, %c0_149], %299 {strides = array<i32>} : memref<1x8x32xf32, #tpu.memory_space<vmem>>, vector<1x8x32xf32>,
    return
  }
  func.func @transform_0(%arg0: i32) -> (i32, i32, i32) {
    %c0_i32 = arith.constant 0 : i32
    %c0_i32_0 = arith.constant 0 : i32
    %c0_i32_1 = arith.constant 0 : i32
    return %arg0, %c0_i32, %c0_i32_0 : i32, i32, i32
  }
  func.func @transform_1(%arg0: i32) -> (i32, i32, i32) {
    %c0_i32 = arith.constant 0 : i32
    %c0_i32_0 = arith.constant 0 : i32
    %c0_i32_1 = arith.constant 0 : i32
    return %arg0, %c0_i32, %c0_i32_0 : i32, i32, i32
  }
  func.func @transform_2(%arg0: i32) -> (i32, i32) {
    %c0_i32 = arith.constant 0 : i32
    %c0_i32_0 = arith.constant 0 : i32
    %c0_i32_1 = arith.constant 0 : i32
    return %c0_i32, %c0_i32_0 : i32, i32
  }
  func.func @transform_3(%arg0: i32) -> (i32, i32) {
    %c0_i32 = arith.constant 0 : i32
    %c0_i32_0 = arith.constant 0 : i32
    %c0_i32_1 = arith.constant 0 : i32
    return %c0_i32, %c0_i32_0 : i32, i32
  }
  func.func @transform_4(%arg0: i32) -> (i32, i32) {
    %c0_i32 = arith.constant 0 : i32
    %c0_i32_0 = arith.constant 0 : i32
    %c0_i32_1 = arith.constant 0 : i32
    return %c0_i32, %c0_i32_0 : i32, i32
  }
  func.func @transform_5(%arg0: i32) -> (i32, i32) {
    %c0_i32 = arith.constant 0 : i32
    %c0_i32_0 = arith.constant 0 : i32
    %c0_i32_1 = arith.constant 0 : i32
    return %c0_i32, %c0_i32_0 : i32, i32
  }
  func.func @transform_6(%arg0: i32) -> (i32, i32) {
    %c0_i32 = arith.constant 0 : i32
    %c0_i32_0 = arith.constant 0 : i32
    %c0_i32_1 = arith.constant 0 : i32
    return %c0_i32, %c0_i32_0 : i32, i32
  }
  func.func @transform_7(%arg0: i32) -> (i32, i32) {
    %c0_i32 = arith.constant 0 : i32
    %c0_i32_0 = arith.constant 0 : i32
    %c0_i32_1 = arith.constant 0 : i32
    return %c0_i32, %c0_i32_0 : i32, i32
  }
  func.func @transform_8(%arg0: i32) -> (i32, i32, i32) {
    %c0_i32 = arith.constant 0 : i32
    %c0_i32_0 = arith.constant 0 : i32
    %c0_i32_1 = arith.constant 0 : i32
    %c0_i32_2 = arith.constant 0 : i32
    return %c0_i32, %c0_i32_0, %c0_i32_1 : i32, i32, i32
  }
  func.func @transform_9(%arg0: i32) -> (i32, i32, i32) {
    %c0_i32 = arith.constant 0 : i32
    %c0_i32_0 = arith.constant 0 : i32
    %c0_i32_1 = arith.constant 0 : i32
    %c0_i32_2 = arith.constant 0 : i32
    return %c0_i32, %c0_i32_0, %c0_i32_1 : i32, i32, i32
  }
  func.func @transform_10(%arg0: i32) -> (i32, i32, i32) {
    %c0_i32 = arith.constant 0 : i32
    %c0_i32_0 = arith.constant 0 : i32
    %c0_i32_1 = arith.constant 0 : i32
    %c0_i32_2 = arith.constant 0 : i32
    return %c0_i32, %c0_i32_0, %c0_i32_1 : i32, i32, i32
  }
  func.func @transform_11(%arg0: i32) -> (i32, i32, i32) {
    %c0_i32 = arith.constant 0 : i32
    %c0_i32_0 = arith.constant 0 : i32
    %c0_i32_1 = arith.constant 0 : i32
    %c0_i32_2 = arith.constant 0 : i32
    return %c0_i32, %c0_i32_0, %c0_i32_1 : i32, i32, i32
  }
  func.func @transform_12(%arg0: i32) -> (i32, i32, i32) {
    %c0_i32 = arith.constant 0 : i32
    %c0_i32_0 = arith.constant 0 : i32
    %c0_i32_1 = arith.constant 0 : i32
    %c0_i32_2 = arith.constant 0 : i32
    return %c0_i32, %c0_i32_0, %c0_i32_1 : i32, i32, i32
  }
  func.func @transform_13(%arg0: i32) -> (i32, i32, i32) {
    %c0_i32 = arith.constant 0 : i32
    %c0_i32_0 = arith.constant 0 : i32
    %c0_i32_1 = arith.constant 0 : i32
    %c0_i32_2 = arith.constant 0 : i32
    return %c0_i32, %c0_i32_0, %c0_i32_1 : i32, i32, i32
  }
  func.func @transform_14(%arg0: i32) -> (i32, i32, i32) {
    %c0_i32 = arith.constant 0 : i32
    %c0_i32_0 = arith.constant 0 : i32
    %c0_i32_1 = arith.constant 0 : i32
    %c0_i32_2 = arith.constant 0 : i32
    return %c0_i32, %c0_i32_0, %c0_i32_1 : i32, i32, i32
  }
  func.func @transform_15(%arg0: i32) -> (i32, i32, i32) {
    %c0_i32 = arith.constant 0 : i32
    %c0_i32_0 = arith.constant 0 : i32
    %c0_i32_1 = arith.constant 0 : i32
    %c0_i32_2 = arith.constant 0 : i32
    return %c0_i32, %c0_i32_0, %c0_i32_1 : i32, i32, i32
  }
  func.func @transform_16(%arg0: i32) -> (i32, i32, i32) {
    %c0_i32 = arith.constant 0 : i32
    %c0_i32_0 = arith.constant 0 : i32
    %c0_i32_1 = arith.constant 0 : i32
    %c0_i32_2 = arith.constant 0 : i32
    return %c0_i32, %c0_i32_0, %c0_i32_1 : i32, i32, i32
  }
  func.func @transform_17(%arg0: i32) -> (i32, i32, i32) {
    %c0_i32 = arith.constant 0 : i32
    %c0_i32_0 = arith.constant 0 : i32
    %c0_i32_1 = arith.constant 0 : i32
    %c0_i32_2 = arith.constant 0 : i32
    return %c0_i32, %c0_i32_0, %c0_i32_1 : i32, i32, i32
  }
  func.func @transform_18(%arg0: i32) -> (i32, i32, i32) {
    %c0_i32 = arith.constant 0 : i32
    %c0_i32_0 = arith.constant 0 : i32
    %c0_i32_1 = arith.constant 0 : i32
    %c0_i32_2 = arith.constant 0 : i32
    return %c0_i32, %c0_i32_0, %c0_i32_1 : i32, i32, i32
  }
  func.func @transform_19(%arg0: i32) -> (i32, i32, i32) {
    %c0_i32 = arith.constant 0 : i32
    %c0_i32_0 = arith.constant 0 : i32
    %c0_i32_1 = arith.constant 0 : i32
    %c0_i32_2 = arith.constant 0 : i32
    return %c0_i32, %c0_i32_0, %c0_i32_1 : i32, i32, i32
  }
  func.func @transform_20(%arg0: i32) -> (i32, i32, i32) {
    %c0_i32 = arith.constant 0 : i32
    %c0_i32_0 = arith.constant 0 : i32
    %c0_i32_1 = arith.constant 0 : i32
    return %arg0, %c0_i32, %c0_i32_0 : i32, i32, i32
  }
  func.func @transform_21(%arg0: i32) -> (i32, i32, i32) {
    %c0_i32 = arith.constant 0 : i32
    %c0_i32_0 = arith.constant 0 : i32
    %c0_i32_1 = arith.constant 0 : i32
    return %arg0, %c0_i32, %c0_i32_0 : i32, i32, i32
  }
  func.func @transform_22(%arg0: i32) -> (i32, i32, i32) {
    %c0_i32 = arith.constant 0 : i32
    %c0_i32_0 = arith.constant 0 : i32
    %c0_i32_1 = arith.constant 0 : i32
    return %arg0, %c0_i32, %c0_i32_0 : i32, i32, i32
  }
}

</mosaic_0001>

<llo_original>
// kernel: llmcl4rec_forward.1
$region0: #{llmcl4rec_forward.1}
  #allocation0 [shape = 'u32[]', space=smem, size = 0x4, offset = 0x4, fixed_abs, tag = 'smem constant byte address 0x4 - core index']
  #allocation1 [shape = 'u32[144,128]{1,0:T(1,128)}', space=vmem, size = 0x12000, scoped, tag = 'internal scratch']
  %s0 = inlined_call_operand.vmem [shape: f32[2,8,64], index: 0, kind: input, shape index: {}]
  %s1 = inlined_call_operand.vmem [shape: f32[2,8,64], index: 1, kind: input, shape index: {}]
  %s2 = inlined_call_operand.vmem [shape: f32[2,8], index: 2, kind: input, shape index: {}]
  %s3 = inlined_call_operand.vmem [shape: f32[8,32], index: 3, kind: input, shape index: {}]
  %s4 = inlined_call_operand.vmem [shape: f32[64,32], index: 4, kind: input, shape index: {}]
  %s5 = inlined_call_operand.vmem [shape: f32[1,32], index: 5, kind: input, shape index: {}]
  %s6 = inlined_call_operand.vmem [shape: f32[32,32], index: 6, kind: input, shape index: {}]
  %s7 = inlined_call_operand.vmem [shape: f32[1,32], index: 7, kind: input, shape index: {}]
  %s8 = inlined_call_operand.vmem [shape: f32[2,1,32], index: 8, kind: input, shape index: {}]
  %s9 = inlined_call_operand.vmem [shape: f32[2,1,32], index: 9, kind: input, shape index: {}]
  %s10 = inlined_call_operand.vmem [shape: f32[2,32,96], index: 10, kind: input, shape index: {}]
  %s11 = inlined_call_operand.vmem [shape: f32[2,1,96], index: 11, kind: input, shape index: {}]
  %s12 = inlined_call_operand.vmem [shape: f32[2,32,32], index: 12, kind: input, shape index: {}]
  %s13 = inlined_call_operand.vmem [shape: f32[2,1,32], index: 13, kind: input, shape index: {}]
  %s14 = inlined_call_operand.vmem [shape: f32[2,1,32], index: 14, kind: input, shape index: {}]
  %s15 = inlined_call_operand.vmem [shape: f32[2,1,32], index: 15, kind: input, shape index: {}]
  %s16 = inlined_call_operand.vmem [shape: f32[2,32,128], index: 16, kind: input, shape index: {}]
  %s17 = inlined_call_operand.vmem [shape: f32[2,1,128], index: 17, kind: input, shape index: {}]
  %s18 = inlined_call_operand.vmem [shape: f32[2,128,32], index: 18, kind: input, shape index: {}]
  %s19 = inlined_call_operand.vmem [shape: f32[2,1,32], index: 19, kind: input, shape index: {}]
  %s20 = inlined_call_operand.vmem [shape: f32[2,8,32], index: 20, kind: output, shape index: {0}]
  %s21 = inlined_call_operand.vmem [shape: f32[2,8,32], index: 21, kind: output, shape index: {1}]
  %s22 = inlined_call_operand.vmem [shape: f32[2,8,32], index: 22, kind: output, shape index: {2}]
  %23 = xla_tuple %s20, %s21, %s22
  %s24 = sld [smem:[#allocation0]]
  $region129: #{llmcl4rec_forward.1} parent=0
    _
  %s26 = ssub.s32 1, %s24
  %s27 = scalar_select 0, %s26, %s24
  loop: start=0, step=1, limit=4
  $region2: #{llmcl4rec_forward.1} parent=0 // loop_pre_header
    _
  $region3: #{llmcl4rec_forward.1} parent=0 // loop_header
    %s29 = sphi 0, %s33
    %p30 = scmp.ge.s32.totalorder %s29, 4
    %s39 = sphi 0, %s41
    %s42 = sphi 0, %s39
    %s43 = sphi 0, %s42
    %s59 = sphi 0, %s43
    %s65 = sphi 0, %s67
    %s68 = sphi 0, %s65
    %s69 = sphi 0, %s68
    %s85 = sphi 0, %s69
    %s89 = sphi 0, %s89
    %s91 = sphi 0, %s89
    %s92 = sphi 0, %s91
    %s106 = sphi 0, %s92
    %s110 = sphi 0, %s110
    %s112 = sphi 0, %s110
    %s113 = sphi 0, %s112
    %s127 = sphi 0, %s113
    %s131 = sphi 0, %s131
    %s133 = sphi 0, %s131
    %s134 = sphi 0, %s133
    %s148 = sphi 0, %s134
    %s152 = sphi 0, %s152
    %s154 = sphi 0, %s152
    %s155 = sphi 0, %s154
    %s169 = sphi 0, %s155
    %s173 = sphi 0, %s173
    %s175 = sphi 0, %s173
    %s176 = sphi 0, %s175
    %s190 = sphi 0, %s176
    %s194 = sphi 0, %s194
    %s196 = sphi 0, %s194
    %s197 = sphi 0, %s196
    %s211 = sphi 0, %s197
    %s215 = sphi 0, %s215
    %s217 = sphi 0, %s215
    %s218 = sphi 0, %s217
    %s232 = sphi 0, %s218
    %s236 = sphi 0, %s236
    %s238 = sphi 0, %s236
    %s239 = sphi 0, %s238
    %s253 = sphi 0, %s239
    %s257 = sphi 0, %s257
    %s259 = sphi 0, %s257
    %s260 = sphi 0, %s259
    %s274 = sphi 0, %s260
    %s278 = sphi 0, %s278
    %s280 = sphi 0, %s278
    %s281 = sphi 0, %s280
    %s295 = sphi 0, %s281
    %s299 = sphi 0, %s299
    %s301 = sphi 0, %s299
    %s302 = sphi 0, %s301
    %s316 = sphi 0, %s302
    %s320 = sphi 0, %s320
    %s322 = sphi 0, %s320
    %s323 = sphi 0, %s322
    %s337 = sphi 0, %s323
    %s341 = sphi 0, %s341
    %s343 = sphi 0, %s341
    %s344 = sphi 0, %s343
    %s358 = sphi 0, %s344
    %s362 = sphi 0, %s362
    %s364 = sphi 0, %s362
    %s365 = sphi 0, %s364
    %s379 = sphi 0, %s365
    %s383 = sphi 0, %s383
    %s385 = sphi 0, %s383
    %s386 = sphi 0, %s385
    %s400 = sphi 0, %s386
    %s404 = sphi 0, %s404
    %s406 = sphi 0, %s404
    %s407 = sphi 0, %s406
    %s421 = sphi 0, %s407
    %s425 = sphi 0, %s425
    %s427 = sphi 0, %s425
    %s428 = sphi 0, %s427
    %s442 = sphi 0, %s428
    %s446 = sphi 0, %s446
    %s448 = sphi 0, %s446
    %s449 = sphi 0, %s448
    %s463 = sphi 0, %s449
    %s469 = sphi 0, %s471
    %s472 = sphi 0, %s469
    %s473 = sphi 0, %s472
    %s489 = sphi 0, %s473
    %s495 = sphi 0, %s497
    %s498 = sphi 0, %s495
    %s499 = sphi 0, %s498
    %s515 = sphi 0, %s499
    %s521 = sphi 0, %s523
    %s524 = sphi 0, %s521
    %s525 = sphi 0, %s524
    %s541 = sphi 0, %s525
  $region4: #{llmcl4rec_forward.1} parent=0 // loop_header_branch
    %32 = sbr.rel (%p30) target = $region8
  $region5: #{llmcl4rec_forward.1} parent=0 // loop_body
    %s34 = ssub.s32 %s29, 1
    %s35 = ssub.s32 %s29, 2
    %s36 = sadd.s32 %s29, 1
    %s37 = ssub.s32 %s29, %s36
    %p38 = scmp.eq.s32.totalorder %s37, 0
    %s40 = sadd.s32 %s39, 1
    %s41 = scalar_select %p38, %s39, %s40
    %p44 = pneg %p38
    %p45 = scmp.eq.s32.totalorder %s29, 1
    %p46 = por %p44, %p45
    %p47 = scmp.ne.s32.totalorder %s39, %s42
    %p48 = scmp.eq.s32.totalorder %s29, 0
    %p49 = por %p47, %p48
    %p50 = scmp.ne.s32.totalorder %s39, %s42
    %p51 = scmp.eq.s32.totalorder %s34, 1
    %p52 = por %p50, %p51
    %p53 = scmp.ne.s32.totalorder %s42, %s43
    %p54 = scmp.eq.s32.totalorder %s34, 0
    %p55 = por %p53, %p54
    %p56 = scmp.ne.s32.totalorder %s42, %s43
    %p57 = scmp.eq.s32.totalorder %s35, 1
    %p58 = por %p56, %p57
    %p60 = scmp.ne.s32.totalorder %s43, %s59
    %p61 = scmp.eq.s32.totalorder %s35, 0
    %p62 = por %p60, %p61
    %s63 = ssub.s32 %s29, %s36
    %p64 = scmp.eq.s32.totalorder %s63, 0
    %s66 = sadd.s32 %s65, 1
    %s67 = scalar_select %p64, %s65, %s66
    %p70 = pneg %p64
    %p71 = scmp.eq.s32.totalorder %s29, 1
    %p72 = por %p70, %p71
    %p73 = scmp.ne.s32.totalorder %s65, %s68
    %p74 = scmp.eq.s32.totalorder %s29, 0
    %p75 = por %p73, %p74
    %p76 = scmp.ne.s32.totalorder %s65, %s68
    %p77 = scmp.eq.s32.totalorder %s34, 1
    %p78 = por %p76, %p77
    %p79 = scmp.ne.s32.totalorder %s68, %s69
    %p80 = scmp.eq.s32.totalorder %s34, 0
    %p81 = por %p79, %p80
    %p82 = scmp.ne.s32.totalorder %s68, %s69
    %p83 = scmp.eq.s32.totalorder %s35, 1
    %p84 = por %p82, %p83
    %p86 = scmp.ne.s32.totalorder %s69, %s85
    %p87 = scmp.eq.s32.totalorder %s35, 0
    %p88 = por %p86, %p87
    %s90 = sadd.s32 %s89, 1
    %p93 = scmp.eq.s32.totalorder %s29, 1
    %p94 = scmp.ne.s32.totalorder %s89, %s91
    %p95 = scmp.eq.s32.totalorder %s29, 0
    %p96 = por %p94, %p95
    %p97 = scmp.ne.s32.totalorder %s89, %s91
    %p98 = scmp.eq.s32.totalorder %s34, 1
    %p99 = por %p97, %p98
    %p100 = scmp.ne.s32.totalorder %s91, %s92
    %p101 = scmp.eq.s32.totalorder %s34, 0
    %p102 = por %p100, %p101
    %p103 = scmp.ne.s32.totalorder %s91, %s92
    %p104 = scmp.eq.s32.totalorder %s35, 1
    %p105 = por %p103, %p104
    %p107 = scmp.ne.s32.totalorder %s92, %s106
    %p108 = scmp.eq.s32.totalorder %s35, 0
    %p109 = por %p107, %p108
    %s111 = sadd.s32 %s110, 1
    %p114 = scmp.eq.s32.totalorder %s29, 1
    %p115 = scmp.ne.s32.totalorder %s110, %s112
    %p116 = scmp.eq.s32.totalorder %s29, 0
    %p117 = por %p115, %p116
    %p118 = scmp.ne.s32.totalorder %s110, %s112
    %p119 = scmp.eq.s32.totalorder %s34, 1
    %p120 = por %p118, %p119
    %p121 = scmp.ne.s32.totalorder %s112, %s113
    %p122 = scmp.eq.s32.totalorder %s34, 0
    %p123 = por %p121, %p122
    %p124 = scmp.ne.s32.totalorder %s112, %s113
    %p125 = scmp.eq.s32.totalorder %s35, 1
    %p126 = por %p124, %p125
    %p128 = scmp.ne.s32.totalorder %s113, %s127
    %p129 = scmp.eq.s32.totalorder %s35, 0
    %p130 = por %p128, %p129
    %s132 = sadd.s32 %s131, 1
    %p135 = scmp.eq.s32.totalorder %s29, 1
    %p136 = scmp.ne.s32.totalorder %s131, %s133
    %p137 = scmp.eq.s32.totalorder %s29, 0
    %p138 = por %p136, %p137
    %p139 = scmp.ne.s32.totalorder %s131, %s133
    %p140 = scmp.eq.s32.totalorder %s34, 1
    %p141 = por %p139, %p140
    %p142 = scmp.ne.s32.totalorder %s133, %s134
    %p143 = scmp.eq.s32.totalorder %s34, 0
    %p144 = por %p142, %p143
    %p145 = scmp.ne.s32.totalorder %s133, %s134
    %p146 = scmp.eq.s32.totalorder %s35, 1
    %p147 = por %p145, %p146
    %p149 = scmp.ne.s32.totalorder %s134, %s148
    %p150 = scmp.eq.s32.totalorder %s35, 0
    %p151 = por %p149, %p150
    %s153 = sadd.s32 %s152, 1
    %p156 = scmp.eq.s32.totalorder %s29, 1
    %p157 = scmp.ne.s32.totalorder %s152, %s154
    %p158 = scmp.eq.s32.totalorder %s29, 0
    %p159 = por %p157, %p158
    %p160 = scmp.ne.s32.totalorder %s152, %s154
    %p161 = scmp.eq.s32.totalorder %s34, 1
    %p162 = por %p160, %p161
    %p163 = scmp.ne.s32.totalorder %s154, %s155
    %p164 = scmp.eq.s32.totalorder %s34, 0
    %p165 = por %p163, %p164
    %p166 = scmp.ne.s32.totalorder %s154, %s155
    %p167 = scmp.eq.s32.totalorder %s35, 1
    %p168 = por %p166, %p167
    %p170 = scmp.ne.s32.totalorder %s155, %s169
    %p171 = scmp.eq.s32.totalorder %s35, 0
    %p172 = por %p170, %p171
    %s174 = sadd.s32 %s173, 1
    %p177 = scmp.eq.s32.totalorder %s29, 1
    %p178 = scmp.ne.s32.totalorder %s173, %s175
    %p179 = scmp.eq.s32.totalorder %s29, 0
    %p180 = por %p178, %p179
    %p181 = scmp.ne.s32.totalorder %s173, %s175
    %p182 = scmp.eq.s32.totalorder %s34, 1
    %p183 = por %p181, %p182
    %p184 = scmp.ne.s32.totalorder %s175, %s176
    %p185 = scmp.eq.s32.totalorder %s34, 0
    %p186 = por %p184, %p185
    %p187 = scmp.ne.s32.totalorder %s175, %s176
    %p188 = scmp.eq.s32.totalorder %s35, 1
    %p189 = por %p187, %p188
    %p191 = scmp.ne.s32.totalorder %s176, %s190
    %p192 = scmp.eq.s32.totalorder %s35, 0
    %p193 = por %p191, %p192
    %s195 = sadd.s32 %s194, 1
    %p198 = scmp.eq.s32.totalorder %s29, 1
    %p199 = scmp.ne.s32.totalorder %s194, %s196
    %p200 = scmp.eq.s32.totalorder %s29, 0
    %p201 = por %p199, %p200
    %p202 = scmp.ne.s32.totalorder %s194, %s196
    %p203 = scmp.eq.s32.totalorder %s34, 1
    %p204 = por %p202, %p203
    %p205 = scmp.ne.s32.totalorder %s196, %s197
    %p206 = scmp.eq.s32.totalorder %s34, 0
    %p207 = por %p205, %p206
    %p208 = scmp.ne.s32.totalorder %s196, %s197
    %p209 = scmp.eq.s32.totalorder %s35, 1
    %p210 = por %p208, %p209
    %p212 = scmp.ne.s32.totalorder %s197, %s211
    %p213 = scmp.eq.s32.totalorder %s35, 0
    %p214 = por %p212, %p213
    %s216 = sadd.s32 %s215, 1
    %p219 = scmp.eq.s32.totalorder %s29, 1
    %p220 = scmp.ne.s32.totalorder %s215, %s217
    %p221 = scmp.eq.s32.totalorder %s29, 0
    %p222 = por %p220, %p221
    %p223 = scmp.ne.s32.totalorder %s215, %s217
    %p224 = scmp.eq.s32.totalorder %s34, 1
    %p225 = por %p223, %p224
    %p226 = scmp.ne.s32.totalorder %s217, %s218
    %p227 = scmp.eq.s32.totalorder %s34, 0
    %p228 = por %p226, %p227
    %p229 = scmp.ne.s32.totalorder %s217, %s218
    %p230 = scmp.eq.s32.totalorder %s35, 1
    %p231 = por %p229, %p230
    %p233 = scmp.ne.s32.totalorder %s218, %s232
    %p234 = scmp.eq.s32.totalorder %s35, 0
    %p235 = por %p233, %p234
    %s237 = sadd.s32 %s236, 1
    %p240 = scmp.eq.s32.totalorder %s29, 1
    %p241 = scmp.ne.s32.totalorder %s236, %s238
    %p242 = scmp.eq.s32.totalorder %s29, 0
    %p243 = por %p241, %p242
    %p244 = scmp.ne.s32.totalorder %s236, %s238
    %p245 = scmp.eq.s32.totalorder %s34, 1
    %p246 = por %p244, %p245
    %p247 = scmp.ne.s32.totalorder %s238, %s239
    %p248 = scmp.eq.s32.totalorder %s34, 0
    %p249 = por %p247, %p248
    %p250 = scmp.ne.s32.totalorder %s238, %s239
    %p251 = scmp.eq.s32.totalorder %s35, 1
    %p252 = por %p250, %p251
    %p254 = scmp.ne.s32.totalorder %s239, %s253
    %p255 = scmp.eq.s32.totalorder %s35, 0
    %p256 = por %p254, %p255
    %s258 = sadd.s32 %s257, 1
    %p261 = scmp.eq.s32.totalorder %s29, 1
    %p262 = scmp.ne.s32.totalorder %s257, %s259
    %p263 = scmp.eq.s32.totalorder %s29, 0
    %p264 = por %p262, %p263
    %p265 = scmp.ne.s32.totalorder %s257, %s259
    %p266 = scmp.eq.s32.totalorder %s34, 1
    %p267 = por %p265, %p266
    %p268 = scmp.ne.s32.totalorder %s259, %s260
    %p269 = scmp.eq.s32.totalorder %s34, 0
    %p270 = por %p268, %p269
    %p271 = scmp.ne.s32.totalorder %s259, %s260
    %p272 = scmp.eq.s32.totalorder %s35, 1
    %p273 = por %p271, %p272
    %p275 = scmp.ne.s32.totalorder %s260, %s274
    %p276 = scmp.eq.s32.totalorder %s35, 0
    %p277 = por %p275, %p276
    %s279 = sadd.s32 %s278, 1
    %p282 = scmp.eq.s32.totalorder %s29, 1
    %p283 = scmp.ne.s32.totalorder %s278, %s280
    %p284 = scmp.eq.s32.totalorder %s29, 0
    %p285 = por %p283, %p284
    %p286 = scmp.ne.s32.totalorder %s278, %s280
    %p287 = scmp.eq.s32.totalorder %s34, 1
    %p288 = por %p286, %p287
    %p289 = scmp.ne.s32.totalorder %s280, %s281
    %p290 = scmp.eq.s32.totalorder %s34, 0
    %p291 = por %p289, %p290
    %p292 = scmp.ne.s32.totalorder %s280, %s281
    %p293 = scmp.eq.s32.totalorder %s35, 1
    %p294 = por %p292, %p293
    %p296 = scmp.ne.s32.totalorder %s281, %s295
    %p297 = scmp.eq.s32.totalorder %s35, 0
    %p298 = por %p296, %p297
    %s300 = sadd.s32 %s299, 1
    %p303 = scmp.eq.s32.totalorder %s29, 1
    %p304 = scmp.ne.s32.totalorder %s299, %s301
    %p305 = scmp.eq.s32.totalorder %s29, 0
    %p306 = por %p304, %p305
    %p307 = scmp.ne.s32.totalorder %s299, %s301
    %p308 = scmp.eq.s32.totalorder %s34, 1
    %p309 = por %p307, %p308
    %p310 = scmp.ne.s32.totalorder %s301, %s302
    %p311 = scmp.eq.s32.totalorder %s34, 0
    %p312 = por %p310, %p311
    %p313 = scmp.ne.s32.totalorder %s301, %s302
    %p314 = scmp.eq.s32.totalorder %s35, 1
    %p315 = por %p313, %p314
    %p317 = scmp.ne.s32.totalorder %s302, %s316
    %p318 = scmp.eq.s32.totalorder %s35, 0
    %p319 = por %p317, %p318
    %s321 = sadd.s32 %s320, 1
    %p324 = scmp.eq.s32.totalorder %s29, 1
    %p325 = scmp.ne.s32.totalorder %s320, %s322
    %p326 = scmp.eq.s32.totalorder %s29, 0
    %p327 = por %p325, %p326
    %p328 = scmp.ne.s32.totalorder %s320, %s322
    %p329 = scmp.eq.s32.totalorder %s34, 1
    %p330 = por %p328, %p329
    %p331 = scmp.ne.s32.totalorder %s322, %s323
    %p332 = scmp.eq.s32.totalorder %s34, 0
    %p333 = por %p331, %p332
    %p334 = scmp.ne.s32.totalorder %s322, %s323
    %p335 = scmp.eq.s32.totalorder %s35, 1
    %p336 = por %p334, %p335
    %p338 = scmp.ne.s32.totalorder %s323, %s337
    %p339 = scmp.eq.s32.totalorder %s35, 0
    %p340 = por %p338, %p339
    %s342 = sadd.s32 %s341, 1
    %p345 = scmp.eq.s32.totalorder %s29, 1
    %p346 = scmp.ne.s32.totalorder %s341, %s343
    %p347 = scmp.eq.s32.totalorder %s29, 0
    %p348 = por %p346, %p347
    %p349 = scmp.ne.s32.totalorder %s341, %s343
    %p350 = scmp.eq.s32.totalorder %s34, 1
    %p351 = por %p349, %p350
    %p352 = scmp.ne.s32.totalorder %s343, %s344
    %p353 = scmp.eq.s32.totalorder %s34, 0
    %p354 = por %p352, %p353
    %p355 = scmp.ne.s32.totalorder %s343, %s344
    %p356 = scmp.eq.s32.totalorder %s35, 1
    %p357 = por %p355, %p356
    %p359 = scmp.ne.s32.totalorder %s344, %s358
    %p360 = scmp.eq.s32.totalorder %s35, 0
    %p361 = por %p359, %p360
    %s363 = sadd.s32 %s362, 1
    %p366 = scmp.eq.s32.totalorder %s29, 1
    %p367 = scmp.ne.s32.totalorder %s362, %s364
    %p368 = scmp.eq.s32.totalorder %s29, 0
    %p369 = por %p367, %p368
    %p370 = scmp.ne.s32.totalorder %s362, %s364
    %p371 = scmp.eq.s32.totalorder %s34, 1
    %p372 = por %p370, %p371
    %p373 = scmp.ne.s32.totalorder %s364, %s365
    %p374 = scmp.eq.s32.totalorder %s34, 0
    %p375 = por %p373, %p374
    %p376 = scmp.ne.s32.totalorder %s364, %s365
    %p377 = scmp.eq.s32.totalorder %s35, 1
    %p378 = por %p376, %p377
    %p380 = scmp.ne.s32.totalorder %s365, %s379
    %p381 = scmp.eq.s32.totalorder %s35, 0
    %p382 = por %p380, %p381
    %s384 = sadd.s32 %s383, 1
    %p387 = scmp.eq.s32.totalorder %s29, 1
    %p388 = scmp.ne.s32.totalorder %s383, %s385
    %p389 = scmp.eq.s32.totalorder %s29, 0
    %p390 = por %p388, %p389
    %p391 = scmp.ne.s32.totalorder %s383, %s385
    %p392 = scmp.eq.s32.totalorder %s34, 1
    %p393 = por %p391, %p392
    %p394 = scmp.ne.s32.totalorder %s385, %s386
    %p395 = scmp.eq.s32.totalorder %s34, 0
    %p396 = por %p394, %p395
    %p397 = scmp.ne.s32.totalorder %s385, %s386
    %p398 = scmp.eq.s32.totalorder %s35, 1
    %p399 = por %p397, %p398
    %p401 = scmp.ne.s32.totalorder %s386, %s400
    %p402 = scmp.eq.s32.totalorder %s35, 0
    %p403 = por %p401, %p402
    %s405 = sadd.s32 %s404, 1
    %p408 = scmp.eq.s32.totalorder %s29, 1
    %p409 = scmp.ne.s32.totalorder %s404, %s406
    %p410 = scmp.eq.s32.totalorder %s29, 0
    %p411 = por %p409, %p410
    %p412 = scmp.ne.s32.totalorder %s404, %s406
    %p413 = scmp.eq.s32.totalorder %s34, 1
    %p414 = por %p412, %p413
    %p415 = scmp.ne.s32.totalorder %s406, %s407
    %p416 = scmp.eq.s32.totalorder %s34, 0
    %p417 = por %p415, %p416
    %p418 = scmp.ne.s32.totalorder %s406, %s407
    %p419 = scmp.eq.s32.totalorder %s35, 1
    %p420 = por %p418, %p419
    %p422 = scmp.ne.s32.totalorder %s407, %s421
    %p423 = scmp.eq.s32.totalorder %s35, 0
    %p424 = por %p422, %p423
    %s426 = sadd.s32 %s425, 1
    %p429 = scmp.eq.s32.totalorder %s29, 1
    %p430 = scmp.ne.s32.totalorder %s425, %s427
    %p431 = scmp.eq.s32.totalorder %s29, 0
    %p432 = por %p430, %p431
    %p433 = scmp.ne.s32.totalorder %s425, %s427
    %p434 = scmp.eq.s32.totalorder %s34, 1
    %p435 = por %p433, %p434
    %p436 = scmp.ne.s32.totalorder %s427, %s428
    %p437 = scmp.eq.s32.totalorder %s34, 0
    %p438 = por %p436, %p437
    %p439 = scmp.ne.s32.totalorder %s427, %s428
    %p440 = scmp.eq.s32.totalorder %s35, 1
    %p441 = por %p439, %p440
    %p443 = scmp.ne.s32.totalorder %s428, %s442
    %p444 = scmp.eq.s32.totalorder %s35, 0
    %p445 = por %p443, %p444
    %s447 = sadd.s32 %s446, 1
    %p450 = scmp.eq.s32.totalorder %s29, 1
    %p451 = scmp.ne.s32.totalorder %s446, %s448
    %p452 = scmp.eq.s32.totalorder %s29, 0
    %p453 = por %p451, %p452
    %p454 = scmp.ne.s32.totalorder %s446, %s448
    %p455 = scmp.eq.s32.totalorder %s34, 1
    %p456 = por %p454, %p455
    %p457 = scmp.ne.s32.totalorder %s448, %s449
    %p458 = scmp.eq.s32.totalorder %s34, 0
    %p459 = por %p457, %p458
    %p460 = scmp.ne.s32.totalorder %s448, %s449
    %p461 = scmp.eq.s32.totalorder %s35, 1
    %p462 = por %p460, %p461
    %p464 = scmp.ne.s32.totalorder %s449, %s463
    %p465 = scmp.eq.s32.totalorder %s35, 0
    %p466 = por %p464, %p465
    %s467 = ssub.s32 %s29, %s36
    %p468 = scmp.eq.s32.totalorder %s467, 0
    %s470 = sadd.s32 %s469, 1
    %s471 = scalar_select %p468, %s469, %s470
    %p474 = pneg %p468
    %p475 = scmp.eq.s32.totalorder %s29, 1
    %p476 = por %p474, %p475
    %p477 = scmp.ne.s32.totalorder %s469, %s472
    %p478 = scmp.eq.s32.totalorder %s29, 0
    %p479 = por %p477, %p478
    %p480 = scmp.ne.s32.totalorder %s469, %s472
    %p481 = scmp.eq.s32.totalorder %s34, 1
    %p482 = por %p480, %p481
    %p483 = scmp.ne.s32.totalorder %s472, %s473
    %p484 = scmp.eq.s32.totalorder %s34, 0
    %p485 = por %p483, %p484
    %p486 = scmp.ne.s32.totalorder %s472, %s473
    %p487 = scmp.eq.s32.totalorder %s35, 1
    %p488 = por %p486, %p487
    %p490 = scmp.ne.s32.totalorder %s473, %s489
    %p491 = scmp.eq.s32.totalorder %s35, 0
    %p492 = por %p490, %p491
    %s493 = ssub.s32 %s29, %s36
    %p494 = scmp.eq.s32.totalorder %s493, 0
    %s496 = sadd.s32 %s495, 1
    %s497 = scalar_select %p494, %s495, %s496
    %p500 = pneg %p494
    %p501 = scmp.eq.s32.totalorder %s29, 1
    %p502 = por %p500, %p501
    %p503 = scmp.ne.s32.totalorder %s495, %s498
    %p504 = scmp.eq.s32.totalorder %s29, 0
    %p505 = por %p503, %p504
    %p506 = scmp.ne.s32.totalorder %s495, %s498
    %p507 = scmp.eq.s32.totalorder %s34, 1
    %p508 = por %p506, %p507
    %p509 = scmp.ne.s32.totalorder %s498, %s499
    %p510 = scmp.eq.s32.totalorder %s34, 0
    %p511 = por %p509, %p510
    %p512 = scmp.ne.s32.totalorder %s498, %s499
    %p513 = scmp.eq.s32.totalorder %s35, 1
    %p514 = por %p512, %p513
    %p516 = scmp.ne.s32.totalorder %s499, %s515
    %p517 = scmp.eq.s32.totalorder %s35, 0
    %p518 = por %p516, %p517
    %s519 = ssub.s32 %s29, %s36
    %p520 = scmp.eq.s32.totalorder %s519, 0
    %s522 = sadd.s32 %s521, 1
    %s523 = scalar_select %p520, %s521, %s522
    %p526 = pneg %p520
    %p527 = scmp.eq.s32.totalorder %s29, 1
    %p528 = por %p526, %p527
    %p529 = scmp.ne.s32.totalorder %s521, %s524
    %p530 = scmp.eq.s32.totalorder %s29, 0
    %p531 = por %p529, %p530
    %p532 = scmp.ne.s32.totalorder %s521, %s524
    %p533 = scmp.eq.s32.totalorder %s34, 1
    %p534 = por %p532, %p533
    %p535 = scmp.ne.s32.totalorder %s524, %s525
    %p536 = scmp.eq.s32.totalorder %s34, 0
    %p537 = por %p535, %p536
    %p538 = scmp.ne.s32.totalorder %s524, %s525
    %p539 = scmp.eq.s32.totalorder %s35, 1
    %p540 = por %p538, %p539
    %p542 = scmp.ne.s32.totalorder %s525, %s541
    %p543 = scmp.eq.s32.totalorder %s35, 0
    %p544 = por %p542, %p543
    %p545 = scmp.le.s32.totalorder 1, %s29
    %p546 = scmp.lt.s32.totalorder %s29, 3
    %p547 = pnand %p545, %p546
    %p548 = pneg %p547
    // Predicated region
    $region9: #{llmcl4rec_forward.1} parent=5 // pred_check
      _
    $region10: #{llmcl4rec_forward.1} parent=5 // pred_check_branch
      %550 = sbr.rel (%p547) target = $region12
    $region11: #{llmcl4rec_forward.1} parent=5 // pred_region
      %s551 = ssub.s32 %s29, 1
      // Predicated region
      $region13: #{llmcl4rec_forward.1} parent=11 // pred_check
        %p552 = pneg %p102
      $region14: #{llmcl4rec_forward.1} parent=11 // pred_check_branch
        %554 = sbr.rel (%p552) target = $region16
      $region15: #{llmcl4rec_forward.1} parent=11 // pred_region
        _
      $region16: #{llmcl4rec_forward.1} parent=11 // pred_fallthru
        _
      // Predicated region
      $region17: #{llmcl4rec_forward.1} parent=11 // pred_check
        %p555 = pneg %p123
      $region18: #{llmcl4rec_forward.1} parent=11 // pred_check_branch
        %557 = sbr.rel (%p555) target = $region20
      $region19: #{llmcl4rec_forward.1} parent=11 // pred_region
        _
      $region20: #{llmcl4rec_forward.1} parent=11 // pred_fallthru
        _
      // Predicated region
      $region21: #{llmcl4rec_forward.1} parent=11 // pred_check
        %p558 = pneg %p144
      $region22: #{llmcl4rec_forward.1} parent=11 // pred_check_branch
        %560 = sbr.rel (%p558) target = $region24
      $region23: #{llmcl4rec_forward.1} parent=11 // pred_region
        _
      $region24: #{llmcl4rec_forward.1} parent=11 // pred_fallthru
        _
      // Predicated region
      $region25: #{llmcl4rec_forward.1} parent=11 // pred_check
        %p561 = pneg %p165
      $region26: #{llmcl4rec_forward.1} parent=11 // pred_check_branch
        %563 = sbr.rel (%p561) target = $region28
      $region27: #{llmcl4rec_forward.1} parent=11 // pred_region
        _
      $region28: #{llmcl4rec_forward.1} parent=11 // pred_fallthru
        _
      // Predicated region
      $region29: #{llmcl4rec_forward.1} parent=11 // pred_check
        %p564 = pneg %p186
      $region30: #{llmcl4rec_forward.1} parent=11 // pred_check_branch
        %566 = sbr.rel (%p564) target = $region32
      $region31: #{llmcl4rec_forward.1} parent=11 // pred_region
        _
      $region32: #{llmcl4rec_forward.1} parent=11 // pred_fallthru
        _
      // Predicated region
      $region33: #{llmcl4rec_forward.1} parent=11 // pred_check
        %p567 = pneg %p207
      $region34: #{llmcl4rec_forward.1} parent=11 // pred_check_branch
        %569 = sbr.rel (%p567) target = $region36
      $region35: #{llmcl4rec_forward.1} parent=11 // pred_region
        _
      $region36: #{llmcl4rec_forward.1} parent=11 // pred_fallthru
        _
      // Predicated region
      $region37: #{llmcl4rec_forward.1} parent=11 // pred_check
        %p570 = pneg %p228
      $region38: #{llmcl4rec_forward.1} parent=11 // pred_check_branch
        %572 = sbr.rel (%p570) target = $region40
      $region39: #{llmcl4rec_forward.1} parent=11 // pred_region
        _
      $region40: #{llmcl4rec_forward.1} parent=11 // pred_fallthru
        _
      // Predicated region
      $region41: #{llmcl4rec_forward.1} parent=11 // pred_check
        %p573 = pneg %p249
      $region42: #{llmcl4rec_forward.1} parent=11 // pred_check_branch
        %575 = sbr.rel (%p573) target = $region44
      $region43: #{llmcl4rec_forward.1} parent=11 // pred_region
        _
      $region44: #{llmcl4rec_forward.1} parent=11 // pred_fallthru
        _
      // Predicated region
      $region45: #{llmcl4rec_forward.1} parent=11 // pred_check
        %p576 = pneg %p270
      $region46: #{llmcl4rec_forward.1} parent=11 // pred_check_branch
        %578 = sbr.rel (%p576) target = $region48
      $region47: #{llmcl4rec_forward.1} parent=11 // pred_region
        _
      $region48: #{llmcl4rec_forward.1} parent=11 // pred_fallthru
        _
      // Predicated region
      $region49: #{llmcl4rec_forward.1} parent=11 // pred_check
        %p579 = pneg %p291
      $region50: #{llmcl4rec_forward.1} parent=11 // pred_check_branch
        %581 = sbr.rel (%p579) target = $region52
      $region51: #{llmcl4rec_forward.1} parent=11 // pred_region
        _
      $region52: #{llmcl4rec_forward.1} parent=11 // pred_fallthru
        _
      // Predicated region
      $region53: #{llmcl4rec_forward.1} parent=11 // pred_check
        %p582 = pneg %p312
      $region54: #{llmcl4rec_forward.1} parent=11 // pred_check_branch
        %584 = sbr.rel (%p582) target = $region56
      $region55: #{llmcl4rec_forward.1} parent=11 // pred_region
        _
      $region56: #{llmcl4rec_forward.1} parent=11 // pred_fallthru
        _
      // Predicated region
      $region57: #{llmcl4rec_forward.1} parent=11 // pred_check
        %p585 = pneg %p333
      $region58: #{llmcl4rec_forward.1} parent=11 // pred_check_branch
        %587 = sbr.rel (%p585) target = $region60
      $region59: #{llmcl4rec_forward.1} parent=11 // pred_region
        _
      $region60: #{llmcl4rec_forward.1} parent=11 // pred_fallthru
        _
      // Predicated region
      $region61: #{llmcl4rec_forward.1} parent=11 // pred_check
        %p588 = pneg %p354
      $region62: #{llmcl4rec_forward.1} parent=11 // pred_check_branch
        %590 = sbr.rel (%p588) target = $region64
      $region63: #{llmcl4rec_forward.1} parent=11 // pred_region
        _
      $region64: #{llmcl4rec_forward.1} parent=11 // pred_fallthru
        _
      // Predicated region
      $region65: #{llmcl4rec_forward.1} parent=11 // pred_check
        %p591 = pneg %p375
      $region66: #{llmcl4rec_forward.1} parent=11 // pred_check_branch
        %593 = sbr.rel (%p591) target = $region68
      $region67: #{llmcl4rec_forward.1} parent=11 // pred_region
        _
      $region68: #{llmcl4rec_forward.1} parent=11 // pred_fallthru
        _
      // Predicated region
      $region69: #{llmcl4rec_forward.1} parent=11 // pred_check
        %p594 = pneg %p396
      $region70: #{llmcl4rec_forward.1} parent=11 // pred_check_branch
        %596 = sbr.rel (%p594) target = $region72
      $region71: #{llmcl4rec_forward.1} parent=11 // pred_region
        _
      $region72: #{llmcl4rec_forward.1} parent=11 // pred_fallthru
        _
      // Predicated region
      $region73: #{llmcl4rec_forward.1} parent=11 // pred_check
        %p597 = pneg %p417
      $region74: #{llmcl4rec_forward.1} parent=11 // pred_check_branch
        %599 = sbr.rel (%p597) target = $region76
      $region75: #{llmcl4rec_forward.1} parent=11 // pred_region
        _
      $region76: #{llmcl4rec_forward.1} parent=11 // pred_fallthru
        _
      // Predicated region
      $region77: #{llmcl4rec_forward.1} parent=11 // pred_check
        %p600 = pneg %p438
      $region78: #{llmcl4rec_forward.1} parent=11 // pred_check_branch
        %602 = sbr.rel (%p600) target = $region80
      $region79: #{llmcl4rec_forward.1} parent=11 // pred_region
        _
      $region80: #{llmcl4rec_forward.1} parent=11 // pred_fallthru
        _
      // Predicated region
      $region81: #{llmcl4rec_forward.1} parent=11 // pred_check
        %p603 = pneg %p459
      $region82: #{llmcl4rec_forward.1} parent=11 // pred_check_branch
        %605 = sbr.rel (%p603) target = $region84
      $region83: #{llmcl4rec_forward.1} parent=11 // pred_region
        _
      $region84: #{llmcl4rec_forward.1} parent=11 // pred_fallthru
        _
    $region12: #{llmcl4rec_forward.1} parent=5 // pred_fallthru
      _
    %p606 = scmp.lt.s32.totalorder %s29, 2
    // Predicated region
    $region85: #{llmcl4rec_forward.1} parent=5 // pred_check
      %p607 = pneg %p606
    $region86: #{llmcl4rec_forward.1} parent=5 // pred_check_branch
      %609 = sbr.rel (%p607) target = $region88
    $region87: #{llmcl4rec_forward.1} parent=5 // pred_region
      // Predicated region
      $region89: #{llmcl4rec_forward.1} parent=87 // pred_check
        %p610 = pneg %p49
      $region90: #{llmcl4rec_forward.1} parent=87 // pred_check_branch
        %612 = sbr.rel (%p610) target = $region92
      $region91: #{llmcl4rec_forward.1} parent=87 // pred_region
        %p613 = scmp.lt.s32.totalorder %s29, 1
        %s614 = scalar_select %p613, %s29, 1
        %s615 = smul.addr %s614, 8
        %s616 = scalar_lea.vmem %s0, %s615
      $region92: #{llmcl4rec_forward.1} parent=87 // pred_fallthru
        _
      // Predicated region
      $region93: #{llmcl4rec_forward.1} parent=87 // pred_check
        %p617 = pneg %p75
      $region94: #{llmcl4rec_forward.1} parent=87 // pred_check_branch
        %619 = sbr.rel (%p617) target = $region96
      $region95: #{llmcl4rec_forward.1} parent=87 // pred_region
        %p620 = scmp.lt.s32.totalorder %s29, 1
        %s621 = scalar_select %p620, %s29, 1
        %s622 = smul.addr %s621, 8
        %s623 = scalar_lea.vmem %s1, %s622
      $region96: #{llmcl4rec_forward.1} parent=87 // pred_fallthru
        _
    $region88: #{llmcl4rec_forward.1} parent=5 // pred_fallthru
      _
    %p624 = scmp.le.s32.totalorder 1, %s29
    %p625 = scmp.lt.s32.totalorder %s29, 3
    %p626 = pnand %p624, %p625
    %p627 = pneg %p626
    // Predicated region
    $region97: #{llmcl4rec_forward.1} parent=5 // pred_check
      _
    $region98: #{llmcl4rec_forward.1} parent=5 // pred_check_branch
      %629 = sbr.rel (%p626) target = $region100
    $region99: #{llmcl4rec_forward.1} parent=5 // pred_region
      %s630 = ssub.s32 %s29, 1
      %p631 = scmp.lt.s32.totalorder %s34, 1
      %s632 = scalar_select %p631, %s34, 1
      %s633 = smul.addr %s632, 8
      %s634 = scalar_lea.vmem %s0, %s633
      %p635 = pneg %p55
      %p636 = pneg %p52
      %p637 = scmp.lt.s32.totalorder %s34, 1
      %s638 = scalar_select %p637, %s34, 1
      %s639 = smul.addr %s638, 8
      %s640 = scalar_lea.vmem %s1, %s639
      %p641 = pneg %p81
      %p642 = pneg %p78
      %p643 = pneg %p102
      %p644 = pneg %p99
      %p645 = pneg %p123
      %p646 = pneg %p120
      %p647 = pneg %p144
      %p648 = pneg %p141
      %p649 = pneg %p165
      %p650 = pneg %p162
      %p651 = pneg %p186
      %p652 = pneg %p183
      %p653 = pneg %p207
      %p654 = pneg %p204
      %p655 = pneg %p228
      %p656 = pneg %p225
      %p657 = pneg %p249
      %p658 = pneg %p246
      %p659 = pneg %p270
      %p660 = pneg %p267
      %p661 = pneg %p291
      %p662 = pneg %p288
      %p663 = pneg %p312
      %p664 = pneg %p309
      %p665 = pneg %p333
      %p666 = pneg %p330
      %p667 = pneg %p354
      %p668 = pneg %p351
      %p669 = pneg %p375
      %p670 = pneg %p372
      %p671 = pneg %p396
      %p672 = pneg %p393
      %p673 = pneg %p417
      %p674 = pneg %p414
      %p675 = pneg %p438
      %p676 = pneg %p435
      %p677 = pneg %p459
      %p678 = pneg %p456
      %p679 = pneg %p485
      %p680 = pneg %p482
      %p681 = scmp.lt.s32.totalorder %s34, 1
      %s682 = scalar_select %p681, %s34, 1
      %s683 = smul.addr %s682, 8
      %s684 = scalar_lea.vmem %s20, %s683
      %p685 = pneg %p511
      %p686 = pneg %p508
      %p687 = scmp.lt.s32.totalorder %s34, 1
      %s688 = scalar_select %p687, %s34, 1
      %s689 = smul.addr %s688, 8
      %s690 = scalar_lea.vmem %s21, %s689
      %p691 = pneg %p537
      %p692 = pneg %p534
      %p693 = scmp.lt.s32.totalorder %s34, 1
      %s694 = scalar_select %p693, %s34, 1
      %s695 = smul.addr %s694, 8
      %s696 = scalar_lea.vmem %s22, %s695
      %p697 = scmp.lt.s32.totalorder %s34, 1
      %s698 = scalar_select %p697, %s34, 1
      %s699 = smul.addr %s698, 8
      %s700 = scalar_lea.vmem %s0, %s699
      %p701 = scmp.lt.s32.totalorder %s34, 1
      %s702 = scalar_select %p701, %s34, 1
      %s703 = smul.addr %s702, 8
      %s704 = scalar_lea.vmem %s1, %s703
      %p705 = scmp.lt.s32.totalorder %s34, 1
      %s706 = scalar_select %p705, %s34, 1
      %s707 = smul.addr %s706, 8
      %s708 = scalar_lea.vmem %s20, %s707
      %p709 = scmp.lt.s32.totalorder %s34, 1
      %s710 = scalar_select %p709, %s34, 1
      %s711 = smul.addr %s710, 8
      %s712 = scalar_lea.vmem %s21, %s711
      %p713 = scmp.lt.s32.totalorder %s34, 1
      %s714 = scalar_select %p713, %s34, 1
      %s715 = smul.addr %s714, 8
      %s716 = scalar_lea.vmem %s22, %s715
      %v717 = vld [vmem:[%s700] sm:$0xff]
      %v718 = vld [vmem:[%s704] sm:$0xff]
      %v719 = vld [vmem:[%s4] sm:$0xff]
      %v720 = vld [vmem:[%s4 + $0x8] sm:$0xff]
      %v721 = vld [vmem:[%s4 + $0x10] sm:$0xff]
      %v722 = vld [vmem:[%s4 + $0x18] sm:$0xff]
      %v723 = vld [vmem:[%s4 + $0x20] sm:$0xff]
      %v724 = vld [vmem:[%s4 + $0x28] sm:$0xff]
      %v725 = vld [vmem:[%s4 + $0x30] sm:$0xff]
      %v726 = vld [vmem:[%s4 + $0x38] sm:$0xff]
      %v727 = vld [vmem:[%s5] sm:$0x1]
      %v729 = vlaneseq
      %v730 = vshrl.u32 %v729, 7
      %v731 = vsub.s32 0, %v730
      %v732 = vrot.slane %v727, %v731
      %vm734 = vcmask 523264
      %v736 = vsel %vm734, %v717, 0
      %v739 = vsel %vm734, %v718, 0
      %741 = vmatprep.subr.mxu0 0.0
      %742 = vmatpush1.msra.mxu0 %v719
      %743 = vmatprep.subr.mxu0 0.0
      %744 = vmatpush1.msra.mxu0 %v720
      %745 = vmatprep.subr.mxu0 0.0
      %746 = vmatpush1.msra.mxu0 %v721
      %747 = vmatprep.subr.mxu0 0.0
      %748 = vmatpush1.msra.mxu0 %v722
      %749 = vmatprep.subr.mxu0 0.0
      %750 = vmatpush1.msra.mxu0 %v723
      %751 = vmatprep.subr.mxu0 0.0
      %752 = vmatpush1.msra.mxu0 %v724
      %753 = vmatprep.subr.mxu0 0.0
      %754 = vmatpush1.msra.mxu0 %v725
      %755 = vmatprep.subr.mxu0 0.0
      %756 = vmatpush1.msra.mxu0 %v726
      %757 = vmatprep.subr.mxu0 0.0
      %758 = vmatpush1.msra.mxu0 0.0
      %759 = vmatprep.subr.mxu0 0.0
      %760 = vmatpush1.msra.mxu0 0.0
      %761 = vmatprep.subr.mxu0 0.0
      %762 = vmatpush1.msra.mxu0 0.0
      %763 = vmatprep.subr.mxu0 0.0
      %764 = vmatpush1.msra.mxu0 0.0
      %765 = vmatprep.subr.mxu0 0.0
      %766 = vmatpush1.msra.mxu0 0.0
      %767 = vmatprep.subr.mxu0 0.0
      %768 = vmatpush1.msra.mxu0 0.0
      %769 = vmatprep.subr.mxu0 0.0
      %770 = vmatpush1.msra.mxu0 0.0
      %771 = vmatprep.subr.mxu0 0.0
      %772 = vmatpush1.msra.mxu0 0.0
      %773 = vmatprep.subr.mxu0 0.0
      %774 = vmatpush1.msra.mxu0 0.0
      %775 = vmatprep.subr.mxu0 0.0
      %776 = vmatpush1.msra.mxu0 0.0
      %777 = vmatprep.subr.mxu0 0.0
      %778 = vmatpush1.msra.mxu0 0.0
      %779 = vmatprep.subr.mxu0 0.0
      %780 = vmatpush1.msra.mxu0 0.0
      %781 = vmatprep.subr.mxu0 0.0
      %782 = vmatpush1.msra.mxu0 0.0
      %783 = vmatprep.subr.mxu0 0.0
      %784 = vmatpush1.msra.mxu0 0.0
      %785 = vmatprep.subr.mxu0 0.0
      %786 = vmatpush1.msra.mxu0 0.0
      %787 = vmatprep.subr.mxu0 0.0
      %788 = vmatpush1.msra.mxu0 0.0
      %789 = vmatprep.subr.mxu0 0.0
      %790 = vmatpush1.msra.mxu0 0.0
      %791 = vmatprep.subr.mxu0 0.0
      %792 = vmatpush1.msra.mxu0 0.0
      %793 = vmatprep.subr.mxu0 0.0
      %794 = vmatpush1.msra.mxu0 0.0
      %795 = vmatprep.subr.mxu0 0.0
      %796 = vmatpush1.msra.mxu0 0.0
      %797 = vmatprep.subr.mxu0 0.0
      %798 = vmatpush1.msra.mxu0 0.0
      %799 = vmatprep.subr.mxu0 0.0
      %800 = vmatpush1.msra.mxu0 0.0
      %801 = vmatprep.subr.mxu0 0.0
      %802 = vmatpush1.msra.mxu0 0.0
      %803 = vmatprep.subr.mxu0 0.0
      %804 = vmatpush1.msra.mxu0 0.0
      %805 = vmatprep.mubr.f32.mxu0 0.0
      %806 = vmatmul.mubr.f32.gmra.mrb[0].mxu0 %v736
      %v807 = vpop.f32.mrb[0].mxu0
      %v808 = vadd.f32 %v732, %v807
      %v809 = vpop.f32.mrb[0].mxu0
      %810 = vmatprep.mubr.f32.mxu0 0.0
      %811 = vmatmul.mubr.f32.gmra.mrb[0].mxu0 %v739
      %v812 = vpop.f32.mrb[0].mxu0
      %v813 = vadd.f32 %v732, %v812
      %v814 = vpop.f32.mrb[0].mxu0
      %815 = vdwg.mxu0
      %v816 = vld [vmem:[%s6] sm:$0xff]
      %v817 = vld [vmem:[%s6 + $0x8] sm:$0xff]
      %v818 = vld [vmem:[%s6 + $0x10] sm:$0xff]
      %v819 = vld [vmem:[%s6 + $0x18] sm:$0xff]
      %v820 = vld [vmem:[%s7] sm:$0x1]
      %v822 = vlaneseq
      %v823 = vshrl.u32 %v822, 7
      %v824 = vsub.s32 0, %v823
      %v825 = vrot.slane %v820, %v824
      %vm827 = vcmask 261120
      %v829 = vsel %vm827, %v808, 0
      %v832 = vsel %vm827, %v813, 0
      %834 = vmatprep.subr.mxu0 0.0
      %835 = vmatpush1.msra.mxu0 %v816
      %836 = vmatprep.subr.mxu0 0.0
      %837 = vmatpush1.msra.mxu0 %v817
      %838 = vmatprep.subr.mxu0 0.0
      %839 = vmatpush1.msra.mxu0 %v818
      %840 = vmatprep.subr.mxu0 0.0
      %841 = vmatpush1.msra.mxu0 %v819
      %842 = vmatprep.subr.mxu0 0.0
      %843 = vmatpush1.msra.mxu0 0.0
      %844 = vmatprep.subr.mxu0 0.0
      %845 = vmatpush1.msra.mxu0 0.0
      %846 = vmatprep.subr.mxu0 0.0
      %847 = vmatpush1.msra.mxu0 0.0
      %848 = vmatprep.subr.mxu0 0.0
      %849 = vmatpush1.msra.mxu0 0.0
      %850 = vmatprep.subr.mxu0 0.0
      %851 = vmatpush1.msra.mxu0 0.0
      %852 = vmatprep.subr.mxu0 0.0
      %853 = vmatpush1.msra.mxu0 0.0
      %854 = vmatprep.subr.mxu0 0.0
      %855 = vmatpush1.msra.mxu0 0.0
      %856 = vmatprep.subr.mxu0 0.0
      %857 = vmatpush1.msra.mxu0 0.0
      %858 = vmatprep.subr.mxu0 0.0
      %859 = vmatpush1.msra.mxu0 0.0
      %860 = vmatprep.subr.mxu0 0.0
      %861 = vmatpush1.msra.mxu0 0.0
      %862 = vmatprep.subr.mxu0 0.0
      %863 = vmatpush1.msra.mxu0 0.0
      %864 = vmatprep.subr.mxu0 0.0
      %865 = vmatpush1.msra.mxu0 0.0
      %866 = vmatprep.subr.mxu0 0.0
      %867 = vmatpush1.msra.mxu0 0.0
      %868 = vmatprep.subr.mxu0 0.0
      %869 = vmatpush1.msra.mxu0 0.0
      %870 = vmatprep.subr.mxu0 0.0
      %871 = vmatpush1.msra.mxu0 0.0
      %872 = vmatprep.subr.mxu0 0.0
      %873 = vmatpush1.msra.mxu0 0.0
      %874 = vmatprep.subr.mxu0 0.0
      %875 = vmatpush1.msra.mxu0 0.0
      %876 = vmatprep.subr.mxu0 0.0
      %877 = vmatpush1.msra.mxu0 0.0
      %878 = vmatprep.subr.mxu0 0.0
      %879 = vmatpush1.msra.mxu0 0.0
      %880 = vmatprep.subr.mxu0 0.0
      %881 = vmatpush1.msra.mxu0 0.0
      %882 = vmatprep.subr.mxu0 0.0
      %883 = vmatpush1.msra.mxu0 0.0
      %884 = vmatprep.subr.mxu0 0.0
      %885 = vmatpush1.msra.mxu0 0.0
      %886 = vmatprep.subr.mxu0 0.0
      %887 = vmatpush1.msra.mxu0 0.0
      %888 = vmatprep.subr.mxu0 0.0
      %889 = vmatpush1.msra.mxu0 0.0
      %890 = vmatprep.subr.mxu0 0.0
      %891 = vmatpush1.msra.mxu0 0.0
      %892 = vmatprep.subr.mxu0 0.0
      %893 = vmatpush1.msra.mxu0 0.0
      %894 = vmatprep.subr.mxu0 0.0
      %895 = vmatpush1.msra.mxu0 0.0
      %896 = vmatprep.subr.mxu0 0.0
      %897 = vmatpush1.msra.mxu0 0.0
      %898 = vmatprep.mubr.f32.mxu0 0.0
      %899 = vmatmul.mubr.f32.gmra.mrb[0].mxu0 %v829
      %v900 = vpop.f32.mrb[0].mxu0
      %v901 = vadd.f32 %v825, %v900
      %v902 = vpop.f32.mrb[0].mxu0
      %903 = vmatprep.mubr.f32.mxu0 0.0
      %904 = vmatmul.mubr.f32.gmra.mrb[0].mxu0 %v832
      %v905 = vpop.f32.mrb[0].mxu0
      %v906 = vadd.f32 %v825, %v905
      %v907 = vpop.f32.mrb[0].mxu0
      %908 = vdwg.mxu0
      %v909 = vmul.f32 %v901, %v901
      %v910 = vmul.f32 %v906, %v906
      %v911 = vmul.f32 %v901, %v909
      %v912 = vmul.f32 %v906, %v910
      %v913 = vmul.f32 %v911, 0.044715
      %v914 = vmul.f32 %v912, 0.044715
      %v915 = vadd.f32 %v901, %v913
      %v916 = vadd.f32 %v906, %v914
      %v917 = vmul.f32 %v915, 0.7978846
      %v918 = vmul.f32 %v916, 0.7978846
      %v919 = vtanh.pop %v917
      %v920 = vtanh.pop %v918
      %v921 = vadd.f32 %v919, 1.0
      %v922 = vadd.f32 %v920, 1.0
      %v923 = vmul.f32 %v921, 0.5
      %v924 = vmul.f32 %v922, 0.5
      %v925 = vmul.f32 %v901, %v923
      %v926 = vmul.f32 %v906, %v924
      %927 = vst.msk [vmem:[%s708] sm:$0xff] %vm827, %v925
      %928 = vst.msk [vmem:[%s716] sm:$0xff] %vm827, %v926
      %s929 = scalar_lea.vmem %s2, %s34
      %v930 = vld [vmem:[%s929] sm:$0x1]
      %v931 = vlaneseq
      %v932 = vshrl.u32 %v931, 7
      %v933 = vlaneseq
      %v934 = vand.u32 %v933, 127
      %vm935 = vcmp.ne.f32.partialorder %v930, 0.0
      %v936 = vsel %vm935, 1, 0
      %v937 = vlaneseq
      %v938 = vshrl.u32 %v937, 7
      %v939 = vsub.s32 0, %v938
      %v940 = vrot.slane %v936, %v939
      %vm941 = vcmp.eq.s32.totalorder %v940, 1
      %vm942 = vcmp.le.s32.totalorder %v934, %v932
      %vm943 = vmand %vm942, %vm941
      %v944 = vsel %vm943, 0.0, -1e+09
      %v945 = vld [vmem:[%s3] sm:$0xff]
      %v946 = vadd.f32 %v925, %v945
      %v947 = vld [vmem:[%s8] sm:$0x1]
      %v948 = vld [vmem:[%s9] sm:$0x1]
      %v949 = vsel %vm827, %v946, 0.0
      %950 = vadd.xlane.f32.xlu0 %v949
      %v951 = vpop.xlane.xlu0 %950
      %v952 = vrcp.pop 32.0
      %v953 = vmul.f32 %v951, %v952
      %v954 = vsub.f32 %v946, %v953
      %v955 = vmul.f32 %v954, %v954
      %v956 = vsel %vm827, %v955, 0.0
      %957 = vadd.xlane.f32.xlu0 %v956
      %v958 = vpop.xlane.xlu0 %957
      %v959 = vmul.f32 %v958, %v952
      %v960 = vadd.f32 %v959, 1e-05
      %v961 = vrsqrt.pop %v960
      %v962 = vmul.f32 %v954, %v961
      %v964 = vlaneseq
      %v965 = vshrl.u32 %v964, 7
      %v966 = vsub.s32 0, %v965
      %v967 = vrot.slane %v947, %v966
      %v969 = vmul.f32 %v962, %v967
      %v971 = vlaneseq
      %v972 = vshrl.u32 %v971, 7
      %v973 = vsub.s32 0, %v972
      %v974 = vrot.slane %v948, %v973
      %v976 = vadd.f32 %v969, %v974
      %v977 = vld [vmem:[%s10] sm:$0xff]
      %v978 = vld [vmem:[%s10 + $0x8] sm:$0xff]
      %v979 = vld [vmem:[%s10 + $0x10] sm:$0xff]
      %v980 = vld [vmem:[%s10 + $0x18] sm:$0xff]
      %v981 = vld [vmem:[%s11] sm:$0x1]
      %v983 = vlaneseq
      %v984 = vshrl.u32 %v983, 7
      %v985 = vsub.s32 0, %v984
      %v986 = vrot.slane %v981, %v985
      %v989 = vsel %vm827, %v976, 0
      %991 = vmatprep.subr.mxu0 0.0
      %992 = vmatpush1.msra.mxu0 %v977
      %993 = vmatprep.subr.mxu0 0.0
      %994 = vmatpush1.msra.mxu0 %v978
      %995 = vmatprep.subr.mxu0 0.0
      %996 = vmatpush1.msra.mxu0 %v979
      %997 = vmatprep.subr.mxu0 0.0
      %998 = vmatpush1.msra.mxu0 %v980
      %999 = vmatprep.subr.mxu0 0.0
      %1000 = vmatpush1.msra.mxu0 0.0
      %1001 = vmatprep.subr.mxu0 0.0
      %1002 = vmatpush1.msra.mxu0 0.0
      %1003 = vmatprep.subr.mxu0 0.0
      %1004 = vmatpush1.msra.mxu0 0.0
      %1005 = vmatprep.subr.mxu0 0.0
      %1006 = vmatpush1.msra.mxu0 0.0
      %1007 = vmatprep.subr.mxu0 0.0
      %1008 = vmatpush1.msra.mxu0 0.0
      %1009 = vmatprep.subr.mxu0 0.0
      %1010 = vmatpush1.msra.mxu0 0.0
      %1011 = vmatprep.subr.mxu0 0.0
      %1012 = vmatpush1.msra.mxu0 0.0
      %1013 = vmatprep.subr.mxu0 0.0
      %1014 = vmatpush1.msra.mxu0 0.0
      %1015 = vmatprep.subr.mxu0 0.0
      %1016 = vmatpush1.msra.mxu0 0.0
      %1017 = vmatprep.subr.mxu0 0.0
      %1018 = vmatpush1.msra.mxu0 0.0
      %1019 = vmatprep.subr.mxu0 0.0
      %1020 = vmatpush1.msra.mxu0 0.0
      %1021 = vmatprep.subr.mxu0 0.0
      %1022 = vmatpush1.msra.mxu0 0.0
      %1023 = vmatprep.subr.mxu0 0.0
      %1024 = vmatpush1.msra.mxu0 0.0
      %1025 = vmatprep.subr.mxu0 0.0
      %1026 = vmatpush1.msra.mxu0 0.0
      %1027 = vmatprep.subr.mxu0 0.0
      %1028 = vmatpush1.msra.mxu0 0.0
      %1029 = vmatprep.subr.mxu0 0.0
      %1030 = vmatpush1.msra.mxu0 0.0
      %1031 = vmatprep.subr.mxu0 0.0
      %1032 = vmatpush1.msra.mxu0 0.0
      %1033 = vmatprep.subr.mxu0 0.0
      %1034 = vmatpush1.msra.mxu0 0.0
      %1035 = vmatprep.subr.mxu0 0.0
      %1036 = vmatpush1.msra.mxu0 0.0
      %1037 = vmatprep.subr.mxu0 0.0
      %1038 = vmatpush1.msra.mxu0 0.0
      %1039 = vmatprep.subr.mxu0 0.0
      %1040 = vmatpush1.msra.mxu0 0.0
      %1041 = vmatprep.subr.mxu0 0.0
      %1042 = vmatpush1.msra.mxu0 0.0
      %1043 = vmatprep.subr.mxu0 0.0
      %1044 = vmatpush1.msra.mxu0 0.0
      %1045 = vmatprep.subr.mxu0 0.0
      %1046 = vmatpush1.msra.mxu0 0.0
      %1047 = vmatprep.subr.mxu0 0.0
      %1048 = vmatpush1.msra.mxu0 0.0
      %1049 = vmatprep.subr.mxu0 0.0
      %1050 = vmatpush1.msra.mxu0 0.0
      %1051 = vmatprep.subr.mxu0 0.0
      %1052 = vmatpush1.msra.mxu0 0.0
      %1053 = vmatprep.subr.mxu0 0.0
      %1054 = vmatpush1.msra.mxu0 0.0
      %1055 = vmatprep.mubr.f32.mxu0 0.0
      %1056 = vmatmul.mubr.f32.gmra.mrb[0].mxu0 %v989
      %v1057 = vpop.f32.mrb[0].mxu0
      %v1058 = vadd.f32 %v986, %v1057
      %v1059 = vpop.f32.mrb[0].mxu0
      %1060 = vdwg.mxu0
      %1062 = vrot.lane.b32.xlu0 %v1058, 112
      %v1063 = vpop.permute.xlu0 %1062
      %v1065 = vcombine.high %v1058, 0.0
      %v1067 = vunpack.c.l.s4 1983009808
      %v1068 = vunpack.c.0.s8 %v1067
      %v1069 = vlaneseq
      %v1070 = vshrl.u32 %v1069, 7
      %v1071 = vsub.s32 %v1068, %v1070
      %v1072 = vrot.slane %v1058, %v1071
      %v1074 = vunpack.c.l.s4 1983009808
      %v1075 = vunpack.c.0.s8 %v1074
      %v1076 = vlaneseq
      %v1077 = vshrl.u32 %v1076, 7
      %v1078 = vsub.s32 %v1075, %v1077
      %v1079 = vrot.slane %v1065, %v1078
      %v1080 = vcombine.high %v1063, 0.0
      %v1082 = vunpack.c.l.s4 1983009808
      %v1083 = vunpack.c.0.s8 %v1082
      %v1084 = vlaneseq
      %v1085 = vshrl.u32 %v1084, 7
      %v1086 = vsub.s32 %v1083, %v1085
      %v1087 = vrot.slane %v1063, %v1086
      %v1089 = vunpack.c.l.s4 1983009808
      %v1090 = vunpack.c.0.s8 %v1089
      %v1091 = vlaneseq
      %v1092 = vshrl.u32 %v1091, 7
      %v1093 = vsub.s32 %v1090, %v1092
      %v1094 = vrot.slane %v1080, %v1093
      %v1095 = vcombine.low %v1072, %v1087
      %v1096 = vcombine.high %v1072, %v1087
      %v1098 = vunpack.c.l.s4 1934713408
      %v1099 = vunpack.c.0.s8 %v1098
      %v1100 = vlaneseq
      %v1101 = vshrl.u32 %v1100, 7
      %v1102 = vsub.s32 %v1099, %v1101
      %v1103 = vrot.slane %v1095, %v1102
      %v1105 = vunpack.c.l.s4 1934713408
      %v1106 = vunpack.c.0.s8 %v1105
      %v1107 = vlaneseq
      %v1108 = vshrl.u32 %v1107, 7
      %v1109 = vsub.s32 %v1106, %v1108
      %v1110 = vrot.slane %v1096, %v1109
      %v1111 = vcombine.low %v1079, %v1094
      %v1112 = vcombine.high %v1079, %v1094
      %v1114 = vunpack.c.l.s4 1934713408
      %v1115 = vunpack.c.0.s8 %v1114
      %v1116 = vlaneseq
      %v1117 = vshrl.u32 %v1116, 7
      %v1118 = vsub.s32 %v1115, %v1117
      %v1119 = vrot.slane %v1111, %v1118
      %v1121 = vunpack.c.l.s4 1934713408
      %v1122 = vunpack.c.0.s8 %v1121
      %v1123 = vlaneseq
      %v1124 = vshrl.u32 %v1123, 7
      %v1125 = vsub.s32 %v1122, %v1124
      %v1126 = vrot.slane %v1112, %v1125
      %v1127 = vcombine.high %v1103, 0.0
      %v1128 = vcombine.high %v1110, 0.0
      %v1129 = vcombine.high %v1119, 0.0
      %v1130 = vcombine.high %v1126, 0.0
      %1131 = vrot.lane.b32.xlu0 %v1058, 96
      %v1132 = vpop.permute.xlu0 %1131
      %1133 = vrot.lane.b32.xlu0 %v1063, 96
      %v1134 = vpop.permute.xlu0 %1133
      %v1137 = vcombine.high %v1132, 0.0
      %v1139 = vunpack.c.l.s4 1983009808
      %v1140 = vunpack.c.0.s8 %v1139
      %v1141 = vlaneseq
      %v1142 = vshrl.u32 %v1141, 7
      %v1143 = vsub.s32 %v1140, %v1142
      %v1144 = vrot.slane %v1132, %v1143
      %v1146 = vunpack.c.l.s4 1983009808
      %v1147 = vunpack.c.0.s8 %v1146
      %v1148 = vlaneseq
      %v1149 = vshrl.u32 %v1148, 7
      %v1150 = vsub.s32 %v1147, %v1149
      %v1151 = vrot.slane %v1137, %v1150
      %v1152 = vcombine.high %v1134, 0.0
      %v1154 = vunpack.c.l.s4 1983009808
      %v1155 = vunpack.c.0.s8 %v1154
      %v1156 = vlaneseq
      %v1157 = vshrl.u32 %v1156, 7
      %v1158 = vsub.s32 %v1155, %v1157
      %v1159 = vrot.slane %v1134, %v1158
      %v1161 = vunpack.c.l.s4 1983009808
      %v1162 = vunpack.c.0.s8 %v1161
      %v1163 = vlaneseq
      %v1164 = vshrl.u32 %v1163, 7
      %v1165 = vsub.s32 %v1162, %v1164
      %v1166 = vrot.slane %v1152, %v1165
      %v1167 = vcombine.low %v1144, %v1159
      %v1168 = vcombine.high %v1144, %v1159
      %v1170 = vunpack.c.l.s4 1934713408
      %v1171 = vunpack.c.0.s8 %v1170
      %v1172 = vlaneseq
      %v1173 = vshrl.u32 %v1172, 7
      %v1174 = vsub.s32 %v1171, %v1173
      %v1175 = vrot.slane %v1167, %v1174
      %v1177 = vunpack.c.l.s4 1934713408
      %v1178 = vunpack.c.0.s8 %v1177
      %v1179 = vlaneseq
      %v1180 = vshrl.u32 %v1179, 7
      %v1181 = vsub.s32 %v1178, %v1180
      %v1182 = vrot.slane %v1168, %v1181
      %v1183 = vcombine.low %v1151, %v1166
      %v1184 = vcombine.high %v1151, %v1166
      %v1186 = vunpack.c.l.s4 1934713408
      %v1187 = vunpack.c.0.s8 %v1186
      %v1188 = vlaneseq
      %v1189 = vshrl.u32 %v1188, 7
      %v1190 = vsub.s32 %v1187, %v1189
      %v1191 = vrot.slane %v1183, %v1190
      %v1193 = vunpack.c.l.s4 1934713408
      %v1194 = vunpack.c.0.s8 %v1193
      %v1195 = vlaneseq
      %v1196 = vshrl.u32 %v1195, 7
      %v1197 = vsub.s32 %v1194, %v1196
      %v1198 = vrot.slane %v1184, %v1197
      %v1199 = vcombine.high %v1175, 0.0
      %v1200 = vcombine.high %v1182, 0.0
      %v1201 = vcombine.high %v1191, 0.0
      %v1202 = vcombine.high %v1198, 0.0
      %1203 = vrot.lane.b32.xlu0 %v1058, 64
      %v1204 = vpop.permute.xlu0 %1203
      %1205 = vrot.lane.b32.xlu0 %v1063, 64
      %v1206 = vpop.permute.xlu0 %1205
      %v1209 = vcombine.high %v1204, 0.0
      %v1211 = vunpack.c.l.s4 1983009808
      %v1212 = vunpack.c.0.s8 %v1211
      %v1213 = vlaneseq
      %v1214 = vshrl.u32 %v1213, 7
      %v1215 = vsub.s32 %v1212, %v1214
      %v1216 = vrot.slane %v1204, %v1215
      %v1218 = vunpack.c.l.s4 1983009808
      %v1219 = vunpack.c.0.s8 %v1218
      %v1220 = vlaneseq
      %v1221 = vshrl.u32 %v1220, 7
      %v1222 = vsub.s32 %v1219, %v1221
      %v1223 = vrot.slane %v1209, %v1222
      %v1224 = vcombine.high %v1206, 0.0
      %v1226 = vunpack.c.l.s4 1983009808
      %v1227 = vunpack.c.0.s8 %v1226
      %v1228 = vlaneseq
      %v1229 = vshrl.u32 %v1228, 7
      %v1230 = vsub.s32 %v1227, %v1229
      %v1231 = vrot.slane %v1206, %v1230
      %v1233 = vunpack.c.l.s4 1983009808
      %v1234 = vunpack.c.0.s8 %v1233
      %v1235 = vlaneseq
      %v1236 = vshrl.u32 %v1235, 7
      %v1237 = vsub.s32 %v1234, %v1236
      %v1238 = vrot.slane %v1224, %v1237
      %v1239 = vcombine.low %v1216, %v1231
      %v1240 = vcombine.high %v1216, %v1231
      %v1242 = vunpack.c.l.s4 1934713408
      %v1243 = vunpack.c.0.s8 %v1242
      %v1244 = vlaneseq
      %v1245 = vshrl.u32 %v1244, 7
      %v1246 = vsub.s32 %v1243, %v1245
      %v1247 = vrot.slane %v1239, %v1246
      %v1249 = vunpack.c.l.s4 1934713408
      %v1250 = vunpack.c.0.s8 %v1249
      %v1251 = vlaneseq
      %v1252 = vshrl.u32 %v1251, 7
      %v1253 = vsub.s32 %v1250, %v1252
      %v1254 = vrot.slane %v1240, %v1253
      %v1255 = vcombine.low %v1223, %v1238
      %v1256 = vcombine.high %v1223, %v1238
      %v1258 = vunpack.c.l.s4 1934713408
      %v1259 = vunpack.c.0.s8 %v1258
      %v1260 = vlaneseq
      %v1261 = vshrl.u32 %v1260, 7
      %v1262 = vsub.s32 %v1259, %v1261
      %v1263 = vrot.slane %v1255, %v1262
      %v1265 = vunpack.c.l.s4 1934713408
      %v1266 = vunpack.c.0.s8 %v1265
      %v1267 = vlaneseq
      %v1268 = vshrl.u32 %v1267, 7
      %v1269 = vsub.s32 %v1266, %v1268
      %v1270 = vrot.slane %v1256, %v1269
      %v1271 = vcombine.high %v1247, 0.0
      %v1272 = vcombine.high %v1254, 0.0
      %v1273 = vcombine.high %v1263, 0.0
      %v1274 = vcombine.high %v1270, 0.0
      %v1275 = vcombine.low %v1103, %v1110
      %v1277 = vunpack.c.l.s4 1983009808
      %v1278 = vunpack.c.0.s8 %v1277
      %v1279 = vlaneseq
      %v1280 = vshrl.u32 %v1279, 7
      %v1281 = vsub.s32 %v1278, %v1280
      %v1282 = vrot.slane %v1275, %v1281
      %v1283 = vcombine.low %v1127, %v1128
      %v1285 = vunpack.c.l.s4 1983009808
      %v1286 = vunpack.c.0.s8 %v1285
      %v1287 = vlaneseq
      %v1288 = vshrl.u32 %v1287, 7
      %v1289 = vsub.s32 %v1286, %v1288
      %v1290 = vrot.slane %v1283, %v1289
      %v1291 = vcombine.low %v1119, %v1126
      %v1293 = vunpack.c.l.s4 1983009808
      %v1294 = vunpack.c.0.s8 %v1293
      %v1295 = vlaneseq
      %v1296 = vshrl.u32 %v1295, 7
      %v1297 = vsub.s32 %v1294, %v1296
      %v1298 = vrot.slane %v1291, %v1297
      %v1299 = vcombine.low %v1129, %v1130
      %v1301 = vunpack.c.l.s4 1983009808
      %v1302 = vunpack.c.0.s8 %v1301
      %v1303 = vlaneseq
      %v1304 = vshrl.u32 %v1303, 7
      %v1305 = vsub.s32 %v1302, %v1304
      %v1306 = vrot.slane %v1299, %v1305
      %v1307 = vcombine.low %v1282, %v1290
      %v1309 = vunpack.c.l.s4 1934713408
      %v1310 = vunpack.c.0.s8 %v1309
      %v1311 = vlaneseq
      %v1312 = vshrl.u32 %v1311, 7
      %v1313 = vsub.s32 %v1310, %v1312
      %v1314 = vrot.slane %v1307, %v1313
      %v1315 = vcombine.low %v1298, %v1306
      %v1317 = vunpack.c.l.s4 1934713408
      %v1318 = vunpack.c.0.s8 %v1317
      %v1319 = vlaneseq
      %v1320 = vshrl.u32 %v1319, 7
      %v1321 = vsub.s32 %v1318, %v1320
      %v1322 = vrot.slane %v1315, %v1321
      %v1323 = vcombine.low %v1314, %v1322
      %v1324 = vcombine.high %v1314, %v1322
      %v1325 = vcombine.low %v1175, %v1182
      %v1327 = vunpack.c.l.s4 1983009808
      %v1328 = vunpack.c.0.s8 %v1327
      %v1329 = vlaneseq
      %v1330 = vshrl.u32 %v1329, 7
      %v1331 = vsub.s32 %v1328, %v1330
      %v1332 = vrot.slane %v1325, %v1331
      %v1333 = vcombine.low %v1199, %v1200
      %v1335 = vunpack.c.l.s4 1983009808
      %v1336 = vunpack.c.0.s8 %v1335
      %v1337 = vlaneseq
      %v1338 = vshrl.u32 %v1337, 7
      %v1339 = vsub.s32 %v1336, %v1338
      %v1340 = vrot.slane %v1333, %v1339
      %v1341 = vcombine.low %v1191, %v1198
      %v1343 = vunpack.c.l.s4 1983009808
      %v1344 = vunpack.c.0.s8 %v1343
      %v1345 = vlaneseq
      %v1346 = vshrl.u32 %v1345, 7
      %v1347 = vsub.s32 %v1344, %v1346
      %v1348 = vrot.slane %v1341, %v1347
      %v1349 = vcombine.low %v1201, %v1202
      %v1351 = vunpack.c.l.s4 1983009808
      %v1352 = vunpack.c.0.s8 %v1351
      %v1353 = vlaneseq
      %v1354 = vshrl.u32 %v1353, 7
      %v1355 = vsub.s32 %v1352, %v1354
      %v1356 = vrot.slane %v1349, %v1355
      %v1357 = vcombine.low %v1332, %v1340
      %v1359 = vunpack.c.l.s4 1934713408
      %v1360 = vunpack.c.0.s8 %v1359
      %v1361 = vlaneseq
      %v1362 = vshrl.u32 %v1361, 7
      %v1363 = vsub.s32 %v1360, %v1362
      %v1364 = vrot.slane %v1357, %v1363
      %v1365 = vcombine.low %v1348, %v1356
      %v1367 = vunpack.c.l.s4 1934713408
      %v1368 = vunpack.c.0.s8 %v1367
      %v1369 = vlaneseq
      %v1370 = vshrl.u32 %v1369, 7
      %v1371 = vsub.s32 %v1368, %v1370
      %v1372 = vrot.slane %v1365, %v1371
      %v1373 = vcombine.low %v1364, %v1372
      %v1374 = vcombine.high %v1364, %v1372
      %v1375 = vcombine.low %v1247, %v1254
      %v1377 = vunpack.c.l.s4 1983009808
      %v1378 = vunpack.c.0.s8 %v1377
      %v1379 = vlaneseq
      %v1380 = vshrl.u32 %v1379, 7
      %v1381 = vsub.s32 %v1378, %v1380
      %v1382 = vrot.slane %v1375, %v1381
      %v1383 = vcombine.low %v1271, %v1272
      %v1385 = vunpack.c.l.s4 1983009808
      %v1386 = vunpack.c.0.s8 %v1385
      %v1387 = vlaneseq
      %v1388 = vshrl.u32 %v1387, 7
      %v1389 = vsub.s32 %v1386, %v1388
      %v1390 = vrot.slane %v1383, %v1389
      %v1391 = vcombine.low %v1263, %v1270
      %v1393 = vunpack.c.l.s4 1983009808
      %v1394 = vunpack.c.0.s8 %v1393
      %v1395 = vlaneseq
      %v1396 = vshrl.u32 %v1395, 7
      %v1397 = vsub.s32 %v1394, %v1396
      %v1398 = vrot.slane %v1391, %v1397
      %v1399 = vcombine.low %v1273, %v1274
      %v1401 = vunpack.c.l.s4 1983009808
      %v1402 = vunpack.c.0.s8 %v1401
      %v1403 = vlaneseq
      %v1404 = vshrl.u32 %v1403, 7
      %v1405 = vsub.s32 %v1402, %v1404
      %v1406 = vrot.slane %v1399, %v1405
      %v1407 = vcombine.low %v1382, %v1390
      %v1409 = vunpack.c.l.s4 1934713408
      %v1410 = vunpack.c.0.s8 %v1409
      %v1411 = vlaneseq
      %v1412 = vshrl.u32 %v1411, 7
      %v1413 = vsub.s32 %v1410, %v1412
      %v1414 = vrot.slane %v1407, %v1413
      %v1415 = vcombine.low %v1398, %v1406
      %v1417 = vunpack.c.l.s4 1934713408
      %v1418 = vunpack.c.0.s8 %v1417
      %v1419 = vlaneseq
      %v1420 = vshrl.u32 %v1419, 7
      %v1421 = vsub.s32 %v1418, %v1420
      %v1422 = vrot.slane %v1415, %v1421
      %v1423 = vcombine.low %v1414, %v1422
      %v1424 = vcombine.high %v1414, %v1422
      %vm1425 = vcmask 130048
      %v1427 = vsel %vm1425, %v1323, 0
      %v1430 = vsel %vm1425, %v1373, 0
      %1432 = vmatprep.subr.mxu0 0.0
      %1433 = vmatpush1.xpose.msra.mxu0 %v1430
      %1434 = vmatprep.subr.mxu0 0.0
      %1435 = vmatpush1.xpose.msra.mxu0 0.0
      %1436 = vmatprep.subr.mxu0 0.0
      %1437 = vmatpush1.xpose.msra.mxu0 0.0
      %1438 = vmatprep.subr.mxu0 0.0
      %1439 = vmatpush1.xpose.msra.mxu0 0.0
      %1440 = vmatprep.subr.mxu0 0.0
      %1441 = vmatpush1.xpose.msra.mxu0 0.0
      %1442 = vmatprep.subr.mxu0 0.0
      %1443 = vmatpush1.xpose.msra.mxu0 0.0
      %1444 = vmatprep.subr.mxu0 0.0
      %1445 = vmatpush1.xpose.msra.mxu0 0.0
      %1446 = vmatprep.subr.mxu0 0.0
      %1447 = vmatpush1.xpose.msra.mxu0 0.0
      %1448 = vmatprep.subr.mxu0 0.0
      %1449 = vmatpush1.xpose.msra.mxu0 0.0
      %1450 = vmatprep.subr.mxu0 0.0
      %1451 = vmatpush1.xpose.msra.mxu0 0.0
      %1452 = vmatprep.subr.mxu0 0.0
      %1453 = vmatpush1.xpose.msra.mxu0 0.0
      %1454 = vmatprep.subr.mxu0 0.0
      %1455 = vmatpush1.xpose.msra.mxu0 0.0
      %1456 = vmatprep.subr.mxu0 0.0
      %1457 = vmatpush1.xpose.msra.mxu0 0.0
      %1458 = vmatprep.subr.mxu0 0.0
      %1459 = vmatpush1.xpose.msra.mxu0 0.0
      %1460 = vmatprep.subr.mxu0 0.0
      %1461 = vmatpush1.xpose.msra.mxu0 0.0
      %1462 = vmatprep.subr.mxu0 0.0
      %1463 = vmatpush1.xpose.msra.mxu0 0.0
      %1464 = vmatprep.subr.mxu0 0.0
      %1465 = vmatpush1.xpose.msra.mxu0 0.0
      %1466 = vmatprep.subr.mxu0 0.0
      %1467 = vmatpush1.xpose.msra.mxu0 0.0
      %1468 = vmatprep.subr.mxu0 0.0
      %1469 = vmatpush1.xpose.msra.mxu0 0.0
      %1470 = vmatprep.subr.mxu0 0.0
      %1471 = vmatpush1.xpose.msra.mxu0 0.0
      %1472 = vmatprep.subr.mxu0 0.0
      %1473 = vmatpush1.xpose.msra.mxu0 0.0
      %1474 = vmatprep.subr.mxu0 0.0
      %1475 = vmatpush1.xpose.msra.mxu0 0.0
      %1476 = vmatprep.subr.mxu0 0.0
      %1477 = vmatpush1.xpose.msra.mxu0 0.0
      %1478 = vmatprep.subr.mxu0 0.0
      %1479 = vmatpush1.xpose.msra.mxu0 0.0
      %1480 = vmatprep.subr.mxu0 0.0
      %1481 = vmatpush1.xpose.msra.mxu0 0.0
      %1482 = vmatprep.subr.mxu0 0.0
      %1483 = vmatpush1.xpose.msra.mxu0 0.0
      %1484 = vmatprep.subr.mxu0 0.0
      %1485 = vmatpush1.xpose.msra.mxu0 0.0
      %1486 = vmatprep.subr.mxu0 0.0
      %1487 = vmatpush1.xpose.msra.mxu0 0.0
      %1488 = vmatprep.subr.mxu0 0.0
      %1489 = vmatpush1.xpose.msra.mxu0 0.0
      %1490 = vmatprep.subr.mxu0 0.0
      %1491 = vmatpush1.xpose.msra.mxu0 0.0
      %1492 = vmatprep.subr.mxu0 0.0
      %1493 = vmatpush1.xpose.msra.mxu0 0.0
      %1494 = vmatprep.subr.mxu0 0.0
      %1495 = vmatpush1.xpose.msra.mxu0 0.0
      %1496 = vmatprep.mubr.f32.mxu0 0.0
      %1497 = vmatmul.mubr.f32.gmra.mrb[0].mxu0 %v1427
      %v1498 = vpop.f32.mrb[0].mxu0
      %v1499 = vadd.f32 0.0, %v1498
      %v1500 = vpop.f32.mrb[0].mxu0
      %1501 = vdwg.mxu0
      %v1503 = vsel %vm1425, %v1324, 0
      %v1506 = vsel %vm1425, %v1374, 0
      %1508 = vmatprep.subr.mxu0 0.0
      %1509 = vmatpush1.xpose.msra.mxu0 %v1506
      %1510 = vmatprep.subr.mxu0 0.0
      %1511 = vmatpush1.xpose.msra.mxu0 0.0
      %1512 = vmatprep.subr.mxu0 0.0
      %1513 = vmatpush1.xpose.msra.mxu0 0.0
      %1514 = vmatprep.subr.mxu0 0.0
      %1515 = vmatpush1.xpose.msra.mxu0 0.0
      %1516 = vmatprep.subr.mxu0 0.0
      %1517 = vmatpush1.xpose.msra.mxu0 0.0
      %1518 = vmatprep.subr.mxu0 0.0
      %1519 = vmatpush1.xpose.msra.mxu0 0.0
      %1520 = vmatprep.subr.mxu0 0.0
      %1521 = vmatpush1.xpose.msra.mxu0 0.0
      %1522 = vmatprep.subr.mxu0 0.0
      %1523 = vmatpush1.xpose.msra.mxu0 0.0
      %1524 = vmatprep.subr.mxu0 0.0
      %1525 = vmatpush1.xpose.msra.mxu0 0.0
      %1526 = vmatprep.subr.mxu0 0.0
      %1527 = vmatpush1.xpose.msra.mxu0 0.0
      %1528 = vmatprep.subr.mxu0 0.0
      %1529 = vmatpush1.xpose.msra.mxu0 0.0
      %1530 = vmatprep.subr.mxu0 0.0
      %1531 = vmatpush1.xpose.msra.mxu0 0.0
      %1532 = vmatprep.subr.mxu0 0.0
      %1533 = vmatpush1.xpose.msra.mxu0 0.0
      %1534 = vmatprep.subr.mxu0 0.0
      %1535 = vmatpush1.xpose.msra.mxu0 0.0
      %1536 = vmatprep.subr.mxu0 0.0
      %1537 = vmatpush1.xpose.msra.mxu0 0.0
      %1538 = vmatprep.subr.mxu0 0.0
      %1539 = vmatpush1.xpose.msra.mxu0 0.0
      %1540 = vmatprep.subr.mxu0 0.0
      %1541 = vmatpush1.xpose.msra.mxu0 0.0
      %1542 = vmatprep.subr.mxu0 0.0
      %1543 = vmatpush1.xpose.msra.mxu0 0.0
      %1544 = vmatprep.subr.mxu0 0.0
      %1545 = vmatpush1.xpose.msra.mxu0 0.0
      %1546 = vmatprep.subr.mxu0 0.0
      %1547 = vmatpush1.xpose.msra.mxu0 0.0
      %1548 = vmatprep.subr.mxu0 0.0
      %1549 = vmatpush1.xpose.msra.mxu0 0.0
      %1550 = vmatprep.subr.mxu0 0.0
      %1551 = vmatpush1.xpose.msra.mxu0 0.0
      %1552 = vmatprep.subr.mxu0 0.0
      %1553 = vmatpush1.xpose.msra.mxu0 0.0
      %1554 = vmatprep.subr.mxu0 0.0
      %1555 = vmatpush1.xpose.msra.mxu0 0.0
      %1556 = vmatprep.subr.mxu0 0.0
      %1557 = vmatpush1.xpose.msra.mxu0 0.0
      %1558 = vmatprep.subr.mxu0 0.0
      %1559 = vmatpush1.xpose.msra.mxu0 0.0
      %1560 = vmatprep.subr.mxu0 0.0
      %1561 = vmatpush1.xpose.msra.mxu0 0.0
      %1562 = vmatprep.subr.mxu0 0.0
      %1563 = vmatpush1.xpose.msra.mxu0 0.0
      %1564 = vmatprep.subr.mxu0 0.0
      %1565 = vmatpush1.xpose.msra.mxu0 0.0
      %1566 = vmatprep.subr.mxu0 0.0
      %1567 = vmatpush1.xpose.msra.mxu0 0.0
      %1568 = vmatprep.subr.mxu0 0.0
      %1569 = vmatpush1.xpose.msra.mxu0 0.0
      %1570 = vmatprep.subr.mxu0 0.0
      %1571 = vmatpush1.xpose.msra.mxu0 0.0
      %1572 = vmatprep.mubr.f32.mxu0 0.0
      %1573 = vmatmul.mubr.f32.gmra.mrb[0].mxu0 %v1503
      %v1574 = vpop.f32.mrb[0].mxu0
      %v1575 = vadd.f32 0.0, %v1574
      %v1576 = vpop.f32.mrb[0].mxu0
      %1577 = vdwg.mxu0
      %v1578 = vmul.f32 %v1499, 0.25
      %v1579 = vmul.f32 %v1575, 0.25
      %v1580 = vadd.f32 %v1578, %v944
      %v1581 = vadd.f32 %v1579, %v944
      %vm1582 = vcmask 64512
      %v1583 = vsel %vm1582, %v1580, -inf
      %1584 = vmax.xlane.f32.xlu0 %v1583
      %v1585 = vpop.xlane.xlu0 %1584
      %v1586 = vsel %vm1582, %v1581, -inf
      %1587 = vmax.xlane.f32.xlu0 %v1586
      %v1588 = vpop.xlane.xlu0 %1587
      %v1589 = vsub.f32 %v1580, %v1585
      %v1590 = vsub.f32 %v1581, %v1588
      %v1591 = vmul.f32 %v1589, 1.442695
      %v1592 = vpow.pop %v1591
      %v1593 = vmul.f32 %v1590, 1.442695
      %v1594 = vpow.pop %v1593
      %v1595 = vsel %vm1582, %v1592, 0.0
      %1596 = vadd.xlane.f32.xlu0 %v1595
      %v1597 = vpop.xlane.xlu0 %1596
      %v1598 = vsel %vm1582, %v1594, 0.0
      %1599 = vadd.xlane.f32.xlu0 %v1598
      %v1600 = vpop.xlane.xlu0 %1599
      %v1601 = vrcp.pop %v1597
      %v1602 = vrcp.pop %v1600
      %v1603 = vmul.f32 %v1592, %v1601
      %v1604 = vmul.f32 %v1594, %v1602
      %v1606 = vsel %vm1582, %v1603, 0
      %1608 = vmatprep.subr.mxu0 0.0
      %1609 = vmatpush1.msra.mxu0 %v1423
      %1610 = vmatprep.subr.mxu0 0.0
      %1611 = vmatpush1.msra.mxu0 0.0
      %1612 = vmatprep.subr.mxu0 0.0
      %1613 = vmatpush1.msra.mxu0 0.0
      %1614 = vmatprep.subr.mxu0 0.0
      %1615 = vmatpush1.msra.mxu0 0.0
      %1616 = vmatprep.subr.mxu0 0.0
      %1617 = vmatpush1.msra.mxu0 0.0
      %1618 = vmatprep.subr.mxu0 0.0
      %1619 = vmatpush1.msra.mxu0 0.0
      %1620 = vmatprep.subr.mxu0 0.0
      %1621 = vmatpush1.msra.mxu0 0.0
      %1622 = vmatprep.subr.mxu0 0.0
      %1623 = vmatpush1.msra.mxu0 0.0
      %1624 = vmatprep.subr.mxu0 0.0
      %1625 = vmatpush1.msra.mxu0 0.0
      %1626 = vmatprep.subr.mxu0 0.0
      %1627 = vmatpush1.msra.mxu0 0.0
      %1628 = vmatprep.subr.mxu0 0.0
      %1629 = vmatpush1.msra.mxu0 0.0
      %1630 = vmatprep.subr.mxu0 0.0
      %1631 = vmatpush1.msra.mxu0 0.0
      %1632 = vmatprep.subr.mxu0 0.0
      %1633 = vmatpush1.msra.mxu0 0.0
      %1634 = vmatprep.subr.mxu0 0.0
      %1635 = vmatpush1.msra.mxu0 0.0
      %1636 = vmatprep.subr.mxu0 0.0
      %1637 = vmatpush1.msra.mxu0 0.0
      %1638 = vmatprep.subr.mxu0 0.0
      %1639 = vmatpush1.msra.mxu0 0.0
      %1640 = vmatprep.subr.mxu0 0.0
      %1641 = vmatpush1.msra.mxu0 0.0
      %1642 = vmatprep.subr.mxu0 0.0
      %1643 = vmatpush1.msra.mxu0 0.0
      %1644 = vmatprep.subr.mxu0 0.0
      %1645 = vmatpush1.msra.mxu0 0.0
      %1646 = vmatprep.subr.mxu0 0.0
      %1647 = vmatpush1.msra.mxu0 0.0
      %1648 = vmatprep.subr.mxu0 0.0
      %1649 = vmatpush1.msra.mxu0 0.0
      %1650 = vmatprep.subr.mxu0 0.0
      %1651 = vmatpush1.msra.mxu0 0.0
      %1652 = vmatprep.subr.mxu0 0.0
      %1653 = vmatpush1.msra.mxu0 0.0
      %1654 = vmatprep.subr.mxu0 0.0
      %1655 = vmatpush1.msra.mxu0 0.0
      %1656 = vmatprep.subr.mxu0 0.0
      %1657 = vmatpush1.msra.mxu0 0.0
      %1658 = vmatprep.subr.mxu0 0.0
      %1659 = vmatpush1.msra.mxu0 0.0
      %1660 = vmatprep.subr.mxu0 0.0
      %1661 = vmatpush1.msra.mxu0 0.0
      %1662 = vmatprep.subr.mxu0 0.0
      %1663 = vmatpush1.msra.mxu0 0.0
      %1664 = vmatprep.subr.mxu0 0.0
      %1665 = vmatpush1.msra.mxu0 0.0
      %1666 = vmatprep.subr.mxu0 0.0
      %1667 = vmatpush1.msra.mxu0 0.0
      %1668 = vmatprep.subr.mxu0 0.0
      %1669 = vmatpush1.msra.mxu0 0.0
      %1670 = vmatprep.subr.mxu0 0.0
      %1671 = vmatpush1.msra.mxu0 0.0
      %1672 = vmatprep.mubr.f32.mxu0 0.0
      %1673 = vmatmul.mubr.f32.gmra.mrb[0].mxu0 %v1606
      %v1674 = vpop.f32.mrb[0].mxu0
      %v1675 = vadd.f32 0.0, %v1674
      %v1676 = vpop.f32.mrb[0].mxu0
      %1677 = vdwg.mxu0
      %v1679 = vsel %vm1582, %v1604, 0
      %1681 = vmatprep.subr.mxu0 0.0
      %1682 = vmatpush1.msra.mxu0 %v1424
      %1683 = vmatprep.subr.mxu0 0.0
      %1684 = vmatpush1.msra.mxu0 0.0
      %1685 = vmatprep.subr.mxu0 0.0
      %1686 = vmatpush1.msra.mxu0 0.0
      %1687 = vmatprep.subr.mxu0 0.0
      %1688 = vmatpush1.msra.mxu0 0.0
      %1689 = vmatprep.subr.mxu0 0.0
      %1690 = vmatpush1.msra.mxu0 0.0
      %1691 = vmatprep.subr.mxu0 0.0
      %1692 = vmatpush1.msra.mxu0 0.0
      %1693 = vmatprep.subr.mxu0 0.0
      %1694 = vmatpush1.msra.mxu0 0.0
      %1695 = vmatprep.subr.mxu0 0.0
      %1696 = vmatpush1.msra.mxu0 0.0
      %1697 = vmatprep.subr.mxu0 0.0
      %1698 = vmatpush1.msra.mxu0 0.0
      %1699 = vmatprep.subr.mxu0 0.0
      %1700 = vmatpush1.msra.mxu0 0.0
      %1701 = vmatprep.subr.mxu0 0.0
      %1702 = vmatpush1.msra.mxu0 0.0
      %1703 = vmatprep.subr.mxu0 0.0
      %1704 = vmatpush1.msra.mxu0 0.0
      %1705 = vmatprep.subr.mxu0 0.0
      %1706 = vmatpush1.msra.mxu0 0.0
      %1707 = vmatprep.subr.mxu0 0.0
      %1708 = vmatpush1.msra.mxu0 0.0
      %1709 = vmatprep.subr.mxu0 0.0
      %1710 = vmatpush1.msra.mxu0 0.0
      %1711 = vmatprep.subr.mxu0 0.0
      %1712 = vmatpush1.msra.mxu0 0.0
      %1713 = vmatprep.subr.mxu0 0.0
      %1714 = vmatpush1.msra.mxu0 0.0
      %1715 = vmatprep.subr.mxu0 0.0
      %1716 = vmatpush1.msra.mxu0 0.0
      %1717 = vmatprep.subr.mxu0 0.0
      %1718 = vmatpush1.msra.mxu0 0.0
      %1719 = vmatprep.subr.mxu0 0.0
      %1720 = vmatpush1.msra.mxu0 0.0
      %1721 = vmatprep.subr.mxu0 0.0
      %1722 = vmatpush1.msra.mxu0 0.0
      %1723 = vmatprep.subr.mxu0 0.0
      %1724 = vmatpush1.msra.mxu0 0.0
      %1725 = vmatprep.subr.mxu0 0.0
      %1726 = vmatpush1.msra.mxu0 0.0
      %1727 = vmatprep.subr.mxu0 0.0
      %1728 = vmatpush1.msra.mxu0 0.0
      %1729 = vmatprep.subr.mxu0 0.0
      %1730 = vmatpush1.msra.mxu0 0.0
      %1731 = vmatprep.subr.mxu0 0.0
      %1732 = vmatpush1.msra.mxu0 0.0
      %1733 = vmatprep.subr.mxu0 0.0
      %1734 = vmatpush1.msra.mxu0 0.0
      %1735 = vmatprep.subr.mxu0 0.0
      %1736 = vmatpush1.msra.mxu0 0.0
      %1737 = vmatprep.subr.mxu0 0.0
      %1738 = vmatpush1.msra.mxu0 0.0
      %1739 = vmatprep.subr.mxu0 0.0
      %1740 = vmatpush1.msra.mxu0 0.0
      %1741 = vmatprep.subr.mxu0 0.0
      %1742 = vmatpush1.msra.mxu0 0.0
      %1743 = vmatprep.subr.mxu0 0.0
      %1744 = vmatpush1.msra.mxu0 0.0
      %1745 = vmatprep.mubr.f32.mxu0 0.0
      %1746 = vmatmul.mubr.f32.gmra.mrb[0].mxu0 %v1679
      %v1747 = vpop.f32.mrb[0].mxu0
      %v1748 = vadd.f32 0.0, %v1747
      %v1749 = vpop.f32.mrb[0].mxu0
      %1750 = vdwg.mxu0
      %v1751 = vcombine.high %v1675, 0.0
      %v1753 = vunpack.c.l.s4 1983009808
      %v1754 = vunpack.c.0.s8 %v1753
      %v1755 = vlaneseq
      %v1756 = vshrl.u32 %v1755, 7
      %v1757 = vsub.s32 %v1754, %v1756
      %v1758 = vrot.slane %v1675, %v1757
      %v1760 = vunpack.c.l.s4 1983009808
      %v1761 = vunpack.c.0.s8 %v1760
      %v1762 = vlaneseq
      %v1763 = vshrl.u32 %v1762, 7
      %v1764 = vsub.s32 %v1761, %v1763
      %v1765 = vrot.slane %v1751, %v1764
      %v1766 = vcombine.high %v1748, 0.0
      %v1768 = vunpack.c.l.s4 1983009808
      %v1769 = vunpack.c.0.s8 %v1768
      %v1770 = vlaneseq
      %v1771 = vshrl.u32 %v1770, 7
      %v1772 = vsub.s32 %v1769, %v1771
      %v1773 = vrot.slane %v1748, %v1772
      %v1775 = vunpack.c.l.s4 1983009808
      %v1776 = vunpack.c.0.s8 %v1775
      %v1777 = vlaneseq
      %v1778 = vshrl.u32 %v1777, 7
      %v1779 = vsub.s32 %v1776, %v1778
      %v1780 = vrot.slane %v1766, %v1779
      %v1781 = vcombine.low %v1758, %v1773
      %v1782 = vcombine.high %v1758, %v1773
      %v1784 = vunpack.c.l.s4 1934713408
      %v1785 = vunpack.c.0.s8 %v1784
      %v1786 = vlaneseq
      %v1787 = vshrl.u32 %v1786, 7
      %v1788 = vsub.s32 %v1785, %v1787
      %v1789 = vrot.slane %v1781, %v1788
      %v1791 = vunpack.c.l.s4 1934713408
      %v1792 = vunpack.c.0.s8 %v1791
      %v1793 = vlaneseq
      %v1794 = vshrl.u32 %v1793, 7
      %v1795 = vsub.s32 %v1792, %v1794
      %v1796 = vrot.slane %v1782, %v1795
      %v1797 = vcombine.low %v1765, %v1780
      %v1798 = vcombine.high %v1765, %v1780
      %v1800 = vunpack.c.l.s4 1934713408
      %v1801 = vunpack.c.0.s8 %v1800
      %v1802 = vlaneseq
      %v1803 = vshrl.u32 %v1802, 7
      %v1804 = vsub.s32 %v1801, %v1803
      %v1805 = vrot.slane %v1797, %v1804
      %v1807 = vunpack.c.l.s4 1934713408
      %v1808 = vunpack.c.0.s8 %v1807
      %v1809 = vlaneseq
      %v1810 = vshrl.u32 %v1809, 7
      %v1811 = vsub.s32 %v1808, %v1810
      %v1812 = vrot.slane %v1798, %v1811
      %v1813 = vcombine.high %v1789, 0.0
      %v1814 = vcombine.high %v1796, 0.0
      %v1815 = vcombine.high %v1805, 0.0
      %v1816 = vcombine.high %v1812, 0.0
      %v1817 = vcombine.low %v1789, %v1796
      %v1819 = vunpack.c.l.s4 1983009808
      %v1820 = vunpack.c.0.s8 %v1819
      %v1821 = vlaneseq
      %v1822 = vshrl.u32 %v1821, 7
      %v1823 = vsub.s32 %v1820, %v1822
      %v1824 = vrot.slane %v1817, %v1823
      %v1825 = vcombine.low %v1813, %v1814
      %v1827 = vunpack.c.l.s4 1983009808
      %v1828 = vunpack.c.0.s8 %v1827
      %v1829 = vlaneseq
      %v1830 = vshrl.u32 %v1829, 7
      %v1831 = vsub.s32 %v1828, %v1830
      %v1832 = vrot.slane %v1825, %v1831
      %v1833 = vcombine.low %v1805, %v1812
      %v1835 = vunpack.c.l.s4 1983009808
      %v1836 = vunpack.c.0.s8 %v1835
      %v1837 = vlaneseq
      %v1838 = vshrl.u32 %v1837, 7
      %v1839 = vsub.s32 %v1836, %v1838
      %v1840 = vrot.slane %v1833, %v1839
      %v1841 = vcombine.low %v1815, %v1816
      %v1843 = vunpack.c.l.s4 1983009808
      %v1844 = vunpack.c.0.s8 %v1843
      %v1845 = vlaneseq
      %v1846 = vshrl.u32 %v1845, 7
      %v1847 = vsub.s32 %v1844, %v1846
      %v1848 = vrot.slane %v1841, %v1847
      %v1849 = vcombine.low %v1824, %v1832
      %v1851 = vunpack.c.l.s4 1934713408
      %v1852 = vunpack.c.0.s8 %v1851
      %v1853 = vlaneseq
      %v1854 = vshrl.u32 %v1853, 7
      %v1855 = vsub.s32 %v1852, %v1854
      %v1856 = vrot.slane %v1849, %v1855
      %v1857 = vcombine.low %v1840, %v1848
      %v1859 = vunpack.c.l.s4 1934713408
      %v1860 = vunpack.c.0.s8 %v1859
      %v1861 = vlaneseq
      %v1862 = vshrl.u32 %v1861, 7
      %v1863 = vsub.s32 %v1860, %v1862
      %v1864 = vrot.slane %v1857, %v1863
      %v1865 = vcombine.low %v1856, %v1864
      %v1866 = vcombine.high %v1856, %v1864
      %1868 = vrot.lane.b32.xlu0 %v1866, 16
      %v1869 = vpop.permute.xlu0 %1868
      %v1871 = vsel %vm1425, %v1865, %v1869
      %v1872 = vld [vmem:[%s12] sm:$0xff]
      %v1873 = vld [vmem:[%s12 + $0x8] sm:$0xff]
      %v1874 = vld [vmem:[%s12 + $0x10] sm:$0xff]
      %v1875 = vld [vmem:[%s12 + $0x18] sm:$0xff]
      %v1876 = vld [vmem:[%s13] sm:$0x1]
      %v1878 = vlaneseq
      %v1879 = vshrl.u32 %v1878, 7
      %v1880 = vsub.s32 0, %v1879
      %v1881 = vrot.slane %v1876, %v1880
      %v1884 = vsel %vm827, %v1871, 0
      %1886 = vmatprep.subr.mxu0 0.0
      %1887 = vmatpush1.msra.mxu0 %v1872
      %1888 = vmatprep.subr.mxu0 0.0
      %1889 = vmatpush1.msra.mxu0 %v1873
      %1890 = vmatprep.subr.mxu0 0.0
      %1891 = vmatpush1.msra.mxu0 %v1874
      %1892 = vmatprep.subr.mxu0 0.0
      %1893 = vmatpush1.msra.mxu0 %v1875
      %1894 = vmatprep.subr.mxu0 0.0
      %1895 = vmatpush1.msra.mxu0 0.0
      %1896 = vmatprep.subr.mxu0 0.0
      %1897 = vmatpush1.msra.mxu0 0.0
      %1898 = vmatprep.subr.mxu0 0.0
      %1899 = vmatpush1.msra.mxu0 0.0
      %1900 = vmatprep.subr.mxu0 0.0
      %1901 = vmatpush1.msra.mxu0 0.0
      %1902 = vmatprep.subr.mxu0 0.0
      %1903 = vmatpush1.msra.mxu0 0.0
      %1904 = vmatprep.subr.mxu0 0.0
      %1905 = vmatpush1.msra.mxu0 0.0
      %1906 = vmatprep.subr.mxu0 0.0
      %1907 = vmatpush1.msra.mxu0 0.0
      %1908 = vmatprep.subr.mxu0 0.0
      %1909 = vmatpush1.msra.mxu0 0.0
      %1910 = vmatprep.subr.mxu0 0.0
      %1911 = vmatpush1.msra.mxu0 0.0
      %1912 = vmatprep.subr.mxu0 0.0
      %1913 = vmatpush1.msra.mxu0 0.0
      %1914 = vmatprep.subr.mxu0 0.0
      %1915 = vmatpush1.msra.mxu0 0.0
      %1916 = vmatprep.subr.mxu0 0.0
      %1917 = vmatpush1.msra.mxu0 0.0
      %1918 = vmatprep.subr.mxu0 0.0
      %1919 = vmatpush1.msra.mxu0 0.0
      %1920 = vmatprep.subr.mxu0 0.0
      %1921 = vmatpush1.msra.mxu0 0.0
      %1922 = vmatprep.subr.mxu0 0.0
      %1923 = vmatpush1.msra.mxu0 0.0
      %1924 = vmatprep.subr.mxu0 0.0
      %1925 = vmatpush1.msra.mxu0 0.0
      %1926 = vmatprep.subr.mxu0 0.0
      %1927 = vmatpush1.msra.mxu0 0.0
      %1928 = vmatprep.subr.mxu0 0.0
      %1929 = vmatpush1.msra.mxu0 0.0
      %1930 = vmatprep.subr.mxu0 0.0
      %1931 = vmatpush1.msra.mxu0 0.0
      %1932 = vmatprep.subr.mxu0 0.0
      %1933 = vmatpush1.msra.mxu0 0.0
      %1934 = vmatprep.subr.mxu0 0.0
      %1935 = vmatpush1.msra.mxu0 0.0
      %1936 = vmatprep.subr.mxu0 0.0
      %1937 = vmatpush1.msra.mxu0 0.0
      %1938 = vmatprep.subr.mxu0 0.0
      %1939 = vmatpush1.msra.mxu0 0.0
      %1940 = vmatprep.subr.mxu0 0.0
      %1941 = vmatpush1.msra.mxu0 0.0
      %1942 = vmatprep.subr.mxu0 0.0
      %1943 = vmatpush1.msra.mxu0 0.0
      %1944 = vmatprep.subr.mxu0 0.0
      %1945 = vmatpush1.msra.mxu0 0.0
      %1946 = vmatprep.subr.mxu0 0.0
      %1947 = vmatpush1.msra.mxu0 0.0
      %1948 = vmatprep.subr.mxu0 0.0
      %1949 = vmatpush1.msra.mxu0 0.0
      %1950 = vmatprep.mubr.f32.mxu0 0.0
      %1951 = vmatmul.mubr.f32.gmra.mrb[0].mxu0 %v1884
      %v1952 = vpop.f32.mrb[0].mxu0
      %v1953 = vadd.f32 %v1881, %v1952
      %v1954 = vpop.f32.mrb[0].mxu0
      %1955 = vdwg.mxu0
      %v1956 = vadd.f32 %v946, %v1953
      %v1957 = vld [vmem:[%s14] sm:$0x1]
      %v1958 = vld [vmem:[%s15] sm:$0x1]
      %v1959 = vsel %vm827, %v1956, 0.0
      %1960 = vadd.xlane.f32.xlu0 %v1959
      %v1961 = vpop.xlane.xlu0 %1960
      %v1962 = vmul.f32 %v1961, %v952
      %v1963 = vsub.f32 %v1956, %v1962
      %v1964 = vmul.f32 %v1963, %v1963
      %v1965 = vsel %vm827, %v1964, 0.0
      %1966 = vadd.xlane.f32.xlu0 %v1965
      %v1967 = vpop.xlane.xlu0 %1966
      %v1968 = vmul.f32 %v1967, %v952
      %v1969 = vadd.f32 %v1968, 1e-05
      %v1970 = vrsqrt.pop %v1969
      %v1971 = vmul.f32 %v1963, %v1970
      %v1973 = vlaneseq
      %v1974 = vshrl.u32 %v1973, 7
      %v1975 = vsub.s32 0, %v1974
      %v1976 = vrot.slane %v1957, %v1975
      %v1978 = vmul.f32 %v1971, %v1976
      %v1980 = vlaneseq
      %v1981 = vshrl.u32 %v1980, 7
      %v1982 = vsub.s32 0, %v1981
      %v1983 = vrot.slane %v1958, %v1982
      %v1985 = vadd.f32 %v1978, %v1983
      %v1986 = vld [vmem:[%s16] sm:$0xff]
      %v1987 = vld [vmem:[%s16 + $0x8] sm:$0xff]
      %v1988 = vld [vmem:[%s16 + $0x10] sm:$0xff]
      %v1989 = vld [vmem:[%s16 + $0x18] sm:$0xff]
      %v1990 = vld [vmem:[%s17] sm:$0x1]
      %v1992 = vlaneseq
      %v1993 = vshrl.u32 %v1992, 7
      %v1994 = vsub.s32 0, %v1993
      %v1995 = vrot.slane %v1990, %v1994
      %v1998 = vsel %vm827, %v1985, 0
      %2000 = vmatprep.subr.mxu0 0.0
      %2001 = vmatpush1.msra.mxu0 %v1986
      %2002 = vmatprep.subr.mxu0 0.0
      %2003 = vmatpush1.msra.mxu0 %v1987
      %2004 = vmatprep.subr.mxu0 0.0
      %2005 = vmatpush1.msra.mxu0 %v1988
      %2006 = vmatprep.subr.mxu0 0.0
      %2007 = vmatpush1.msra.mxu0 %v1989
      %2008 = vmatprep.subr.mxu0 0.0
      %2009 = vmatpush1.msra.mxu0 0.0
      %2010 = vmatprep.subr.mxu0 0.0
      %2011 = vmatpush1.msra.mxu0 0.0
      %2012 = vmatprep.subr.mxu0 0.0
      %2013 = vmatpush1.msra.mxu0 0.0
      %2014 = vmatprep.subr.mxu0 0.0
      %2015 = vmatpush1.msra.mxu0 0.0
      %2016 = vmatprep.subr.mxu0 0.0
      %2017 = vmatpush1.msra.mxu0 0.0
      %2018 = vmatprep.subr.mxu0 0.0
      %2019 = vmatpush1.msra.mxu0 0.0
      %2020 = vmatprep.subr.mxu0 0.0
      %2021 = vmatpush1.msra.mxu0 0.0
      %2022 = vmatprep.subr.mxu0 0.0
      %2023 = vmatpush1.msra.mxu0 0.0
      %2024 = vmatprep.subr.mxu0 0.0
      %2025 = vmatpush1.msra.mxu0 0.0
      %2026 = vmatprep.subr.mxu0 0.0
      %2027 = vmatpush1.msra.mxu0 0.0
      %2028 = vmatprep.subr.mxu0 0.0
      %2029 = vmatpush1.msra.mxu0 0.0
      %2030 = vmatprep.subr.mxu0 0.0
      %2031 = vmatpush1.msra.mxu0 0.0
      %2032 = vmatprep.subr.mxu0 0.0
      %2033 = vmatpush1.msra.mxu0 0.0
      %2034 = vmatprep.subr.mxu0 0.0
      %2035 = vmatpush1.msra.mxu0 0.0
      %2036 = vmatprep.subr.mxu0 0.0
      %2037 = vmatpush1.msra.mxu0 0.0
      %2038 = vmatprep.subr.mxu0 0.0
      %2039 = vmatpush1.msra.mxu0 0.0
      %2040 = vmatprep.subr.mxu0 0.0
      %2041 = vmatpush1.msra.mxu0 0.0
      %2042 = vmatprep.subr.mxu0 0.0
      %2043 = vmatpush1.msra.mxu0 0.0
      %2044 = vmatprep.subr.mxu0 0.0
      %2045 = vmatpush1.msra.mxu0 0.0
      %2046 = vmatprep.subr.mxu0 0.0
      %2047 = vmatpush1.msra.mxu0 0.0
      %2048 = vmatprep.subr.mxu0 0.0
      %2049 = vmatpush1.msra.mxu0 0.0
      %2050 = vmatprep.subr.mxu0 0.0
      %2051 = vmatpush1.msra.mxu0 0.0
      %2052 = vmatprep.subr.mxu0 0.0
      %2053 = vmatpush1.msra.mxu0 0.0
      %2054 = vmatprep.subr.mxu0 0.0
      %2055 = vmatpush1.msra.mxu0 0.0
      %2056 = vmatprep.subr.mxu0 0.0
      %2057 = vmatpush1.msra.mxu0 0.0
      %2058 = vmatprep.subr.mxu0 0.0
      %2059 = vmatpush1.msra.mxu0 0.0
      %2060 = vmatprep.subr.mxu0 0.0
      %2061 = vmatpush1.msra.mxu0 0.0
      %2062 = vmatprep.subr.mxu0 0.0
      %2063 = vmatpush1.msra.mxu0 0.0
      %2064 = vmatprep.mubr.f32.mxu0 0.0
      %2065 = vmatmul.mubr.f32.gmra.mrb[0].mxu0 %v1998
      %v2066 = vpop.f32.mrb[0].mxu0
      %v2067 = vadd.f32 %v1995, %v2066
      %v2068 = vpop.f32.mrb[0].mxu0
      %2069 = vdwg.mxu0
      %v2070 = vmul.f32 %v2067, %v2067
      %v2071 = vmul.f32 %v2067, %v2070
      %v2072 = vmul.f32 %v2071, 0.044715
      %v2073 = vadd.f32 %v2067, %v2072
      %v2074 = vmul.f32 %v2073, 0.7978846
      %v2075 = vtanh.pop %v2074
      %v2076 = vadd.f32 %v2075, 1.0
      %v2077 = vmul.f32 %v2076, 0.5
      %v2078 = vmul.f32 %v2067, %v2077
      %v2079 = vld [vmem:[%s18] sm:$0xff]
      %v2080 = vld [vmem:[%s18 + $0x8] sm:$0xff]
      %v2081 = vld [vmem:[%s18 + $0x10] sm:$0xff]
      %v2082 = vld [vmem:[%s18 + $0x18] sm:$0xff]
      %v2083 = vld [vmem:[%s18 + $0x20] sm:$0xff]
      %v2084 = vld [vmem:[%s18 + $0x28] sm:$0xff]
      %v2085 = vld [vmem:[%s18 + $0x30] sm:$0xff]
      %v2086 = vld [vmem:[%s18 + $0x38] sm:$0xff]
      %v2087 = vld [vmem:[%s18 + $0x40] sm:$0xff]
      %v2088 = vld [vmem:[%s18 + $0x48] sm:$0xff]
      %v2089 = vld [vmem:[%s18 + $0x50] sm:$0xff]
      %v2090 = vld [vmem:[%s18 + $0x58] sm:$0xff]
      %v2091 = vld [vmem:[%s18 + $0x60] sm:$0xff]
      %v2092 = vld [vmem:[%s18 + $0x68] sm:$0xff]
      %v2093 = vld [vmem:[%s18 + $0x70] sm:$0xff]
      %v2094 = vld [vmem:[%s18 + $0x78] sm:$0xff]
      %v2095 = vld [vmem:[%s19] sm:$0x1]
      %v2097 = vlaneseq
      %v2098 = vshrl.u32 %v2097, 7
      %v2099 = vsub.s32 0, %v2098
      %v2100 = vrot.slane %v2095, %v2099
      %2102 = vmatprep.subr.mxu0 0.0
      %2103 = vmatpush1.msra.mxu0 %v2079
      %2104 = vmatprep.subr.mxu0 0.0
      %2105 = vmatpush1.msra.mxu0 %v2080
      %2106 = vmatprep.subr.mxu0 0.0
      %2107 = vmatpush1.msra.mxu0 %v2081
      %2108 = vmatprep.subr.mxu0 0.0
      %2109 = vmatpush1.msra.mxu0 %v2082
      %2110 = vmatprep.subr.mxu0 0.0
      %2111 = vmatpush1.msra.mxu0 %v2083
      %2112 = vmatprep.subr.mxu0 0.0
      %2113 = vmatpush1.msra.mxu0 %v2084
      %2114 = vmatprep.subr.mxu0 0.0
      %2115 = vmatpush1.msra.mxu0 %v2085
      %2116 = vmatprep.subr.mxu0 0.0
      %2117 = vmatpush1.msra.mxu0 %v2086
      %2118 = vmatprep.subr.mxu0 0.0
      %2119 = vmatpush1.msra.mxu0 %v2087
      %2120 = vmatprep.subr.mxu0 0.0
      %2121 = vmatpush1.msra.mxu0 %v2088
      %2122 = vmatprep.subr.mxu0 0.0
      %2123 = vmatpush1.msra.mxu0 %v2089
      %2124 = vmatprep.subr.mxu0 0.0
      %2125 = vmatpush1.msra.mxu0 %v2090
      %2126 = vmatprep.subr.mxu0 0.0
      %2127 = vmatpush1.msra.mxu0 %v2091
      %2128 = vmatprep.subr.mxu0 0.0
      %2129 = vmatpush1.msra.mxu0 %v2092
      %2130 = vmatprep.subr.mxu0 0.0
      %2131 = vmatpush1.msra.mxu0 %v2093
      %2132 = vmatprep.subr.mxu0 0.0
      %2133 = vmatpush1.msra.mxu0 %v2094
      %2134 = vmatprep.subr.mxu0 0.0
      %2135 = vmatpush1.msra.mxu0 0.0
      %2136 = vmatprep.subr.mxu0 0.0
      %2137 = vmatpush1.msra.mxu0 0.0
      %2138 = vmatprep.subr.mxu0 0.0
      %2139 = vmatpush1.msra.mxu0 0.0
      %2140 = vmatprep.subr.mxu0 0.0
      %2141 = vmatpush1.msra.mxu0 0.0
      %2142 = vmatprep.subr.mxu0 0.0
      %2143 = vmatpush1.msra.mxu0 0.0
      %2144 = vmatprep.subr.mxu0 0.0
      %2145 = vmatpush1.msra.mxu0 0.0
      %2146 = vmatprep.subr.mxu0 0.0
      %2147 = vmatpush1.msra.mxu0 0.0
      %2148 = vmatprep.subr.mxu0 0.0
      %2149 = vmatpush1.msra.mxu0 0.0
      %2150 = vmatprep.subr.mxu0 0.0
      %2151 = vmatpush1.msra.mxu0 0.0
      %2152 = vmatprep.subr.mxu0 0.0
      %2153 = vmatpush1.msra.mxu0 0.0
      %2154 = vmatprep.subr.mxu0 0.0
      %2155 = vmatpush1.msra.mxu0 0.0
      %2156 = vmatprep.subr.mxu0 0.0
      %2157 = vmatpush1.msra.mxu0 0.0
      %2158 = vmatprep.subr.mxu0 0.0
      %2159 = vmatpush1.msra.mxu0 0.0
      %2160 = vmatprep.subr.mxu0 0.0
      %2161 = vmatpush1.msra.mxu0 0.0
      %2162 = vmatprep.subr.mxu0 0.0
      %2163 = vmatpush1.msra.mxu0 0.0
      %2164 = vmatprep.subr.mxu0 0.0
      %2165 = vmatpush1.msra.mxu0 0.0
      %2166 = vmatprep.mubr.f32.mxu0 0.0
      %2167 = vmatmul.mubr.f32.gmra.mrb[0].mxu0 %v2078
      %v2168 = vpop.f32.mrb[0].mxu0
      %v2169 = vadd.f32 %v2100, %v2168
      %v2170 = vpop.f32.mrb[0].mxu0
      %2171 = vdwg.mxu0
      %v2172 = vadd.f32 %v1956, %v2169
      %s2173 = scalar_lea.vmem %s8, 1
      %v2174 = vld [vmem:[%s2173] sm:$0x1]
      %s2175 = scalar_lea.vmem %s9, 1
      %v2176 = vld [vmem:[%s2175] sm:$0x1]
      %v2177 = vsel %vm827, %v2172, 0.0
      %2178 = vadd.xlane.f32.xlu0 %v2177
      %v2179 = vpop.xlane.xlu0 %2178
      %v2180 = vmul.f32 %v2179, %v952
      %v2181 = vsub.f32 %v2172, %v2180
      %v2182 = vmul.f32 %v2181, %v2181
      %v2183 = vsel %vm827, %v2182, 0.0
      %2184 = vadd.xlane.f32.xlu0 %v2183
      %v2185 = vpop.xlane.xlu0 %2184
      %v2186 = vmul.f32 %v2185, %v952
      %v2187 = vadd.f32 %v2186, 1e-05
      %v2188 = vrsqrt.pop %v2187
      %v2189 = vmul.f32 %v2181, %v2188
      %v2191 = vlaneseq
      %v2192 = vshrl.u32 %v2191, 7
      %v2193 = vsub.s32 0, %v2192
      %v2194 = vrot.slane %v2174, %v2193
      %v2196 = vmul.f32 %v2189, %v2194
      %v2198 = vlaneseq
      %v2199 = vshrl.u32 %v2198, 7
      %v2200 = vsub.s32 0, %v2199
      %v2201 = vrot.slane %v2176, %v2200
      %v2203 = vadd.f32 %v2196, %v2201
      %s2204 = scalar_lea.vmem %s10, 32
      %v2205 = vld [vmem:[%s2204] sm:$0xff]
      %v2206 = vld [vmem:[%s2204 + $0x8] sm:$0xff]
      %v2207 = vld [vmem:[%s2204 + $0x10] sm:$0xff]
      %v2208 = vld [vmem:[%s2204 + $0x18] sm:$0xff]
      %s2209 = scalar_lea.vmem %s11, 1
      %v2210 = vld [vmem:[%s2209] sm:$0x1]
      %v2212 = vlaneseq
      %v2213 = vshrl.u32 %v2212, 7
      %v2214 = vsub.s32 0, %v2213
      %v2215 = vrot.slane %v2210, %v2214
      %v2218 = vsel %vm827, %v2203, 0
      %2220 = vmatprep.subr.mxu0 0.0
      %2221 = vmatpush1.msra.mxu0 %v2205
      %2222 = vmatprep.subr.mxu0 0.0
      %2223 = vmatpush1.msra.mxu0 %v2206
      %2224 = vmatprep.subr.mxu0 0.0
      %2225 = vmatpush1.msra.mxu0 %v2207
      %2226 = vmatprep.subr.mxu0 0.0
      %2227 = vmatpush1.msra.mxu0 %v2208
      %2228 = vmatprep.subr.mxu0 0.0
      %2229 = vmatpush1.msra.mxu0 0.0
      %2230 = vmatprep.subr.mxu0 0.0
      %2231 = vmatpush1.msra.mxu0 0.0
      %2232 = vmatprep.subr.mxu0 0.0
      %2233 = vmatpush1.msra.mxu0 0.0
      %2234 = vmatprep.subr.mxu0 0.0
      %2235 = vmatpush1.msra.mxu0 0.0
      %2236 = vmatprep.subr.mxu0 0.0
      %2237 = vmatpush1.msra.mxu0 0.0
      %2238 = vmatprep.subr.mxu0 0.0
      %2239 = vmatpush1.msra.mxu0 0.0
      %2240 = vmatprep.subr.mxu0 0.0
      %2241 = vmatpush1.msra.mxu0 0.0
      %2242 = vmatprep.subr.mxu0 0.0
      %2243 = vmatpush1.msra.mxu0 0.0
      %2244 = vmatprep.subr.mxu0 0.0
      %2245 = vmatpush1.msra.mxu0 0.0
      %2246 = vmatprep.subr.mxu0 0.0
      %2247 = vmatpush1.msra.mxu0 0.0
      %2248 = vmatprep.subr.mxu0 0.0
      %2249 = vmatpush1.msra.mxu0 0.0
      %2250 = vmatprep.subr.mxu0 0.0
      %2251 = vmatpush1.msra.mxu0 0.0
      %2252 = vmatprep.subr.mxu0 0.0
      %2253 = vmatpush1.msra.mxu0 0.0
      %2254 = vmatprep.subr.mxu0 0.0
      %2255 = vmatpush1.msra.mxu0 0.0
      %2256 = vmatprep.subr.mxu0 0.0
      %2257 = vmatpush1.msra.mxu0 0.0
      %2258 = vmatprep.subr.mxu0 0.0
      %2259 = vmatpush1.msra.mxu0 0.0
      %2260 = vmatprep.subr.mxu0 0.0
      %2261 = vmatpush1.msra.mxu0 0.0
      %2262 = vmatprep.subr.mxu0 0.0
      %2263 = vmatpush1.msra.mxu0 0.0
      %2264 = vmatprep.subr.mxu0 0.0
      %2265 = vmatpush1.msra.mxu0 0.0
      %2266 = vmatprep.subr.mxu0 0.0
      %2267 = vmatpush1.msra.mxu0 0.0
      %2268 = vmatprep.subr.mxu0 0.0
      %2269 = vmatpush1.msra.mxu0 0.0
      %2270 = vmatprep.subr.mxu0 0.0
      %2271 = vmatpush1.msra.mxu0 0.0
      %2272 = vmatprep.subr.mxu0 0.0
      %2273 = vmatpush1.msra.mxu0 0.0
      %2274 = vmatprep.subr.mxu0 0.0
      %2275 = vmatpush1.msra.mxu0 0.0
      %2276 = vmatprep.subr.mxu0 0.0
      %2277 = vmatpush1.msra.mxu0 0.0
      %2278 = vmatprep.subr.mxu0 0.0
      %2279 = vmatpush1.msra.mxu0 0.0
      %2280 = vmatprep.subr.mxu0 0.0
      %2281 = vmatpush1.msra.mxu0 0.0
      %2282 = vmatprep.subr.mxu0 0.0
      %2283 = vmatpush1.msra.mxu0 0.0
      %2284 = vmatprep.mubr.f32.mxu0 0.0
      %2285 = vmatmul.mubr.f32.gmra.mrb[0].mxu0 %v2218
      %v2286 = vpop.f32.mrb[0].mxu0
      %v2287 = vadd.f32 %v2215, %v2286
      %v2288 = vpop.f32.mrb[0].mxu0
      %2289 = vdwg.mxu0
      %2291 = vrot.lane.b32.xlu0 %v2287, 112
      %v2292 = vpop.permute.xlu0 %2291
      %v2294 = vcombine.high %v2287, 0.0
      %v2296 = vunpack.c.l.s4 1983009808
      %v2297 = vunpack.c.0.s8 %v2296
      %v2298 = vlaneseq
      %v2299 = vshrl.u32 %v2298, 7
      %v2300 = vsub.s32 %v2297, %v2299
      %v2301 = vrot.slane %v2287, %v2300
      %v2303 = vunpack.c.l.s4 1983009808
      %v2304 = vunpack.c.0.s8 %v2303
      %v2305 = vlaneseq
      %v2306 = vshrl.u32 %v2305, 7
      %v2307 = vsub.s32 %v2304, %v2306
      %v2308 = vrot.slane %v2294, %v2307
      %v2309 = vcombine.high %v2292, 0.0
      %v2311 = vunpack.c.l.s4 1983009808
      %v2312 = vunpack.c.0.s8 %v2311
      %v2313 = vlaneseq
      %v2314 = vshrl.u32 %v2313, 7
      %v2315 = vsub.s32 %v2312, %v2314
      %v2316 = vrot.slane %v2292, %v2315
      %v2318 = vunpack.c.l.s4 1983009808
      %v2319 = vunpack.c.0.s8 %v2318
      %v2320 = vlaneseq
      %v2321 = vshrl.u32 %v2320, 7
      %v2322 = vsub.s32 %v2319, %v2321
      %v2323 = vrot.slane %v2309, %v2322
      %v2324 = vcombine.low %v2301, %v2316
      %v2325 = vcombine.high %v2301, %v2316
      %v2327 = vunpack.c.l.s4 1934713408
      %v2328 = vunpack.c.0.s8 %v2327
      %v2329 = vlaneseq
      %v2330 = vshrl.u32 %v2329, 7
      %v2331 = vsub.s32 %v2328, %v2330
      %v2332 = vrot.slane %v2324, %v2331
      %v2334 = vunpack.c.l.s4 1934713408
      %v2335 = vunpack.c.0.s8 %v2334
      %v2336 = vlaneseq
      %v2337 = vshrl.u32 %v2336, 7
      %v2338 = vsub.s32 %v2335, %v2337
      %v2339 = vrot.slane %v2325, %v2338
      %v2340 = vcombine.low %v2308, %v2323
      %v2341 = vcombine.high %v2308, %v2323
      %v2343 = vunpack.c.l.s4 1934713408
      %v2344 = vunpack.c.0.s8 %v2343
      %v2345 = vlaneseq
      %v2346 = vshrl.u32 %v2345, 7
      %v2347 = vsub.s32 %v2344, %v2346
      %v2348 = vrot.slane %v2340, %v2347
      %v2350 = vunpack.c.l.s4 1934713408
      %v2351 = vunpack.c.0.s8 %v2350
      %v2352 = vlaneseq
      %v2353 = vshrl.u32 %v2352, 7
      %v2354 = vsub.s32 %v2351, %v2353
      %v2355 = vrot.slane %v2341, %v2354
      %v2356 = vcombine.high %v2332, 0.0
      %v2357 = vcombine.high %v2339, 0.0
      %v2358 = vcombine.high %v2348, 0.0
      %v2359 = vcombine.high %v2355, 0.0
      %2360 = vrot.lane.b32.xlu0 %v2287, 96
      %v2361 = vpop.permute.xlu0 %2360
      %2362 = vrot.lane.b32.xlu0 %v2292, 96
      %v2363 = vpop.permute.xlu0 %2362
      %v2366 = vcombine.high %v2361, 0.0
      %v2368 = vunpack.c.l.s4 1983009808
      %v2369 = vunpack.c.0.s8 %v2368
      %v2370 = vlaneseq
      %v2371 = vshrl.u32 %v2370, 7
      %v2372 = vsub.s32 %v2369, %v2371
      %v2373 = vrot.slane %v2361, %v2372
      %v2375 = vunpack.c.l.s4 1983009808
      %v2376 = vunpack.c.0.s8 %v2375
      %v2377 = vlaneseq
      %v2378 = vshrl.u32 %v2377, 7
      %v2379 = vsub.s32 %v2376, %v2378
      %v2380 = vrot.slane %v2366, %v2379
      %v2381 = vcombine.high %v2363, 0.0
      %v2383 = vunpack.c.l.s4 1983009808
      %v2384 = vunpack.c.0.s8 %v2383
      %v2385 = vlaneseq
      %v2386 = vshrl.u32 %v2385, 7
      %v2387 = vsub.s32 %v2384, %v2386
      %v2388 = vrot.slane %v2363, %v2387
      %v2390 = vunpack.c.l.s4 1983009808
      %v2391 = vunpack.c.0.s8 %v2390
      %v2392 = vlaneseq
      %v2393 = vshrl.u32 %v2392, 7
      %v2394 = vsub.s32 %v2391, %v2393
      %v2395 = vrot.slane %v2381, %v2394
      %v2396 = vcombine.low %v2373, %v2388
      %v2397 = vcombine.high %v2373, %v2388
      %v2399 = vunpack.c.l.s4 1934713408
      %v2400 = vunpack.c.0.s8 %v2399
      %v2401 = vlaneseq
      %v2402 = vshrl.u32 %v2401, 7
      %v2403 = vsub.s32 %v2400, %v2402
      %v2404 = vrot.slane %v2396, %v2403
      %v2406 = vunpack.c.l.s4 1934713408
      %v2407 = vunpack.c.0.s8 %v2406
      %v2408 = vlaneseq
      %v2409 = vshrl.u32 %v2408, 7
      %v2410 = vsub.s32 %v2407, %v2409
      %v2411 = vrot.slane %v2397, %v2410
      %v2412 = vcombine.low %v2380, %v2395
      %v2413 = vcombine.high %v2380, %v2395
      %v2415 = vunpack.c.l.s4 1934713408
      %v2416 = vunpack.c.0.s8 %v2415
      %v2417 = vlaneseq
      %v2418 = vshrl.u32 %v2417, 7
      %v2419 = vsub.s32 %v2416, %v2418
      %v2420 = vrot.slane %v2412, %v2419
      %v2422 = vunpack.c.l.s4 1934713408
      %v2423 = vunpack.c.0.s8 %v2422
      %v2424 = vlaneseq
      %v2425 = vshrl.u32 %v2424, 7
      %v2426 = vsub.s32 %v2423, %v2425
      %v2427 = vrot.slane %v2413, %v2426
      %v2428 = vcombine.high %v2404, 0.0
      %v2429 = vcombine.high %v2411, 0.0
      %v2430 = vcombine.high %v2420, 0.0
      %v2431 = vcombine.high %v2427, 0.0
      %2432 = vrot.lane.b32.xlu0 %v2287, 64
      %v2433 = vpop.permute.xlu0 %2432
      %2434 = vrot.lane.b32.xlu0 %v2292, 64
      %v2435 = vpop.permute.xlu0 %2434
      %v2438 = vcombine.high %v2433, 0.0
      %v2440 = vunpack.c.l.s4 1983009808
      %v2441 = vunpack.c.0.s8 %v2440
      %v2442 = vlaneseq
      %v2443 = vshrl.u32 %v2442, 7
      %v2444 = vsub.s32 %v2441, %v2443
      %v2445 = vrot.slane %v2433, %v2444
      %v2447 = vunpack.c.l.s4 1983009808
      %v2448 = vunpack.c.0.s8 %v2447
      %v2449 = vlaneseq
      %v2450 = vshrl.u32 %v2449, 7
      %v2451 = vsub.s32 %v2448, %v2450
      %v2452 = vrot.slane %v2438, %v2451
      %v2453 = vcombine.high %v2435, 0.0
      %v2455 = vunpack.c.l.s4 1983009808
      %v2456 = vunpack.c.0.s8 %v2455
      %v2457 = vlaneseq
      %v2458 = vshrl.u32 %v2457, 7
      %v2459 = vsub.s32 %v2456, %v2458
      %v2460 = vrot.slane %v2435, %v2459
      %v2462 = vunpack.c.l.s4 1983009808
      %v2463 = vunpack.c.0.s8 %v2462
      %v2464 = vlaneseq
      %v2465 = vshrl.u32 %v2464, 7
      %v2466 = vsub.s32 %v2463, %v2465
      %v2467 = vrot.slane %v2453, %v2466
      %v2468 = vcombine.low %v2445, %v2460
      %v2469 = vcombine.high %v2445, %v2460
      %v2471 = vunpack.c.l.s4 1934713408
      %v2472 = vunpack.c.0.s8 %v2471
      %v2473 = vlaneseq
      %v2474 = vshrl.u32 %v2473, 7
      %v2475 = vsub.s32 %v2472, %v2474
      %v2476 = vrot.slane %v2468, %v2475
      %v2478 = vunpack.c.l.s4 1934713408
      %v2479 = vunpack.c.0.s8 %v2478
      %v2480 = vlaneseq
      %v2481 = vshrl.u32 %v2480, 7
      %v2482 = vsub.s32 %v2479, %v2481
      %v2483 = vrot.slane %v2469, %v2482
      %v2484 = vcombine.low %v2452, %v2467
      %v2485 = vcombine.high %v2452, %v2467
      %v2487 = vunpack.c.l.s4 1934713408
      %v2488 = vunpack.c.0.s8 %v2487
      %v2489 = vlaneseq
      %v2490 = vshrl.u32 %v2489, 7
      %v2491 = vsub.s32 %v2488, %v2490
      %v2492 = vrot.slane %v2484, %v2491
      %v2494 = vunpack.c.l.s4 1934713408
      %v2495 = vunpack.c.0.s8 %v2494
      %v2496 = vlaneseq
      %v2497 = vshrl.u32 %v2496, 7
      %v2498 = vsub.s32 %v2495, %v2497
      %v2499 = vrot.slane %v2485, %v2498
      %v2500 = vcombine.high %v2476, 0.0
      %v2501 = vcombine.high %v2483, 0.0
      %v2502 = vcombine.high %v2492, 0.0
      %v2503 = vcombine.high %v2499, 0.0
      %v2504 = vcombine.low %v2332, %v2339
      %v2506 = vunpack.c.l.s4 1983009808
      %v2507 = vunpack.c.0.s8 %v2506
      %v2508 = vlaneseq
      %v2509 = vshrl.u32 %v2508, 7
      %v2510 = vsub.s32 %v2507, %v2509
      %v2511 = vrot.slane %v2504, %v2510
      %v2512 = vcombine.low %v2356, %v2357
      %v2514 = vunpack.c.l.s4 1983009808
      %v2515 = vunpack.c.0.s8 %v2514
      %v2516 = vlaneseq
      %v2517 = vshrl.u32 %v2516, 7
      %v2518 = vsub.s32 %v2515, %v2517
      %v2519 = vrot.slane %v2512, %v2518
      %v2520 = vcombine.low %v2348, %v2355
      %v2522 = vunpack.c.l.s4 1983009808
      %v2523 = vunpack.c.0.s8 %v2522
      %v2524 = vlaneseq
      %v2525 = vshrl.u32 %v2524, 7
      %v2526 = vsub.s32 %v2523, %v2525
      %v2527 = vrot.slane %v2520, %v2526
      %v2528 = vcombine.low %v2358, %v2359
      %v2530 = vunpack.c.l.s4 1983009808
      %v2531 = vunpack.c.0.s8 %v2530
      %v2532 = vlaneseq
      %v2533 = vshrl.u32 %v2532, 7
      %v2534 = vsub.s32 %v2531, %v2533
      %v2535 = vrot.slane %v2528, %v2534
      %v2536 = vcombine.low %v2511, %v2519
      %v2538 = vunpack.c.l.s4 1934713408
      %v2539 = vunpack.c.0.s8 %v2538
      %v2540 = vlaneseq
      %v2541 = vshrl.u32 %v2540, 7
      %v2542 = vsub.s32 %v2539, %v2541
      %v2543 = vrot.slane %v2536, %v2542
      %v2544 = vcombine.low %v2527, %v2535
      %v2546 = vunpack.c.l.s4 1934713408
      %v2547 = vunpack.c.0.s8 %v2546
      %v2548 = vlaneseq
      %v2549 = vshrl.u32 %v2548, 7
      %v2550 = vsub.s32 %v2547, %v2549
      %v2551 = vrot.slane %v2544, %v2550
      %v2552 = vcombine.low %v2543, %v2551
      %v2553 = vcombine.high %v2543, %v2551
      %v2554 = vcombine.low %v2404, %v2411
      %v2556 = vunpack.c.l.s4 1983009808
      %v2557 = vunpack.c.0.s8 %v2556
      %v2558 = vlaneseq
      %v2559 = vshrl.u32 %v2558, 7
      %v2560 = vsub.s32 %v2557, %v2559
      %v2561 = vrot.slane %v2554, %v2560
      %v2562 = vcombine.low %v2428, %v2429
      %v2564 = vunpack.c.l.s4 1983009808
      %v2565 = vunpack.c.0.s8 %v2564
      %v2566 = vlaneseq
      %v2567 = vshrl.u32 %v2566, 7
      %v2568 = vsub.s32 %v2565, %v2567
      %v2569 = vrot.slane %v2562, %v2568
      %v2570 = vcombine.low %v2420, %v2427
      %v2572 = vunpack.c.l.s4 1983009808
      %v2573 = vunpack.c.0.s8 %v2572
      %v2574 = vlaneseq
      %v2575 = vshrl.u32 %v2574, 7
      %v2576 = vsub.s32 %v2573, %v2575
      %v2577 = vrot.slane %v2570, %v2576
      %v2578 = vcombine.low %v2430, %v2431
      %v2580 = vunpack.c.l.s4 1983009808
      %v2581 = vunpack.c.0.s8 %v2580
      %v2582 = vlaneseq
      %v2583 = vshrl.u32 %v2582, 7
      %v2584 = vsub.s32 %v2581, %v2583
      %v2585 = vrot.slane %v2578, %v2584
      %v2586 = vcombine.low %v2561, %v2569
      %v2588 = vunpack.c.l.s4 1934713408
      %v2589 = vunpack.c.0.s8 %v2588
      %v2590 = vlaneseq
      %v2591 = vshrl.u32 %v2590, 7
      %v2592 = vsub.s32 %v2589, %v2591
      %v2593 = vrot.slane %v2586, %v2592
      %v2594 = vcombine.low %v2577, %v2585
      %v2596 = vunpack.c.l.s4 1934713408
      %v2597 = vunpack.c.0.s8 %v2596
      %v2598 = vlaneseq
      %v2599 = vshrl.u32 %v2598, 7
      %v2600 = vsub.s32 %v2597, %v2599
      %v2601 = vrot.slane %v2594, %v2600
      %v2602 = vcombine.low %v2593, %v2601
      %v2603 = vcombine.high %v2593, %v2601
      %v2604 = vcombine.low %v2476, %v2483
      %v2606 = vunpack.c.l.s4 1983009808
      %v2607 = vunpack.c.0.s8 %v2606
      %v2608 = vlaneseq
      %v2609 = vshrl.u32 %v2608, 7
      %v2610 = vsub.s32 %v2607, %v2609
      %v2611 = vrot.slane %v2604, %v2610
      %v2612 = vcombine.low %v2500, %v2501
      %v2614 = vunpack.c.l.s4 1983009808
      %v2615 = vunpack.c.0.s8 %v2614
      %v2616 = vlaneseq
      %v2617 = vshrl.u32 %v2616, 7
      %v2618 = vsub.s32 %v2615, %v2617
      %v2619 = vrot.slane %v2612, %v2618
      %v2620 = vcombine.low %v2492, %v2499
      %v2622 = vunpack.c.l.s4 1983009808
      %v2623 = vunpack.c.0.s8 %v2622
      %v2624 = vlaneseq
      %v2625 = vshrl.u32 %v2624, 7
      %v2626 = vsub.s32 %v2623, %v2625
      %v2627 = vrot.slane %v2620, %v2626
      %v2628 = vcombine.low %v2502, %v2503
      %v2630 = vunpack.c.l.s4 1983009808
      %v2631 = vunpack.c.0.s8 %v2630
      %v2632 = vlaneseq
      %v2633 = vshrl.u32 %v2632, 7
      %v2634 = vsub.s32 %v2631, %v2633
      %v2635 = vrot.slane %v2628, %v2634
      %v2636 = vcombine.low %v2611, %v2619
      %v2638 = vunpack.c.l.s4 1934713408
      %v2639 = vunpack.c.0.s8 %v2638
      %v2640 = vlaneseq
      %v2641 = vshrl.u32 %v2640, 7
      %v2642 = vsub.s32 %v2639, %v2641
      %v2643 = vrot.slane %v2636, %v2642
      %v2644 = vcombine.low %v2627, %v2635
      %v2646 = vunpack.c.l.s4 1934713408
      %v2647 = vunpack.c.0.s8 %v2646
      %v2648 = vlaneseq
      %v2649 = vshrl.u32 %v2648, 7
      %v2650 = vsub.s32 %v2647, %v2649
      %v2651 = vrot.slane %v2644, %v2650
      %v2652 = vcombine.low %v2643, %v2651
      %v2653 = vcombine.high %v2643, %v2651
      %v2655 = vsel %vm1425, %v2552, 0
      %v2658 = vsel %vm1425, %v2602, 0
      %2660 = vmatprep.subr.mxu0 0.0
      %2661 = vmatpush1.xpose.msra.mxu0 %v2658
      %2662 = vmatprep.subr.mxu0 0.0
      %2663 = vmatpush1.xpose.msra.mxu0 0.0
      %2664 = vmatprep.subr.mxu0 0.0
      %2665 = vmatpush1.xpose.msra.mxu0 0.0
      %2666 = vmatprep.subr.mxu0 0.0
      %2667 = vmatpush1.xpose.msra.mxu0 0.0
      %2668 = vmatprep.subr.mxu0 0.0
      %2669 = vmatpush1.xpose.msra.mxu0 0.0
      %2670 = vmatprep.subr.mxu0 0.0
      %2671 = vmatpush1.xpose.msra.mxu0 0.0
      %2672 = vmatprep.subr.mxu0 0.0
      %2673 = vmatpush1.xpose.msra.mxu0 0.0
      %2674 = vmatprep.subr.mxu0 0.0
      %2675 = vmatpush1.xpose.msra.mxu0 0.0
      %2676 = vmatprep.subr.mxu0 0.0
      %2677 = vmatpush1.xpose.msra.mxu0 0.0
      %2678 = vmatprep.subr.mxu0 0.0
      %2679 = vmatpush1.xpose.msra.mxu0 0.0
      %2680 = vmatprep.subr.mxu0 0.0
      %2681 = vmatpush1.xpose.msra.mxu0 0.0
      %2682 = vmatprep.subr.mxu0 0.0
      %2683 = vmatpush1.xpose.msra.mxu0 0.0
      %2684 = vmatprep.subr.mxu0 0.0
      %2685 = vmatpush1.xpose.msra.mxu0 0.0
      %2686 = vmatprep.subr.mxu0 0.0
      %2687 = vmatpush1.xpose.msra.mxu0 0.0
      %2688 = vmatprep.subr.mxu0 0.0
      %2689 = vmatpush1.xpose.msra.mxu0 0.0
      %2690 = vmatprep.subr.mxu0 0.0
      %2691 = vmatpush1.xpose.msra.mxu0 0.0
      %2692 = vmatprep.subr.mxu0 0.0
      %2693 = vmatpush1.xpose.msra.mxu0 0.0
      %2694 = vmatprep.subr.mxu0 0.0
      %2695 = vmatpush1.xpose.msra.mxu0 0.0
      %2696 = vmatprep.subr.mxu0 0.0
      %2697 = vmatpush1.xpose.msra.mxu0 0.0
      %2698 = vmatprep.subr.mxu0 0.0
      %2699 = vmatpush1.xpose.msra.mxu0 0.0
      %2700 = vmatprep.subr.mxu0 0.0
      %2701 = vmatpush1.xpose.msra.mxu0 0.0
      %2702 = vmatprep.subr.mxu0 0.0
      %2703 = vmatpush1.xpose.msra.mxu0 0.0
      %2704 = vmatprep.subr.mxu0 0.0
      %2705 = vmatpush1.xpose.msra.mxu0 0.0
      %2706 = vmatprep.subr.mxu0 0.0
      %2707 = vmatpush1.xpose.msra.mxu0 0.0
      %2708 = vmatprep.subr.mxu0 0.0
      %2709 = vmatpush1.xpose.msra.mxu0 0.0
      %2710 = vmatprep.subr.mxu0 0.0
      %2711 = vmatpush1.xpose.msra.mxu0 0.0
      %2712 = vmatprep.subr.mxu0 0.0
      %2713 = vmatpush1.xpose.msra.mxu0 0.0
      %2714 = vmatprep.subr.mxu0 0.0
      %2715 = vmatpush1.xpose.msra.mxu0 0.0
      %2716 = vmatprep.subr.mxu0 0.0
      %2717 = vmatpush1.xpose.msra.mxu0 0.0
      %2718 = vmatprep.subr.mxu0 0.0
      %2719 = vmatpush1.xpose.msra.mxu0 0.0
      %2720 = vmatprep.subr.mxu0 0.0
      %2721 = vmatpush1.xpose.msra.mxu0 0.0
      %2722 = vmatprep.subr.mxu0 0.0
      %2723 = vmatpush1.xpose.msra.mxu0 0.0
      %2724 = vmatprep.mubr.f32.mxu0 0.0
      %2725 = vmatmul.mubr.f32.gmra.mrb[0].mxu0 %v2655
      %v2726 = vpop.f32.mrb[0].mxu0
      %v2727 = vadd.f32 0.0, %v2726
      %v2728 = vpop.f32.mrb[0].mxu0
      %2729 = vdwg.mxu0
      %v2731 = vsel %vm1425, %v2553, 0
      %v2734 = vsel %vm1425, %v2603, 0
      %2736 = vmatprep.subr.mxu0 0.0
      %2737 = vmatpush1.xpose.msra.mxu0 %v2734
      %2738 = vmatprep.subr.mxu0 0.0
      %2739 = vmatpush1.xpose.msra.mxu0 0.0
      %2740 = vmatprep.subr.mxu0 0.0
      %2741 = vmatpush1.xpose.msra.mxu0 0.0
      %2742 = vmatprep.subr.mxu0 0.0
      %2743 = vmatpush1.xpose.msra.mxu0 0.0
      %2744 = vmatprep.subr.mxu0 0.0
      %2745 = vmatpush1.xpose.msra.mxu0 0.0
      %2746 = vmatprep.subr.mxu0 0.0
      %2747 = vmatpush1.xpose.msra.mxu0 0.0
      %2748 = vmatprep.subr.mxu0 0.0
      %2749 = vmatpush1.xpose.msra.mxu0 0.0
      %2750 = vmatprep.subr.mxu0 0.0
      %2751 = vmatpush1.xpose.msra.mxu0 0.0
      %2752 = vmatprep.subr.mxu0 0.0
      %2753 = vmatpush1.xpose.msra.mxu0 0.0
      %2754 = vmatprep.subr.mxu0 0.0
      %2755 = vmatpush1.xpose.msra.mxu0 0.0
      %2756 = vmatprep.subr.mxu0 0.0
      %2757 = vmatpush1.xpose.msra.mxu0 0.0
      %2758 = vmatprep.subr.mxu0 0.0
      %2759 = vmatpush1.xpose.msra.mxu0 0.0
      %2760 = vmatprep.subr.mxu0 0.0
      %2761 = vmatpush1.xpose.msra.mxu0 0.0
      %2762 = vmatprep.subr.mxu0 0.0
      %2763 = vmatpush1.xpose.msra.mxu0 0.0
      %2764 = vmatprep.subr.mxu0 0.0
      %2765 = vmatpush1.xpose.msra.mxu0 0.0
      %2766 = vmatprep.subr.mxu0 0.0
      %2767 = vmatpush1.xpose.msra.mxu0 0.0
      %2768 = vmatprep.subr.mxu0 0.0
      %2769 = vmatpush1.xpose.msra.mxu0 0.0
      %2770 = vmatprep.subr.mxu0 0.0
      %2771 = vmatpush1.xpose.msra.mxu0 0.0
      %2772 = vmatprep.subr.mxu0 0.0
      %2773 = vmatpush1.xpose.msra.mxu0 0.0
      %2774 = vmatprep.subr.mxu0 0.0
      %2775 = vmatpush1.xpose.msra.mxu0 0.0
      %2776 = vmatprep.subr.mxu0 0.0
      %2777 = vmatpush1.xpose.msra.mxu0 0.0
      %2778 = vmatprep.subr.mxu0 0.0
      %2779 = vmatpush1.xpose.msra.mxu0 0.0
      %2780 = vmatprep.subr.mxu0 0.0
      %2781 = vmatpush1.xpose.msra.mxu0 0.0
      %2782 = vmatprep.subr.mxu0 0.0
      %2783 = vmatpush1.xpose.msra.mxu0 0.0
      %2784 = vmatprep.subr.mxu0 0.0
      %2785 = vmatpush1.xpose.msra.mxu0 0.0
      %2786 = vmatprep.subr.mxu0 0.0
      %2787 = vmatpush1.xpose.msra.mxu0 0.0
      %2788 = vmatprep.subr.mxu0 0.0
      %2789 = vmatpush1.xpose.msra.mxu0 0.0
      %2790 = vmatprep.subr.mxu0 0.0
      %2791 = vmatpush1.xpose.msra.mxu0 0.0
      %2792 = vmatprep.subr.mxu0 0.0
      %2793 = vmatpush1.xpose.msra.mxu0 0.0
      %2794 = vmatprep.subr.mxu0 0.0
      %2795 = vmatpush1.xpose.msra.mxu0 0.0
      %2796 = vmatprep.subr.mxu0 0.0
      %2797 = vmatpush1.xpose.msra.mxu0 0.0
      %2798 = vmatprep.subr.mxu0 0.0
      %2799 = vmatpush1.xpose.msra.mxu0 0.0
      %2800 = vmatprep.mubr.f32.mxu0 0.0
      %2801 = vmatmul.mubr.f32.gmra.mrb[0].mxu0 %v2731
      %v2802 = vpop.f32.mrb[0].mxu0
      %v2803 = vadd.f32 0.0, %v2802
      %v2804 = vpop.f32.mrb[0].mxu0
      %2805 = vdwg.mxu0
      %v2806 = vmul.f32 %v2727, 0.25
      %v2807 = vmul.f32 %v2803, 0.25
      %v2808 = vadd.f32 %v2806, %v944
      %v2809 = vadd.f32 %v2807, %v944
      %v2810 = vsel %vm1582, %v2808, -inf
      %2811 = vmax.xlane.f32.xlu0 %v2810
      %v2812 = vpop.xlane.xlu0 %2811
      %v2813 = vsel %vm1582, %v2809, -inf
      %2814 = vmax.xlane.f32.xlu0 %v2813
      %v2815 = vpop.xlane.xlu0 %2814
      %v2816 = vsub.f32 %v2808, %v2812
      %v2817 = vsub.f32 %v2809, %v2815
      %v2818 = vmul.f32 %v2816, 1.442695
      %v2819 = vpow.pop %v2818
      %v2820 = vmul.f32 %v2817, 1.442695
      %v2821 = vpow.pop %v2820
      %v2822 = vsel %vm1582, %v2819, 0.0
      %2823 = vadd.xlane.f32.xlu0 %v2822
      %v2824 = vpop.xlane.xlu0 %2823
      %v2825 = vsel %vm1582, %v2821, 0.0
      %2826 = vadd.xlane.f32.xlu0 %v2825
      %v2827 = vpop.xlane.xlu0 %2826
      %v2828 = vrcp.pop %v2824
      %v2829 = vrcp.pop %v2827
      %v2830 = vmul.f32 %v2819, %v2828
      %v2831 = vmul.f32 %v2821, %v2829
      %v2833 = vsel %vm1582, %v2830, 0
      %2835 = vmatprep.subr.mxu0 0.0
      %2836 = vmatpush1.msra.mxu0 %v2652
      %2837 = vmatprep.subr.mxu0 0.0
      %2838 = vmatpush1.msra.mxu0 0.0
      %2839 = vmatprep.subr.mxu0 0.0
      %2840 = vmatpush1.msra.mxu0 0.0
      %2841 = vmatprep.subr.mxu0 0.0
      %2842 = vmatpush1.msra.mxu0 0.0
      %2843 = vmatprep.subr.mxu0 0.0
      %2844 = vmatpush1.msra.mxu0 0.0
      %2845 = vmatprep.subr.mxu0 0.0
      %2846 = vmatpush1.msra.mxu0 0.0
      %2847 = vmatprep.subr.mxu0 0.0
      %2848 = vmatpush1.msra.mxu0 0.0
      %2849 = vmatprep.subr.mxu0 0.0
      %2850 = vmatpush1.msra.mxu0 0.0
      %2851 = vmatprep.subr.mxu0 0.0
      %2852 = vmatpush1.msra.mxu0 0.0
      %2853 = vmatprep.subr.mxu0 0.0
      %2854 = vmatpush1.msra.mxu0 0.0
      %2855 = vmatprep.subr.mxu0 0.0
      %2856 = vmatpush1.msra.mxu0 0.0
      %2857 = vmatprep.subr.mxu0 0.0
      %2858 = vmatpush1.msra.mxu0 0.0
      %2859 = vmatprep.subr.mxu0 0.0
      %2860 = vmatpush1.msra.mxu0 0.0
      %2861 = vmatprep.subr.mxu0 0.0
      %2862 = vmatpush1.msra.mxu0 0.0
      %2863 = vmatprep.subr.mxu0 0.0
      %2864 = vmatpush1.msra.mxu0 0.0
      %2865 = vmatprep.subr.mxu0 0.0
      %2866 = vmatpush1.msra.mxu0 0.0
      %2867 = vmatprep.subr.mxu0 0.0
      %2868 = vmatpush1.msra.mxu0 0.0
      %2869 = vmatprep.subr.mxu0 0.0
      %2870 = vmatpush1.msra.mxu0 0.0
      %2871 = vmatprep.subr.mxu0 0.0
      %2872 = vmatpush1.msra.mxu0 0.0
      %2873 = vmatprep.subr.mxu0 0.0
      %2874 = vmatpush1.msra.mxu0 0.0
      %2875 = vmatprep.subr.mxu0 0.0
      %2876 = vmatpush1.msra.mxu0 0.0
      %2877 = vmatprep.subr.mxu0 0.0
      %2878 = vmatpush1.msra.mxu0 0.0
      %2879 = vmatprep.subr.mxu0 0.0
      %2880 = vmatpush1.msra.mxu0 0.0
      %2881 = vmatprep.subr.mxu0 0.0
      %2882 = vmatpush1.msra.mxu0 0.0
      %2883 = vmatprep.subr.mxu0 0.0
      %2884 = vmatpush1.msra.mxu0 0.0
      %2885 = vmatprep.subr.mxu0 0.0
      %2886 = vmatpush1.msra.mxu0 0.0
      %2887 = vmatprep.subr.mxu0 0.0
      %2888 = vmatpush1.msra.mxu0 0.0
      %2889 = vmatprep.subr.mxu0 0.0
      %2890 = vmatpush1.msra.mxu0 0.0
      %2891 = vmatprep.subr.mxu0 0.0
      %2892 = vmatpush1.msra.mxu0 0.0
      %2893 = vmatprep.subr.mxu0 0.0
      %2894 = vmatpush1.msra.mxu0 0.0
      %2895 = vmatprep.subr.mxu0 0.0
      %2896 = vmatpush1.msra.mxu0 0.0
      %2897 = vmatprep.subr.mxu0 0.0
      %2898 = vmatpush1.msra.mxu0 0.0
      %2899 = vmatprep.mubr.f32.mxu0 0.0
      %2900 = vmatmul.mubr.f32.gmra.mrb[0].mxu0 %v2833
      %v2901 = vpop.f32.mrb[0].mxu0
      %v2902 = vadd.f32 0.0, %v2901
      %v2903 = vpop.f32.mrb[0].mxu0
      %2904 = vdwg.mxu0
      %v2906 = vsel %vm1582, %v2831, 0
      %2908 = vmatprep.subr.mxu0 0.0
      %2909 = vmatpush1.msra.mxu0 %v2653
      %2910 = vmatprep.subr.mxu0 0.0
      %2911 = vmatpush1.msra.mxu0 0.0
      %2912 = vmatprep.subr.mxu0 0.0
      %2913 = vmatpush1.msra.mxu0 0.0
      %2914 = vmatprep.subr.mxu0 0.0
      %2915 = vmatpush1.msra.mxu0 0.0
      %2916 = vmatprep.subr.mxu0 0.0
      %2917 = vmatpush1.msra.mxu0 0.0
      %2918 = vmatprep.subr.mxu0 0.0
      %2919 = vmatpush1.msra.mxu0 0.0
      %2920 = vmatprep.subr.mxu0 0.0
      %2921 = vmatpush1.msra.mxu0 0.0
      %2922 = vmatprep.subr.mxu0 0.0
      %2923 = vmatpush1.msra.mxu0 0.0
      %2924 = vmatprep.subr.mxu0 0.0
      %2925 = vmatpush1.msra.mxu0 0.0
      %2926 = vmatprep.subr.mxu0 0.0
      %2927 = vmatpush1.msra.mxu0 0.0
      %2928 = vmatprep.subr.mxu0 0.0
      %2929 = vmatpush1.msra.mxu0 0.0
      %2930 = vmatprep.subr.mxu0 0.0
      %2931 = vmatpush1.msra.mxu0 0.0
      %2932 = vmatprep.subr.mxu0 0.0
      %2933 = vmatpush1.msra.mxu0 0.0
      %2934 = vmatprep.subr.mxu0 0.0
      %2935 = vmatpush1.msra.mxu0 0.0
      %2936 = vmatprep.subr.mxu0 0.0
      %2937 = vmatpush1.msra.mxu0 0.0
      %2938 = vmatprep.subr.mxu0 0.0
      %2939 = vmatpush1.msra.mxu0 0.0
      %2940 = vmatprep.subr.mxu0 0.0
      %2941 = vmatpush1.msra.mxu0 0.0
      %2942 = vmatprep.subr.mxu0 0.0
      %2943 = vmatpush1.msra.mxu0 0.0
      %2944 = vmatprep.subr.mxu0 0.0
      %2945 = vmatpush1.msra.mxu0 0.0
      %2946 = vmatprep.subr.mxu0 0.0
      %2947 = vmatpush1.msra.mxu0 0.0
      %2948 = vmatprep.subr.mxu0 0.0
      %2949 = vmatpush1.msra.mxu0 0.0
      %2950 = vmatprep.subr.mxu0 0.0
      %2951 = vmatpush1.msra.mxu0 0.0
      %2952 = vmatprep.subr.mxu0 0.0
      %2953 = vmatpush1.msra.mxu0 0.0
      %2954 = vmatprep.subr.mxu0 0.0
      %2955 = vmatpush1.msra.mxu0 0.0
      %2956 = vmatprep.subr.mxu0 0.0
      %2957 = vmatpush1.msra.mxu0 0.0
      %2958 = vmatprep.subr.mxu0 0.0
      %2959 = vmatpush1.msra.mxu0 0.0
      %2960 = vmatprep.subr.mxu0 0.0
      %2961 = vmatpush1.msra.mxu0 0.0
      %2962 = vmatprep.subr.mxu0 0.0
      %2963 = vmatpush1.msra.mxu0 0.0
      %2964 = vmatprep.subr.mxu0 0.0
      %2965 = vmatpush1.msra.mxu0 0.0
      %2966 = vmatprep.subr.mxu0 0.0
      %2967 = vmatpush1.msra.mxu0 0.0
      %2968 = vmatprep.subr.mxu0 0.0
      %2969 = vmatpush1.msra.mxu0 0.0
      %2970 = vmatprep.subr.mxu0 0.0
      %2971 = vmatpush1.msra.mxu0 0.0
      %2972 = vmatprep.mubr.f32.mxu0 0.0
      %2973 = vmatmul.mubr.f32.gmra.mrb[0].mxu0 %v2906
      %v2974 = vpop.f32.mrb[0].mxu0
      %v2975 = vadd.f32 0.0, %v2974
      %v2976 = vpop.f32.mrb[0].mxu0
      %2977 = vdwg.mxu0
      %v2978 = vcombine.high %v2902, 0.0
      %v2980 = vunpack.c.l.s4 1983009808
      %v2981 = vunpack.c.0.s8 %v2980
      %v2982 = vlaneseq
      %v2983 = vshrl.u32 %v2982, 7
      %v2984 = vsub.s32 %v2981, %v2983
      %v2985 = vrot.slane %v2902, %v2984
      %v2987 = vunpack.c.l.s4 1983009808
      %v2988 = vunpack.c.0.s8 %v2987
      %v2989 = vlaneseq
      %v2990 = vshrl.u32 %v2989, 7
      %v2991 = vsub.s32 %v2988, %v2990
      %v2992 = vrot.slane %v2978, %v2991
      %v2993 = vcombine.high %v2975, 0.0
      %v2995 = vunpack.c.l.s4 1983009808
      %v2996 = vunpack.c.0.s8 %v2995
      %v2997 = vlaneseq
      %v2998 = vshrl.u32 %v2997, 7
      %v2999 = vsub.s32 %v2996, %v2998
      %v3000 = vrot.slane %v2975, %v2999
      %v3002 = vunpack.c.l.s4 1983009808
      %v3003 = vunpack.c.0.s8 %v3002
      %v3004 = vlaneseq
      %v3005 = vshrl.u32 %v3004, 7
      %v3006 = vsub.s32 %v3003, %v3005
      %v3007 = vrot.slane %v2993, %v3006
      %v3008 = vcombine.low %v2985, %v3000
      %v3009 = vcombine.high %v2985, %v3000
      %v3011 = vunpack.c.l.s4 1934713408
      %v3012 = vunpack.c.0.s8 %v3011
      %v3013 = vlaneseq
      %v3014 = vshrl.u32 %v3013, 7
      %v3015 = vsub.s32 %v3012, %v3014
      %v3016 = vrot.slane %v3008, %v3015
      %v3018 = vunpack.c.l.s4 1934713408
      %v3019 = vunpack.c.0.s8 %v3018
      %v3020 = vlaneseq
      %v3021 = vshrl.u32 %v3020, 7
      %v3022 = vsub.s32 %v3019, %v3021
      %v3023 = vrot.slane %v3009, %v3022
      %v3024 = vcombine.low %v2992, %v3007
      %v3025 = vcombine.high %v2992, %v3007
      %v3027 = vunpack.c.l.s4 1934713408
      %v3028 = vunpack.c.0.s8 %v3027
      %v3029 = vlaneseq
      %v3030 = vshrl.u32 %v3029, 7
      %v3031 = vsub.s32 %v3028, %v3030
      %v3032 = vrot.slane %v3024, %v3031
      %v3034 = vunpack.c.l.s4 1934713408
      %v3035 = vunpack.c.0.s8 %v3034
      %v3036 = vlaneseq
      %v3037 = vshrl.u32 %v3036, 7
      %v3038 = vsub.s32 %v3035, %v3037
      %v3039 = vrot.slane %v3025, %v3038
      %v3040 = vcombine.high %v3016, 0.0
      %v3041 = vcombine.high %v3023, 0.0
      %v3042 = vcombine.high %v3032, 0.0
      %v3043 = vcombine.high %v3039, 0.0
      %v3044 = vcombine.low %v3016, %v3023
      %v3046 = vunpack.c.l.s4 1983009808
      %v3047 = vunpack.c.0.s8 %v3046
      %v3048 = vlaneseq
      %v3049 = vshrl.u32 %v3048, 7
      %v3050 = vsub.s32 %v3047, %v3049
      %v3051 = vrot.slane %v3044, %v3050
      %v3052 = vcombine.low %v3040, %v3041
      %v3054 = vunpack.c.l.s4 1983009808
      %v3055 = vunpack.c.0.s8 %v3054
      %v3056 = vlaneseq
      %v3057 = vshrl.u32 %v3056, 7
      %v3058 = vsub.s32 %v3055, %v3057
      %v3059 = vrot.slane %v3052, %v3058
      %v3060 = vcombine.low %v3032, %v3039
      %v3062 = vunpack.c.l.s4 1983009808
      %v3063 = vunpack.c.0.s8 %v3062
      %v3064 = vlaneseq
      %v3065 = vshrl.u32 %v3064, 7
      %v3066 = vsub.s32 %v3063, %v3065
      %v3067 = vrot.slane %v3060, %v3066
      %v3068 = vcombine.low %v3042, %v3043
      %v3070 = vunpack.c.l.s4 1983009808
      %v3071 = vunpack.c.0.s8 %v3070
      %v3072 = vlaneseq
      %v3073 = vshrl.u32 %v3072, 7
      %v3074 = vsub.s32 %v3071, %v3073
      %v3075 = vrot.slane %v3068, %v3074
      %v3076 = vcombine.low %v3051, %v3059
      %v3078 = vunpack.c.l.s4 1934713408
      %v3079 = vunpack.c.0.s8 %v3078
      %v3080 = vlaneseq
      %v3081 = vshrl.u32 %v3080, 7
      %v3082 = vsub.s32 %v3079, %v3081
      %v3083 = vrot.slane %v3076, %v3082
      %v3084 = vcombine.low %v3067, %v3075
      %v3086 = vunpack.c.l.s4 1934713408
      %v3087 = vunpack.c.0.s8 %v3086
      %v3088 = vlaneseq
      %v3089 = vshrl.u32 %v3088, 7
      %v3090 = vsub.s32 %v3087, %v3089
      %v3091 = vrot.slane %v3084, %v3090
      %v3092 = vcombine.low %v3083, %v3091
      %v3093 = vcombine.high %v3083, %v3091
      %3095 = vrot.lane.b32.xlu0 %v3093, 16
      %v3096 = vpop.permute.xlu0 %3095
      %v3098 = vsel %vm1425, %v3092, %v3096
      %s3099 = scalar_lea.vmem %s12, 32
      %v3100 = vld [vmem:[%s3099] sm:$0xff]
      %v3101 = vld [vmem:[%s3099 + $0x8] sm:$0xff]
      %v3102 = vld [vmem:[%s3099 + $0x10] sm:$0xff]
      %v3103 = vld [vmem:[%s3099 + $0x18] sm:$0xff]
      %s3104 = scalar_lea.vmem %s13, 1
      %v3105 = vld [vmem:[%s3104] sm:$0x1]
      %v3107 = vlaneseq
      %v3108 = vshrl.u32 %v3107, 7
      %v3109 = vsub.s32 0, %v3108
      %v3110 = vrot.slane %v3105, %v3109
      %v3113 = vsel %vm827, %v3098, 0
      %3115 = vmatprep.subr.mxu0 0.0
      %3116 = vmatpush1.msra.mxu0 %v3100
      %3117 = vmatprep.subr.mxu0 0.0
      %3118 = vmatpush1.msra.mxu0 %v3101
      %3119 = vmatprep.subr.mxu0 0.0
      %3120 = vmatpush1.msra.mxu0 %v3102
      %3121 = vmatprep.subr.mxu0 0.0
      %3122 = vmatpush1.msra.mxu0 %v3103
      %3123 = vmatprep.subr.mxu0 0.0
      %3124 = vmatpush1.msra.mxu0 0.0
      %3125 = vmatprep.subr.mxu0 0.0
      %3126 = vmatpush1.msra.mxu0 0.0
      %3127 = vmatprep.subr.mxu0 0.0
      %3128 = vmatpush1.msra.mxu0 0.0
      %3129 = vmatprep.subr.mxu0 0.0
      %3130 = vmatpush1.msra.mxu0 0.0
      %3131 = vmatprep.subr.mxu0 0.0
      %3132 = vmatpush1.msra.mxu0 0.0
      %3133 = vmatprep.subr.mxu0 0.0
      %3134 = vmatpush1.msra.mxu0 0.0
      %3135 = vmatprep.subr.mxu0 0.0
      %3136 = vmatpush1.msra.mxu0 0.0
      %3137 = vmatprep.subr.mxu0 0.0
      %3138 = vmatpush1.msra.mxu0 0.0
      %3139 = vmatprep.subr.mxu0 0.0
      %3140 = vmatpush1.msra.mxu0 0.0
      %3141 = vmatprep.subr.mxu0 0.0
      %3142 = vmatpush1.msra.mxu0 0.0
      %3143 = vmatprep.subr.mxu0 0.0
      %3144 = vmatpush1.msra.mxu0 0.0
      %3145 = vmatprep.subr.mxu0 0.0
      %3146 = vmatpush1.msra.mxu0 0.0
      %3147 = vmatprep.subr.mxu0 0.0
      %3148 = vmatpush1.msra.mxu0 0.0
      %3149 = vmatprep.subr.mxu0 0.0
      %3150 = vmatpush1.msra.mxu0 0.0
      %3151 = vmatprep.subr.mxu0 0.0
      %3152 = vmatpush1.msra.mxu0 0.0
      %3153 = vmatprep.subr.mxu0 0.0
      %3154 = vmatpush1.msra.mxu0 0.0
      %3155 = vmatprep.subr.mxu0 0.0
      %3156 = vmatpush1.msra.mxu0 0.0
      %3157 = vmatprep.subr.mxu0 0.0
      %3158 = vmatpush1.msra.mxu0 0.0
      %3159 = vmatprep.subr.mxu0 0.0
      %3160 = vmatpush1.msra.mxu0 0.0
      %3161 = vmatprep.subr.mxu0 0.0
      %3162 = vmatpush1.msra.mxu0 0.0
      %3163 = vmatprep.subr.mxu0 0.0
      %3164 = vmatpush1.msra.mxu0 0.0
      %3165 = vmatprep.subr.mxu0 0.0
      %3166 = vmatpush1.msra.mxu0 0.0
      %3167 = vmatprep.subr.mxu0 0.0
      %3168 = vmatpush1.msra.mxu0 0.0
      %3169 = vmatprep.subr.mxu0 0.0
      %3170 = vmatpush1.msra.mxu0 0.0
      %3171 = vmatprep.subr.mxu0 0.0
      %3172 = vmatpush1.msra.mxu0 0.0
      %3173 = vmatprep.subr.mxu0 0.0
      %3174 = vmatpush1.msra.mxu0 0.0
      %3175 = vmatprep.subr.mxu0 0.0
      %3176 = vmatpush1.msra.mxu0 0.0
      %3177 = vmatprep.subr.mxu0 0.0
      %3178 = vmatpush1.msra.mxu0 0.0
      %3179 = vmatprep.mubr.f32.mxu0 0.0
      %3180 = vmatmul.mubr.f32.gmra.mrb[0].mxu0 %v3113
      %v3181 = vpop.f32.mrb[0].mxu0
      %v3182 = vadd.f32 %v3110, %v3181
      %v3183 = vpop.f32.mrb[0].mxu0
      %3184 = vdwg.mxu0
      %v3185 = vadd.f32 %v2172, %v3182
      %s3186 = scalar_lea.vmem %s14, 1
      %v3187 = vld [vmem:[%s3186] sm:$0x1]
      %s3188 = scalar_lea.vmem %s15, 1
      %v3189 = vld [vmem:[%s3188] sm:$0x1]
      %v3190 = vsel %vm827, %v3185, 0.0
      %3191 = vadd.xlane.f32.xlu0 %v3190
      %v3192 = vpop.xlane.xlu0 %3191
      %v3193 = vmul.f32 %v3192, %v952
      %v3194 = vsub.f32 %v3185, %v3193
      %v3195 = vmul.f32 %v3194, %v3194
      %v3196 = vsel %vm827, %v3195, 0.0
      %3197 = vadd.xlane.f32.xlu0 %v3196
      %v3198 = vpop.xlane.xlu0 %3197
      %v3199 = vmul.f32 %v3198, %v952
      %v3200 = vadd.f32 %v3199, 1e-05
      %v3201 = vrsqrt.pop %v3200
      %v3202 = vmul.f32 %v3194, %v3201
      %v3204 = vlaneseq
      %v3205 = vshrl.u32 %v3204, 7
      %v3206 = vsub.s32 0, %v3205
      %v3207 = vrot.slane %v3187, %v3206
      %v3209 = vmul.f32 %v3202, %v3207
      %v3211 = vlaneseq
      %v3212 = vshrl.u32 %v3211, 7
      %v3213 = vsub.s32 0, %v3212
      %v3214 = vrot.slane %v3189, %v3213
      %v3216 = vadd.f32 %v3209, %v3214
      %s3217 = scalar_lea.vmem %s16, 32
      %v3218 = vld [vmem:[%s3217] sm:$0xff]
      %v3219 = vld [vmem:[%s3217 + $0x8] sm:$0xff]
      %v3220 = vld [vmem:[%s3217 + $0x10] sm:$0xff]
      %v3221 = vld [vmem:[%s3217 + $0x18] sm:$0xff]
      %s3222 = scalar_lea.vmem %s17, 1
      %v3223 = vld [vmem:[%s3222] sm:$0x1]
      %v3225 = vlaneseq
      %v3226 = vshrl.u32 %v3225, 7
      %v3227 = vsub.s32 0, %v3226
      %v3228 = vrot.slane %v3223, %v3227
      %v3231 = vsel %vm827, %v3216, 0
      %3233 = vmatprep.subr.mxu0 0.0
      %3234 = vmatpush1.msra.mxu0 %v3218
      %3235 = vmatprep.subr.mxu0 0.0
      %3236 = vmatpush1.msra.mxu0 %v3219
      %3237 = vmatprep.subr.mxu0 0.0
      %3238 = vmatpush1.msra.mxu0 %v3220
      %3239 = vmatprep.subr.mxu0 0.0
      %3240 = vmatpush1.msra.mxu0 %v3221
      %3241 = vmatprep.subr.mxu0 0.0
      %3242 = vmatpush1.msra.mxu0 0.0
      %3243 = vmatprep.subr.mxu0 0.0
      %3244 = vmatpush1.msra.mxu0 0.0
      %3245 = vmatprep.subr.mxu0 0.0
      %3246 = vmatpush1.msra.mxu0 0.0
      %3247 = vmatprep.subr.mxu0 0.0
      %3248 = vmatpush1.msra.mxu0 0.0
      %3249 = vmatprep.subr.mxu0 0.0
      %3250 = vmatpush1.msra.mxu0 0.0
      %3251 = vmatprep.subr.mxu0 0.0
      %3252 = vmatpush1.msra.mxu0 0.0
      %3253 = vmatprep.subr.mxu0 0.0
      %3254 = vmatpush1.msra.mxu0 0.0
      %3255 = vmatprep.subr.mxu0 0.0
      %3256 = vmatpush1.msra.mxu0 0.0
      %3257 = vmatprep.subr.mxu0 0.0
      %3258 = vmatpush1.msra.mxu0 0.0
      %3259 = vmatprep.subr.mxu0 0.0
      %3260 = vmatpush1.msra.mxu0 0.0
      %3261 = vmatprep.subr.mxu0 0.0
      %3262 = vmatpush1.msra.mxu0 0.0
      %3263 = vmatprep.subr.mxu0 0.0
      %3264 = vmatpush1.msra.mxu0 0.0
      %3265 = vmatprep.subr.mxu0 0.0
      %3266 = vmatpush1.msra.mxu0 0.0
      %3267 = vmatprep.subr.mxu0 0.0
      %3268 = vmatpush1.msra.mxu0 0.0
      %3269 = vmatprep.subr.mxu0 0.0
      %3270 = vmatpush1.msra.mxu0 0.0
      %3271 = vmatprep.subr.mxu0 0.0
      %3272 = vmatpush1.msra.mxu0 0.0
      %3273 = vmatprep.subr.mxu0 0.0
      %3274 = vmatpush1.msra.mxu0 0.0
      %3275 = vmatprep.subr.mxu0 0.0
      %3276 = vmatpush1.msra.mxu0 0.0
      %3277 = vmatprep.subr.mxu0 0.0
      %3278 = vmatpush1.msra.mxu0 0.0
      %3279 = vmatprep.subr.mxu0 0.0
      %3280 = vmatpush1.msra.mxu0 0.0
      %3281 = vmatprep.subr.mxu0 0.0
      %3282 = vmatpush1.msra.mxu0 0.0
      %3283 = vmatprep.subr.mxu0 0.0
      %3284 = vmatpush1.msra.mxu0 0.0
      %3285 = vmatprep.subr.mxu0 0.0
      %3286 = vmatpush1.msra.mxu0 0.0
      %3287 = vmatprep.subr.mxu0 0.0
      %3288 = vmatpush1.msra.mxu0 0.0
      %3289 = vmatprep.subr.mxu0 0.0
      %3290 = vmatpush1.msra.mxu0 0.0
      %3291 = vmatprep.subr.mxu0 0.0
      %3292 = vmatpush1.msra.mxu0 0.0
      %3293 = vmatprep.subr.mxu0 0.0
      %3294 = vmatpush1.msra.mxu0 0.0
      %3295 = vmatprep.subr.mxu0 0.0
      %3296 = vmatpush1.msra.mxu0 0.0
      %3297 = vmatprep.mubr.f32.mxu0 0.0
      %3298 = vmatmul.mubr.f32.gmra.mrb[0].mxu0 %v3231
      %v3299 = vpop.f32.mrb[0].mxu0
      %v3300 = vadd.f32 %v3228, %v3299
      %v3301 = vpop.f32.mrb[0].mxu0
      %3302 = vdwg.mxu0
      %v3303 = vmul.f32 %v3300, %v3300
      %v3304 = vmul.f32 %v3300, %v3303
      %v3305 = vmul.f32 %v3304, 0.044715
      %v3306 = vadd.f32 %v3300, %v3305
      %v3307 = vmul.f32 %v3306, 0.7978846
      %v3308 = vtanh.pop %v3307
      %v3309 = vadd.f32 %v3308, 1.0
      %v3310 = vmul.f32 %v3309, 0.5
      %v3311 = vmul.f32 %v3300, %v3310
      %s3312 = scalar_lea.vmem %s18, 128
      %v3313 = vld [vmem:[%s3312] sm:$0xff]
      %v3314 = vld [vmem:[%s3312 + $0x8] sm:$0xff]
      %v3315 = vld [vmem:[%s3312 + $0x10] sm:$0xff]
      %v3316 = vld [vmem:[%s3312 + $0x18] sm:$0xff]
      %v3317 = vld [vmem:[%s3312 + $0x20] sm:$0xff]
      %v3318 = vld [vmem:[%s3312 + $0x28] sm:$0xff]
      %v3319 = vld [vmem:[%s3312 + $0x30] sm:$0xff]
      %v3320 = vld [vmem:[%s3312 + $0x38] sm:$0xff]
      %v3321 = vld [vmem:[%s3312 + $0x40] sm:$0xff]
      %v3322 = vld [vmem:[%s3312 + $0x48] sm:$0xff]
      %v3323 = vld [vmem:[%s3312 + $0x50] sm:$0xff]
      %v3324 = vld [vmem:[%s3312 + $0x58] sm:$0xff]
      %v3325 = vld [vmem:[%s3312 + $0x60] sm:$0xff]
      %v3326 = vld [vmem:[%s3312 + $0x68] sm:$0xff]
      %v3327 = vld [vmem:[%s3312 + $0x70] sm:$0xff]
      %v3328 = vld [vmem:[%s3312 + $0x78] sm:$0xff]
      %s3329 = scalar_lea.vmem %s19, 1
      %v3330 = vld [vmem:[%s3329] sm:$0x1]
      %v3332 = vlaneseq
      %v3333 = vshrl.u32 %v3332, 7
      %v3334 = vsub.s32 0, %v3333
      %v3335 = vrot.slane %v3330, %v3334
      %3337 = vmatprep.subr.mxu0 0.0
      %3338 = vmatpush1.msra.mxu0 %v3313
      %3339 = vmatprep.subr.mxu0 0.0
      %3340 = vmatpush1.msra.mxu0 %v3314
      %3341 = vmatprep.subr.mxu0 0.0
      %3342 = vmatpush1.msra.mxu0 %v3315
      %3343 = vmatprep.subr.mxu0 0.0
      %3344 = vmatpush1.msra.mxu0 %v3316
      %3345 = vmatprep.subr.mxu0 0.0
      %3346 = vmatpush1.msra.mxu0 %v3317
      %3347 = vmatprep.subr.mxu0 0.0
      %3348 = vmatpush1.msra.mxu0 %v3318
      %3349 = vmatprep.subr.mxu0 0.0
      %3350 = vmatpush1.msra.mxu0 %v3319
      %3351 = vmatprep.subr.mxu0 0.0
      %3352 = vmatpush1.msra.mxu0 %v3320
      %3353 = vmatprep.subr.mxu0 0.0
      %3354 = vmatpush1.msra.mxu0 %v3321
      %3355 = vmatprep.subr.mxu0 0.0
      %3356 = vmatpush1.msra.mxu0 %v3322
      %3357 = vmatprep.subr.mxu0 0.0
      %3358 = vmatpush1.msra.mxu0 %v3323
      %3359 = vmatprep.subr.mxu0 0.0
      %3360 = vmatpush1.msra.mxu0 %v3324
      %3361 = vmatprep.subr.mxu0 0.0
      %3362 = vmatpush1.msra.mxu0 %v3325
      %3363 = vmatprep.subr.mxu0 0.0
      %3364 = vmatpush1.msra.mxu0 %v3326
      %3365 = vmatprep.subr.mxu0 0.0
      %3366 = vmatpush1.msra.mxu0 %v3327
      %3367 = vmatprep.subr.mxu0 0.0
      %3368 = vmatpush1.msra.mxu0 %v3328
      %3369 = vmatprep.subr.mxu0 0.0
      %3370 = vmatpush1.msra.mxu0 0.0
      %3371 = vmatprep.subr.mxu0 0.0
      %3372 = vmatpush1.msra.mxu0 0.0
      %3373 = vmatprep.subr.mxu0 0.0
      %3374 = vmatpush1.msra.mxu0 0.0
      %3375 = vmatprep.subr.mxu0 0.0
      %3376 = vmatpush1.msra.mxu0 0.0
      %3377 = vmatprep.subr.mxu0 0.0
      %3378 = vmatpush1.msra.mxu0 0.0
      %3379 = vmatprep.subr.mxu0 0.0
      %3380 = vmatpush1.msra.mxu0 0.0
      %3381 = vmatprep.subr.mxu0 0.0
      %3382 = vmatpush1.msra.mxu0 0.0
      %3383 = vmatprep.subr.mxu0 0.0
      %3384 = vmatpush1.msra.mxu0 0.0
      %3385 = vmatprep.subr.mxu0 0.0
      %3386 = vmatpush1.msra.mxu0 0.0
      %3387 = vmatprep.subr.mxu0 0.0
      %3388 = vmatpush1.msra.mxu0 0.0
      %3389 = vmatprep.subr.mxu0 0.0
      %3390 = vmatpush1.msra.mxu0 0.0
      %3391 = vmatprep.subr.mxu0 0.0
      %3392 = vmatpush1.msra.mxu0 0.0
      %3393 = vmatprep.subr.mxu0 0.0
      %3394 = vmatpush1.msra.mxu0 0.0
      %3395 = vmatprep.subr.mxu0 0.0
      %3396 = vmatpush1.msra.mxu0 0.0
      %3397 = vmatprep.subr.mxu0 0.0
      %3398 = vmatpush1.msra.mxu0 0.0
      %3399 = vmatprep.subr.mxu0 0.0
      %3400 = vmatpush1.msra.mxu0 0.0
      %3401 = vmatprep.mubr.f32.mxu0 0.0
      %3402 = vmatmul.mubr.f32.gmra.mrb[0].mxu0 %v3311
      %v3403 = vpop.f32.mrb[0].mxu0
      %v3404 = vadd.f32 %v3335, %v3403
      %v3405 = vpop.f32.mrb[0].mxu0
      %3406 = vdwg.mxu0
      %v3407 = vadd.f32 %v3185, %v3404
      %3408 = vst.msk [vmem:[%s712] sm:$0xff] %vm827, %v3407
      %p3409 = scmp.lt.s32.totalorder %s34, 1
      %s3410 = scalar_select %p3409, %s34, 1
      %s3411 = smul.addr %s3410, 8
      %s3412 = scalar_lea.vmem %s20, %s3411
      %p3413 = scmp.lt.s32.totalorder %s34, 1
      %s3414 = scalar_select %p3413, %s34, 1
      %s3415 = smul.addr %s3414, 8
      %s3416 = scalar_lea.vmem %s21, %s3415
      %p3417 = scmp.lt.s32.totalorder %s34, 1
      %s3418 = scalar_select %p3417, %s34, 1
      %s3419 = smul.addr %s3418, 8
      %s3420 = scalar_lea.vmem %s22, %s3419
      // Predicated region
      $region101: #{llmcl4rec_forward.1} parent=99 // pred_check
        %p3421 = pneg %p482
      $region102: #{llmcl4rec_forward.1} parent=99 // pred_check_branch
        %3423 = sbr.rel (%p3421) target = $region104
      $region103: #{llmcl4rec_forward.1} parent=99 // pred_region
        _
      $region104: #{llmcl4rec_forward.1} parent=99 // pred_fallthru
        _
      // Predicated region
      $region105: #{llmcl4rec_forward.1} parent=99 // pred_check
        %p3424 = pneg %p508
      $region106: #{llmcl4rec_forward.1} parent=99 // pred_check_branch
        %3426 = sbr.rel (%p3424) target = $region108
      $region107: #{llmcl4rec_forward.1} parent=99 // pred_region
        _
      $region108: #{llmcl4rec_forward.1} parent=99 // pred_fallthru
        _
      // Predicated region
      $region109: #{llmcl4rec_forward.1} parent=99 // pred_check
        %p3427 = pneg %p534
      $region110: #{llmcl4rec_forward.1} parent=99 // pred_check_branch
        %3429 = sbr.rel (%p3427) target = $region112
      $region111: #{llmcl4rec_forward.1} parent=99 // pred_region
        _
      $region112: #{llmcl4rec_forward.1} parent=99 // pred_fallthru
        _
    $region100: #{llmcl4rec_forward.1} parent=5 // pred_fallthru
      _
    %p3430 = scmp.le.s32.totalorder 2, %s29
    // Predicated region
    $region113: #{llmcl4rec_forward.1} parent=5 // pred_check
      %p3431 = pneg %p3430
    $region114: #{llmcl4rec_forward.1} parent=5 // pred_check_branch
      %3433 = sbr.rel (%p3431) target = $region116
    $region115: #{llmcl4rec_forward.1} parent=5 // pred_region
      %s3434 = ssub.s32 %s29, 2
      // Predicated region
      $region117: #{llmcl4rec_forward.1} parent=115 // pred_check
        %p3435 = pneg %p488
      $region118: #{llmcl4rec_forward.1} parent=115 // pred_check_branch
        %3437 = sbr.rel (%p3435) target = $region120
      $region119: #{llmcl4rec_forward.1} parent=115 // pred_region
        %p3438 = scmp.lt.s32.totalorder %s35, 1
        %s3439 = scalar_select %p3438, %s35, 1
        %s3440 = smul.addr %s3439, 8
        %s3441 = scalar_lea.vmem %s20, %s3440
      $region120: #{llmcl4rec_forward.1} parent=115 // pred_fallthru
        _
      // Predicated region
      $region121: #{llmcl4rec_forward.1} parent=115 // pred_check
        %p3442 = pneg %p514
      $region122: #{llmcl4rec_forward.1} parent=115 // pred_check_branch
        %3444 = sbr.rel (%p3442) target = $region124
      $region123: #{llmcl4rec_forward.1} parent=115 // pred_region
        %p3445 = scmp.lt.s32.totalorder %s35, 1
        %s3446 = scalar_select %p3445, %s35, 1
        %s3447 = smul.addr %s3446, 8
        %s3448 = scalar_lea.vmem %s21, %s3447
      $region124: #{llmcl4rec_forward.1} parent=115 // pred_fallthru
        _
      // Predicated region
      $region125: #{llmcl4rec_forward.1} parent=115 // pred_check
        %p3449 = pneg %p540
      $region126: #{llmcl4rec_forward.1} parent=115 // pred_check_branch
        %3451 = sbr.rel (%p3449) target = $region128
      $region127: #{llmcl4rec_forward.1} parent=115 // pred_region
        %p3452 = scmp.lt.s32.totalorder %s35, 1
        %s3453 = scalar_select %p3452, %s35, 1
        %s3454 = smul.addr %s3453, 8
        %s3455 = scalar_lea.vmem %s22, %s3454
      $region128: #{llmcl4rec_forward.1} parent=115 // pred_fallthru
        _
    $region116: #{llmcl4rec_forward.1} parent=5 // pred_fallthru
      _
  $region6: #{llmcl4rec_forward.1} parent=0 // loop_footer
    %s33 = sadd.s32 1, %s29
  $region7: #{llmcl4rec_forward.1} parent=0 // loop_footer_branch
    %28 = sbr.rel target = $region3
  $region8: #{llmcl4rec_forward.1} parent=0 // loop_exit
    _

</llo_original>
